<compile_context>
chip_gen: v7x
topology: tpu7x:2x2x1
jax: 0.10.0
libtpu: 0.0.40
codegen_flags: <defaults>
</compile_context>

<pallas_src>
import math
import functools

import jax
import jax.numpy as jnp
from jax import lax
from jax.experimental import pallas as pl
from jax.experimental.pallas import tpu as pltpu

# Default mic-pair indices from af_index='1,0;2,0;3,0;4,0;5,0;6,0'
INDEX_L = (1, 2, 3, 4, 5, 6)
INDEX_R = (0, 0, 0, 0, 0, 0)


def _angle_feature_kernel(sizes_ref, dif_ref, p_ref, o_ref, *, index_l, index_r):
    """One grid step == one (batch, time-tile).

    sizes_ref: (N,)            int32   SMEM  valid number of frames per utterance
    dif_ref  : (1, K, F, 1)    float32 VMEM  per-pair oracle phase-delay difference
    p_ref    : (1, C, F, TT)   VMEM    multi-channel phase tile
    o_ref    : (1, F, TT)      VMEM    angle-feature output tile
    """
    n = pl.program_id(0)
    tb = pl.program_id(1)
    F = o_ref.shape[1]
    TT = o_ref.shape[2]
    num_pairs = len(index_l)

    tile_start = tb * TT           # tile-global time offset
    size_n = sizes_ref[n]

    @pl.when(tile_start < size_n)
    def _compute():
        # Load each distinct channel at most once (index_r is all-zeros in the
        # default config, so this hoists the reference channel out of the loop).
        loaded = {}

        def chan(c):
            if c not in loaded:
                loaded[c] = p_ref[0, c, :, :].astype(jnp.float32)
            return loaded[c]

        acc = jnp.zeros((F, TT), jnp.float32)
        for k in range(num_pairs):                       # static unroll, K = 6
            ipd = chan(index_l[k]) - chan(index_r[k])    # (F, TT)
            dif = dif_ref[0, k, :, :]                    # (F, 1), precomputed
            acc = acc + jnp.cos(ipd - dif)
        af = acc * (1.0 / num_pairs)

        # zero out frames t >= input_sizes[n]
        # (the PyTorch code indexes af[i, :, :, sizes[i]:], which only
        #  type-checks for the 4-D num_doas != 1 case; the intent — mask the
        #  time axis — is implemented here with the tile-global index.)
        t_idx = lax.broadcasted_iota(jnp.int32, (F, TT), 1) + tile_start
        valid = t_idx < size_n
        o_ref[0, :, :] = jnp.where(valid, af, 0.0).astype(o_ref.dtype)

    @pl.when(tile_start >= size_n)
    def _skip():
        # Entire tile is past the valid length: no cos chain, just zeros.
        o_ref[0, :, :] = jnp.zeros((F, TT), o_ref.dtype)


def angle_feature(p, doa, input_sizes, *, sr=16000, velocity=340.0,
                  index_l=INDEX_L, index_r=INDEX_R, time_tile=512):
    """JAX/Pallas equivalent of AngleFeature.forward (num_doas == 1).

    p           : (N, C, F, T) float32/bfloat16 phase matrix (C == 7)
    doa         : (N,)         float32 target DoA per batch element
    input_sizes : (N,)         int     valid frame counts
    returns     : (N, F, T)    same dtype as p
    """
    N, C, F, T = p.shape
    K = len(index_l)
    assert time_tile % 128 == 0, "time_tile must be a multiple of 128"

    # --- glue: omega, steering delays tau, per-pair phase-delay diff (tiny) ---
    omega = (math.pi * sr / (F - 1)) * jnp.arange(F, dtype=jnp.float32)   # (F,)
    R = 0.0425
    doa = doa.astype(jnp.float32)
    zero = jnp.zeros_like(doa)
    tau = R * jnp.stack(
        [zero,
         -jnp.cos(doa),
         -jnp.cos(math.pi / 3 - doa),
         -jnp.cos(2 * math.pi / 3 - doa),
         jnp.cos(doa),
         jnp.cos(math.pi / 3 - doa),
         jnp.cos(2 * math.pi / 3 - doa)], axis=-1) / velocity             # (N, 7)
    dtau = tau[:, jnp.array(index_l)] - tau[:, jnp.array(index_r)]        # (N, K)
    dif = (-dtau[:, :, None] * omega[None, None, :])[..., None]           # (N, K, F, 1)
    dif = dif.astype(jnp.float32)
    sizes = input_sizes.astype(jnp.int32)                                 # (N,)

    # --- time tiling ---
    if T <= time_tile:
        tt = T                       # single full-extent block (always legal)
        grid_t = 1
    else:
        tt = time_tile               # lane-dense 128-multiple tiles
        grid_t = pl.cdiv(T, tt)      # last tile may be partial (masked by Pallas)

    # --- explicit VMEM budget: 2x (double-buffered) in + out tiles + slack ---
    itemsize = p.dtype.itemsize
    p_tile_bytes = C * F * tt * itemsize
    o_tile_bytes = F * tt * itemsize
    dif_bytes = K * F * 4
    vmem_limit = int(min(max(2 * (p_tile_bytes + o_tile_bytes + dif_bytes)
                             + (4 << 20), 16 << 20), 128 << 20))

    kernel = functools.partial(_angle_feature_kernel,
                               index_l=tuple(index_l),
                               index_r=tuple(index_r))

    return pl.pallas_call(
        kernel,
        out_shape=jax.ShapeDtypeStruct((N, F, T), p.dtype),
        grid_spec=pl.GridSpec(
            grid=(N, grid_t),
            in_specs=[
                pl.BlockSpec(memory_space=pltpu.SMEM),                    # sizes
                pl.BlockSpec((1, K, F, 1), lambda n, t: (n, 0, 0, 0)),    # dif
                pl.BlockSpec((1, C, F, tt), lambda n, t: (n, 0, 0, t)),   # p
            ],
            out_specs=pl.BlockSpec((1, F, tt), lambda n, t: (n, 0, t)),
        ),
        compiler_params=pltpu.CompilerParams(
            dimension_semantics=("parallel", "parallel"),
            vmem_limit_bytes=vmem_limit),
    )(sizes, dif, p)


def _reference(p, doa, input_sizes, *, sr=16000, velocity=340.0,
               index_l=INDEX_L, index_r=INDEX_R):
    """Pure-JAX reference mirroring the PyTorch forward pass (num_doas == 1)."""
    N, C, F, T = p.shape
    omega = (math.pi * sr / (F - 1)) * jnp.arange(F, dtype=jnp.float32)    # (F,)
    R = 0.0425
    zero = jnp.zeros_like(doa)
    tau = R * jnp.stack(
        [zero, -jnp.cos(doa), -jnp.cos(math.pi / 3 - doa),
         -jnp.cos(2 * math.pi / 3 - doa), jnp.cos(doa),
         jnp.cos(math.pi / 3 - doa), jnp.cos(2 * math.pi / 3 - doa)],
        axis=-1) / velocity                                                # (N, 7)
    phi = tau[:, :, None] * (-omega)[None, None, :]                        # (N,7,F)
    d = phi[..., None]                                                     # (N,7,F,1)
    ipd = p[:, jnp.array(index_l)] - p[:, jnp.array(index_r)]              # (N,K,F,T)
    dif = d[:, jnp.array(index_l)] - d[:, jnp.array(index_r)]              # (N,K,F,1)
    af = jnp.mean(jnp.cos(ipd - dif), axis=1)                              # (N,F,T)
    t = jnp.arange(T)
    mask = t[None, None, :] < input_sizes.astype(jnp.int32)[:, None, None]
    return jnp.where(mask, af, 0.0)


if __name__ == "__main__":
    key = jax.random.PRNGKey(0)
    # Small but tiling-exercising shapes: two full 128-wide time tiles.
    N, C, F, T = 2, 7, 33, 256

    k1, k2 = jax.random.split(key)
    # phase matrix in [-pi, pi)
    p = jax.random.uniform(k1, (N, C, F, T), jnp.float32,
                           minval=-math.pi, maxval=math.pi)
    # DoA per batch element in [0, 2*pi)
    doa = jax.random.uniform(k2, (N,), jnp.float32,
                             minval=0.0, maxval=2.0 * math.pi)
    # second utterance is heavily padded -> exercises both the in-tile mask
    # and the fully-padded-tile skip branch
    input_sizes = jnp.array([T, 100], dtype=jnp.int32)

    af = angle_feature(p, doa, input_sizes, time_tile=128)
    af = jax.block_until_ready(af)

    ref = _reference(p, doa, input_sizes)
    if not jnp.allclose(af, ref, atol=1e-4, rtol=1e-4):
        raise AssertionError("Pallas kernel does not match JAX reference")

    print("KERNEL_OK")
</pallas_src>

<mosaic_0001>
module attributes {stable_mosaic.version = 11 : i64} {
  func.func @_angle_feature_kernel(%arg0: i32, %arg1: i32, %arg2: memref<2xi32, #tpu.memory_space<smem>>, %arg3: memref<1x6x33x1xf32, #tpu.memory_space<vmem>>, %arg4: memref<1x7x33x128xf32, #tpu.memory_space<vmem>>, %arg5: memref<1x33x128xf32, #tpu.memory_space<vmem>>) attributes {dimension_semantics = [#tpu.dimension_semantics<parallel>, #tpu.dimension_semantics<parallel>], iteration_bounds = array<i64: 2, 2>, scalar_prefetch = 0 : i64, scratch_operands = 0 : i64, tpu.core_type = #tpu.core_type<tc>, window_params = [{transform_indices = @transform_0, window_bounds = array<i64: 2>}, {transform_indices = @transform_1, window_bounds = array<i64: 1, 6, 33, 1>}, {transform_indices = @transform_2, window_bounds = array<i64: 1, 7, 33, 128>}, {transform_indices = @transform_3, window_bounds = array<i64: 1, 33, 128>}]} {
    %c128_i32 = arith.constant 128 : i32
    %0 = arith.muli %arg1, %c128_i32 : i32
    %1 = arith.index_cast %arg0 : i32 to index
    %2 = memref.load %arg2[%1] : memref<2xi32, #tpu.memory_space<smem>>
    %3 = arith.cmpi slt, %0, %2 : i32
    %4 = arith.extui %3 : i1 to i32
    %c0_i32 = arith.constant 0 : i32
    %5 = arith.cmpi ne, %4, %c0_i32 : i32
    scf.if %5 {
      %cst = arith.constant 0.000000e+00 : f32
      %9 = vector.broadcast %cst : f32 to vector<33x128xf32>
      %c0 = arith.constant 0 : index
      %c1 = arith.constant 1 : index
      %c0_1 = arith.constant 0 : index
      %c0_2 = arith.constant 0 : index
      %10 = vector.load %arg4[%c0, %c1, %c0_1, %c0_2] : memref<1x7x33x128xf32, #tpu.memory_space<vmem>>, vector<1x1x33x128xf32>
      %11 = vector.shape_cast %10 : vector<1x1x33x128xf32> to vector<33x128xf32>
      %c0_3 = arith.constant 0 : index
      %c0_4 = arith.constant 0 : index
      %c0_5 = arith.constant 0 : index
      %c0_6 = arith.constant 0 : index
      %12 = vector.load %arg4[%c0_3, %c0_4, %c0_5, %c0_6] : memref<1x7x33x128xf32, #tpu.memory_space<vmem>>, vector<1x1x33x128xf32>
      %13 = vector.shape_cast %12 : vector<1x1x33x128xf32> to vector<33x128xf32>
      %14 = arith.subf %11, %13 : vector<33x128xf32>
      %c0_7 = arith.constant 0 : index
      %c0_8 = arith.constant 0 : index
      %c0_9 = arith.constant 0 : index
      %c0_10 = arith.constant 0 : index
      %15 = vector.load %arg3[%c0_7, %c0_8, %c0_9, %c0_10] : memref<1x6x33x1xf32, #tpu.memory_space<vmem>>, vector<1x1x33x1xf32>
      %16 = vector.shape_cast %15 : vector<1x1x33x1xf32> to vector<33x1xf32>
      %17 = vector.broadcast %16 : vector<33x1xf32> to vector<33x128xf32>
      %18 = arith.subf %14, %17 : vector<33x128xf32>
      %19 = math.cos %18 : vector<33x128xf32>
      %20 = arith.addf %9, %19 : vector<33x128xf32>
      %c0_11 = arith.constant 0 : index
      %c2 = arith.constant 2 : index
      %c0_12 = arith.constant 0 : index
      %c0_13 = arith.constant 0 : index
      %21 = vector.load %arg4[%c0_11, %c2, %c0_12, %c0_13] : memref<1x7x33x128xf32, #tpu.memory_space<vmem>>, vector<1x1x33x128xf32>
      %22 = vector.shape_cast %21 : vector<1x1x33x128xf32> to vector<33x128xf32>
      %23 = arith.subf %22, %13 : vector<33x128xf32>
      %c0_14 = arith.constant 0 : index
      %c1_15 = arith.constant 1 : index
      %c0_16 = arith.constant 0 : index
      %c0_17 = arith.constant 0 : index
      %24 = vector.load %arg3[%c0_14, %c1_15, %c0_16, %c0_17] : memref<1x6x33x1xf32, #tpu.memory_space<vmem>>, vector<1x1x33x1xf32>
      %25 = vector.shape_cast %24 : vector<1x1x33x1xf32> to vector<33x1xf32>
      %26 = vector.broadcast %25 : vector<33x1xf32> to vector<33x128xf32>
      %27 = arith.subf %23, %26 : vector<33x128xf32>
      %28 = math.cos %27 : vector<33x128xf32>
      %29 = arith.addf %20, %28 : vector<33x128xf32>
      %c0_18 = arith.constant 0 : index
      %c3 = arith.constant 3 : index
      %c0_19 = arith.constant 0 : index
      %c0_20 = arith.constant 0 : index
      %30 = vector.load %arg4[%c0_18, %c3, %c0_19, %c0_20] : memref<1x7x33x128xf32, #tpu.memory_space<vmem>>, vector<1x1x33x128xf32>
      %31 = vector.shape_cast %30 : vector<1x1x33x128xf32> to vector<33x128xf32>
      %32 = arith.subf %31, %13 : vector<33x128xf32>
      %c0_21 = arith.constant 0 : index
      %c2_22 = arith.constant 2 : index
      %c0_23 = arith.constant 0 : index
      %c0_24 = arith.constant 0 : index
      %33 = vector.load %arg3[%c0_21, %c2_22, %c0_23, %c0_24] : memref<1x6x33x1xf32, #tpu.memory_space<vmem>>, vector<1x1x33x1xf32>
      %34 = vector.shape_cast %33 : vector<1x1x33x1xf32> to vector<33x1xf32>
      %35 = vector.broadcast %34 : vector<33x1xf32> to vector<33x128xf32>
      %36 = arith.subf %32, %35 : vector<33x128xf32>
      %37 = math.cos %36 : vector<33x128xf32>
      %38 = arith.addf %29, %37 : vector<33x128xf32>
      %c0_25 = arith.constant 0 : index
      %c4 = arith.constant 4 : index
      %c0_26 = arith.constant 0 : index
      %c0_27 = arith.constant 0 : index
      %39 = vector.load %arg4[%c0_25, %c4, %c0_26, %c0_27] : memref<1x7x33x128xf32, #tpu.memory_space<vmem>>, vector<1x1x33x128xf32>
      %40 = vector.shape_cast %39 : vector<1x1x33x128xf32> to vector<33x128xf32>
      %41 = arith.subf %40, %13 : vector<33x128xf32>
      %c0_28 = arith.constant 0 : index
      %c3_29 = arith.constant 3 : index
      %c0_30 = arith.constant 0 : index
      %c0_31 = arith.constant 0 : index
      %42 = vector.load %arg3[%c0_28, %c3_29, %c0_30, %c0_31] : memref<1x6x33x1xf32, #tpu.memory_space<vmem>>, vector<1x1x33x1xf32>
      %43 = vector.shape_cast %42 : vector<1x1x33x1xf32> to vector<33x1xf32>
      %44 = vector.broadcast %43 : vector<33x1xf32> to vector<33x128xf32>
      %45 = arith.subf %41, %44 : vector<33x128xf32>
      %46 = math.cos %45 : vector<33x128xf32>
      %47 = arith.addf %38, %46 : vector<33x128xf32>
      %c0_32 = arith.constant 0 : index
      %c5 = arith.constant 5 : index
      %c0_33 = arith.constant 0 : index
      %c0_34 = arith.constant 0 : index
      %48 = vector.load %arg4[%c0_32, %c5, %c0_33, %c0_34] : memref<1x7x33x128xf32, #tpu.memory_space<vmem>>, vector<1x1x33x128xf32>
      %49 = vector.shape_cast %48 : vector<1x1x33x128xf32> to vector<33x128xf32>
      %50 = arith.subf %49, %13 : vector<33x128xf32>
      %c0_35 = arith.constant 0 : index
      %c4_36 = arith.constant 4 : index
      %c0_37 = arith.constant 0 : index
      %c0_38 = arith.constant 0 : index
      %51 = vector.load %arg3[%c0_35, %c4_36, %c0_37, %c0_38] : memref<1x6x33x1xf32, #tpu.memory_space<vmem>>, vector<1x1x33x1xf32>
      %52 = vector.shape_cast %51 : vector<1x1x33x1xf32> to vector<33x1xf32>
      %53 = vector.broadcast %52 : vector<33x1xf32> to vector<33x128xf32>
      %54 = arith.subf %50, %53 : vector<33x128xf32>
      %55 = math.cos %54 : vector<33x128xf32>
      %56 = arith.addf %47, %55 : vector<33x128xf32>
      %c0_39 = arith.constant 0 : index
      %c6 = arith.constant 6 : index
      %c0_40 = arith.constant 0 : index
      %c0_41 = arith.constant 0 : index
      %57 = vector.load %arg4[%c0_39, %c6, %c0_40, %c0_41] : memref<1x7x33x128xf32, #tpu.memory_space<vmem>>, vector<1x1x33x128xf32>
      %58 = vector.shape_cast %57 : vector<1x1x33x128xf32> to vector<33x128xf32>
      %59 = arith.subf %58, %13 : vector<33x128xf32>
      %c0_42 = arith.constant 0 : index
      %c5_43 = arith.constant 5 : index
      %c0_44 = arith.constant 0 : index
      %c0_45 = arith.constant 0 : index
      %60 = vector.load %arg3[%c0_42, %c5_43, %c0_44, %c0_45] : memref<1x6x33x1xf32, #tpu.memory_space<vmem>>, vector<1x1x33x1xf32>
      %61 = vector.shape_cast %60 : vector<1x1x33x1xf32> to vector<33x1xf32>
      %62 = vector.broadcast %61 : vector<33x1xf32> to vector<33x128xf32>
      %63 = arith.subf %59, %62 : vector<33x128xf32>
      %64 = math.cos %63 : vector<33x128xf32>
      %65 = arith.addf %56, %64 : vector<33x128xf32>
      %cst_46 = arith.constant 0.166666672 : f32
      %66 = vector.broadcast %cst_46 : f32 to vector<33x128xf32>
      %67 = arith.mulf %65, %66 : vector<33x128xf32>
      %68 = tpu.iota {dimensions = array<i32: 1>} : vector<33x128xi32>
      %69 = vector.broadcast %0 : i32 to vector<33x128xi32>
      %70 = arith.addi %68, %69 : vector<33x128xi32>
      %71 = vector.broadcast %2 : i32 to vector<33x128xi32>
      %72 = arith.cmpi slt, %70, %71 : vector<33x128xi32>
      %cst_47 = arith.constant 0.000000e+00 : f32
      %73 = vector.broadcast %cst_47 : f32 to vector<33x128xf32>
      %74 = arith.select %72, %67, %73 : vector<33x128xi1>, vector<33x128xf32>
      %c0_48 = arith.constant 0 : index
      %c0_49 = arith.constant 0 : index
      %c0_50 = arith.constant 0 : index
      %75 = vector.load %arg5[%c0_48, %c0_49, %c0_50] : memref<1x33x128xf32, #tpu.memory_space<vmem>>, vector<1x33x128xf32>
      %76 = vector.shape_cast %75 : vector<1x33x128xf32> to vector<33x128xf32>
      %77 = vector.shape_cast %74 : vector<33x128xf32> to vector<1x33x128xf32>
      tpu.vector_store %arg5[%c0_48, %c0_49, %c0_50], %77 {strides = array<i32>} : memref<1x33x128xf32, #tpu.memory_space<vmem>>, vector<1x33x128xf32>,
    } else {
    }
    %6 = arith.cmpi sge, %0, %2 : i32
    %7 = arith.extui %6 : i1 to i32
    %c0_i32_0 = arith.constant 0 : i32
    %8 = arith.cmpi ne, %7, %c0_i32_0 : i32
    scf.if %8 {
      %cst = arith.constant 0.000000e+00 : f32
      %9 = vector.broadcast %cst : f32 to vector<33x128xf32>
      %c0 = arith.constant 0 : index
      %c0_1 = arith.constant 0 : index
      %c0_2 = arith.constant 0 : index
      %10 = vector.load %arg5[%c0, %c0_1, %c0_2] : memref<1x33x128xf32, #tpu.memory_space<vmem>>, vector<1x33x128xf32>
      %11 = vector.shape_cast %10 : vector<1x33x128xf32> to vector<33x128xf32>
      %12 = vector.shape_cast %9 : vector<33x128xf32> to vector<1x33x128xf32>
      tpu.vector_store %arg5[%c0, %c0_1, %c0_2], %12 {strides = array<i32>} : memref<1x33x128xf32, #tpu.memory_space<vmem>>, vector<1x33x128xf32>,
    } else {
    }
    return
  }
  func.func @transform_0(%arg0: i32, %arg1: i32) -> i32 {
    %c0_i32 = arith.constant 0 : i32
    %c0_i32_0 = arith.constant 0 : i32
    return %c0_i32 : i32
  }
  func.func @transform_1(%arg0: i32, %arg1: i32) -> (i32, i32, i32, i32) {
    %c0_i32 = arith.constant 0 : i32
    %c0_i32_0 = arith.constant 0 : i32
    %c0_i32_1 = arith.constant 0 : i32
    %c0_i32_2 = arith.constant 0 : i32
    return %arg0, %c0_i32, %c0_i32_0, %c0_i32_1 : i32, i32, i32, i32
  }
  func.func @transform_2(%arg0: i32, %arg1: i32) -> (i32, i32, i32, i32) {
    %c0_i32 = arith.constant 0 : i32
    %c0_i32_0 = arith.constant 0 : i32
    %c0_i32_1 = arith.constant 0 : i32
    return %arg0, %c0_i32, %c0_i32_0, %arg1 : i32, i32, i32, i32
  }
  func.func @transform_3(%arg0: i32, %arg1: i32) -> (i32, i32, i32) {
    %c0_i32 = arith.constant 0 : i32
    %c0_i32_0 = arith.constant 0 : i32
    return %arg0, %c0_i32, %arg1 : i32, i32, i32
  }
}

</mosaic_0001>

<llo_original>
// kernel: tpu_custom_call.1
$region0: #{tpu_custom_call.1}
  #allocation0 [shape = 'u32[]', space=smem, size = 0x4, offset = 0x4, fixed_abs, tag = 'smem constant byte address 0x4 - core index']
  #allocation1 [shape = 'u32[144,128]{1,0:T(1,128)}', space=vmem, size = 0x12000, scoped, tag = 'internal scratch']
  %s0 = inlined_call_operand.vmem [shape: s32[2], index: 0, kind: input, shape index: {}]
  %s1 = inlined_call_operand.vmem [shape: f32[2,6,33,1], index: 1, kind: input, shape index: {}]
  %s2 = inlined_call_operand.vmem [shape: f32[2,7,33,256], index: 2, kind: input, shape index: {}]
  %s3 = inlined_call_operand.vmem [shape: f32[2,33,256], index: 3, kind: output, shape index: {}]
  %s4 = sld [smem:[#allocation0]]
  $region129: #{tpu_custom_call.1} parent=0
    _
  %s6 = ssub.s32 1, %s4
  %s7 = scalar_select 0, %s6, %s4
  $region1: #{tpu_custom_call.1} parent=0
    #allocation2 [shape = 'u8[512]{0}', space=smem, size = 0x200, scoped, tag = 'input window, operand 0, single buffered']
    #allocation3 [shape = 's32[2]{0}', space=sflag, size = 0x8, scoped, tag = 'scoped memory for tpu_custom_call.1']
    #allocation4 [shape = 'u8[286720]{0}', space=vmem, size = 0x46000, scoped, tag = 'input window, operand 2']
    #allocation5 [shape = 'u8[40960]{0}', space=vmem, size = 0xa000, scoped, tag = 'output window, operand 0']
    %8 = vsyncpa [#allocation3], 0
    loop: start=0, step=1, limit=6
    $region2: #{tpu_custom_call.1} parent=1 // loop_pre_header
      _
    $region3: #{tpu_custom_call.1} parent=1 // loop_header
      %s10 = sphi 0, %s14
      %p11 = scmp.ge.s32.totalorder %s10, 6
      %s17 = sphi 0, %s29
      %s18 = sphi 0, %s25
      %s19 = sphi 0, %s17
      %s20 = sphi 0, %s18
      %s21 = sphi 0, %s19
      %s22 = sphi 0, %s20
      %s30 = sphi 0, %s30
      %s32 = sphi 0, %s30
      %s33 = sphi 0, %s32
      %s47 = sphi 0, %s33
      %s53 = sphi 0, %s55
      %s56 = sphi 0, %s53
      %s57 = sphi 0, %s56
      %s73 = sphi 0, %s57
      %s81 = sphi 0, %s83
      %s84 = sphi 0, %s81
      %s85 = sphi 0, %s84
      %s101 = sphi 0, %s85
      %s109 = sphi 0, %s111
      %s112 = sphi 0, %s109
      %s113 = sphi 0, %s112
      %s129 = sphi 0, %s113
    $region4: #{tpu_custom_call.1} parent=1 // loop_header_branch
      %13 = sbr.rel (%p11) target = $region8
    $region5: #{tpu_custom_call.1} parent=1 // loop_body
      %s15 = ssub.s32 %s10, 1
      %s16 = ssub.s32 %s10, 2
      %s23 = sadd.s32 1, %s18
      %p24 = scmp.ge.s32.totalorder %s23, 2
      %s25 = scalar_select %p24, 0, %s23
      %s26 = sadd.s32 1, %s17
      %s27 = scalar_select %p24, %s26, %s17
      %p28 = scmp.ge.s32.totalorder %s27, 2
      %s29 = scalar_select %p28, 0, %s27
      %s31 = sadd.s32 %s30, 1
      %p34 = scmp.eq.s32.totalorder %s10, 3
      %p35 = scmp.ne.s32.totalorder %s30, %s32
      %p36 = scmp.eq.s32.totalorder %s10, 0
      %p37 = por %p35, %p36
      %p38 = scmp.ne.s32.totalorder %s30, %s32
      %p39 = scmp.eq.s32.totalorder %s15, 3
      %p40 = por %p38, %p39
      %p41 = scmp.ne.s32.totalorder %s32, %s33
      %p42 = scmp.eq.s32.totalorder %s15, 0
      %p43 = por %p41, %p42
      %p44 = scmp.ne.s32.totalorder %s32, %s33
      %p45 = scmp.eq.s32.totalorder %s16, 3
      %p46 = por %p44, %p45
      %p48 = scmp.ne.s32.totalorder %s33, %s47
      %p49 = scmp.eq.s32.totalorder %s16, 0
      %p50 = por %p48, %p49
      %s51 = ssub.s32 %s17, %s29
      %p52 = scmp.eq.s32.totalorder %s51, 0
      %s54 = sadd.s32 %s53, 1
      %s55 = scalar_select %p52, %s53, %s54
      %p58 = pneg %p52
      %p59 = scmp.eq.s32.totalorder %s10, 3
      %p60 = por %p58, %p59
      %p61 = scmp.ne.s32.totalorder %s53, %s56
      %p62 = scmp.eq.s32.totalorder %s10, 0
      %p63 = por %p61, %p62
      %p64 = scmp.ne.s32.totalorder %s53, %s56
      %p65 = scmp.eq.s32.totalorder %s15, 3
      %p66 = por %p64, %p65
      %p67 = scmp.ne.s32.totalorder %s56, %s57
      %p68 = scmp.eq.s32.totalorder %s15, 0
      %p69 = por %p67, %p68
      %p70 = scmp.ne.s32.totalorder %s56, %s57
      %p71 = scmp.eq.s32.totalorder %s16, 3
      %p72 = por %p70, %p71
      %p74 = scmp.ne.s32.totalorder %s57, %s73
      %p75 = scmp.eq.s32.totalorder %s16, 0
      %p76 = por %p74, %p75
      %s77 = ssub.s32 %s17, %s29
      %s78 = ssub.s32 %s18, %s25
      %s79 = sor.u32 %s77, %s78
      %p80 = scmp.eq.s32.totalorder %s79, 0
      %s82 = sadd.s32 %s81, 1
      %s83 = scalar_select %p80, %s81, %s82
      %p86 = pneg %p80
      %p87 = scmp.eq.s32.totalorder %s10, 3
      %p88 = por %p86, %p87
      %p89 = scmp.ne.s32.totalorder %s81, %s84
      %p90 = scmp.eq.s32.totalorder %s10, 0
      %p91 = por %p89, %p90
      %p92 = scmp.ne.s32.totalorder %s81, %s84
      %p93 = scmp.eq.s32.totalorder %s15, 3
      %p94 = por %p92, %p93
      %p95 = scmp.ne.s32.totalorder %s84, %s85
      %p96 = scmp.eq.s32.totalorder %s15, 0
      %p97 = por %p95, %p96
      %p98 = scmp.ne.s32.totalorder %s84, %s85
      %p99 = scmp.eq.s32.totalorder %s16, 3
      %p100 = por %p98, %p99
      %p102 = scmp.ne.s32.totalorder %s85, %s101
      %p103 = scmp.eq.s32.totalorder %s16, 0
      %p104 = por %p102, %p103
      %s105 = ssub.s32 %s17, %s29
      %s106 = ssub.s32 %s18, %s25
      %s107 = sor.u32 %s105, %s106
      %p108 = scmp.eq.s32.totalorder %s107, 0
      %s110 = sadd.s32 %s109, 1
      %s111 = scalar_select %p108, %s109, %s110
      %p114 = pneg %p108
      %p115 = scmp.eq.s32.totalorder %s10, 3
      %p116 = por %p114, %p115
      %p117 = scmp.ne.s32.totalorder %s109, %s112
      %p118 = scmp.eq.s32.totalorder %s10, 0
      %p119 = por %p117, %p118
      %p120 = scmp.ne.s32.totalorder %s109, %s112
      %p121 = scmp.eq.s32.totalorder %s15, 3
      %p122 = por %p120, %p121
      %p123 = scmp.ne.s32.totalorder %s112, %s113
      %p124 = scmp.eq.s32.totalorder %s15, 0
      %p125 = por %p123, %p124
      %p126 = scmp.ne.s32.totalorder %s112, %s113
      %p127 = scmp.eq.s32.totalorder %s16, 3
      %p128 = por %p126, %p127
      %p130 = scmp.ne.s32.totalorder %s113, %s129
      %p131 = scmp.eq.s32.totalorder %s16, 0
      %p132 = por %p130, %p131
      %p133 = scmp.le.s32.totalorder 1, %s10
      %p134 = scmp.lt.s32.totalorder %s10, 5
      %p135 = pnand %p133, %p134
      %p136 = pneg %p135
      // Predicated region
      $region9: #{tpu_custom_call.1} parent=5 // pred_check
        _
      $region10: #{tpu_custom_call.1} parent=5 // pred_check_branch
        %138 = sbr.rel (%p135) target = $region12
      $region11: #{tpu_custom_call.1} parent=5 // pred_region
        %s139 = ssub.s32 %s10, 1
        // Predicated region
        $region13: #{tpu_custom_call.1} parent=11 // pred_check
          %p140 = pneg %p43
        $region14: #{tpu_custom_call.1} parent=11 // pred_check_branch
          %142 = sbr.rel (%p140) target = $region16
        $region15: #{tpu_custom_call.1} parent=11 // pred_region
          %s144 = ssub.s32 16, 16
          %145 = vsyncadd [#allocation3], %s144
          %s147 = sshll.u32 %s0, 4
          %s148 = int_to_ptr.vmem [resolvable:$true] %s147
          %150 = dma.vmem_to_smem %s148, 16, [#allocation2], [#allocation3]
        $region16: #{tpu_custom_call.1} parent=11 // pred_fallthru
          _
      $region12: #{tpu_custom_call.1} parent=5 // pred_fallthru
        _
      %p151 = scmp.lt.s32.totalorder %s10, 4
      // Predicated region
      $region17: #{tpu_custom_call.1} parent=5 // pred_check
        %p152 = pneg %p151
      $region18: #{tpu_custom_call.1} parent=5 // pred_check_branch
        %154 = sbr.rel (%p152) target = $region20
      $region19: #{tpu_custom_call.1} parent=5 // pred_region
        // Predicated region
        $region21: #{tpu_custom_call.1} parent=19 // pred_check
          %p155 = pneg %p63
        $region22: #{tpu_custom_call.1} parent=19 // pred_check_branch
          %157 = sbr.rel (%p155) target = $region24
        $region23: #{tpu_custom_call.1} parent=19 // pred_region
          %p158 = scmp.lt.s32.totalorder %s17, 1
          %s159 = scalar_select %p158, %s17, 1
          %s160 = smul.addr %s159, 30
          %s161 = smul.addr %s160, 8
          %s162 = scalar_lea.vmem %s1, %s161
        $region24: #{tpu_custom_call.1} parent=19 // pred_fallthru
          _
        // Predicated region
        $region25: #{tpu_custom_call.1} parent=19 // pred_check
          %p163 = pneg %p91
        $region26: #{tpu_custom_call.1} parent=19 // pred_check_branch
          %165 = sbr.rel (%p163) target = $region28
        $region27: #{tpu_custom_call.1} parent=19 // pred_region
          %s166 = sand.u32 %s81, 1
          %s167 = sand.u32 %s81, 1
          %s168 = smul.addr %s167, 280
          %s169 = scalar_lea.vmem [#allocation4], %s168
          %s170 = smul.addr %s17, 70
          %s171 = sadd.s32 %s18, %s170
          %s172 = smul.addr %s171, 8
          %s173 = scalar_lea.vmem %s2, %s172
          // Predicated region
          $region29: #{tpu_custom_call.1} parent=27 // pred_check
            _
          $region30: #{tpu_custom_call.1} parent=27 // pred_check_branch
            %175 = sbr.rel (0) target = $region32
          $region31: #{tpu_custom_call.1} parent=27 // pred_region
            // Predicated region
            $region33: #{tpu_custom_call.1} parent=31 // pred_check
              _
            $region34: #{tpu_custom_call.1} parent=31 // pred_check_branch
              %177 = sbr.rel (0) target = $region36
            $region35: #{tpu_custom_call.1} parent=31 // pred_region
              // Predicated region
              $region48: #{tpu_custom_call.1} parent=35 // pred_check
                _
              $region49: #{tpu_custom_call.1} parent=35 // pred_check_branch
                %260 = sbr.rel (0) target = $region51
              $region50: #{tpu_custom_call.1} parent=35 // pred_region
                loop: start=0, step=1, limit=1
                $region52: #{tpu_custom_call.1} parent=50 // loop_pre_header
                  _
                $region53: #{tpu_custom_call.1} parent=50 // loop_header
                  %s262 = sphi 0, %s266
                  %p263 = scmp.ge.s32.totalorder %s262, 1
                  %s267 = sphi %s173, %s173
                  %s268 = sphi %s169, %s169
                $region54: #{tpu_custom_call.1} parent=50 // loop_header_branch
                  %265 = sbr.rel (%p263) target = $region58
                $region55: #{tpu_custom_call.1} parent=50 // loop_body
                  %v269 = vld [vmem:[%s267] sm:$0xff]
                  %270 = vst [vmem:[%s268] sm:$0xff] %v269
                  %v271 = vld [vmem:[%s267 + $0x10] sm:$0xff]
                  %272 = vst [vmem:[%s268 + $0x8] sm:$0xff] %v271
                  %v273 = vld [vmem:[%s267 + $0x20] sm:$0xff]
                  %274 = vst [vmem:[%s268 + $0x10] sm:$0xff] %v273
                  %v275 = vld [vmem:[%s267 + $0x30] sm:$0xff]
                  %276 = vst [vmem:[%s268 + $0x18] sm:$0xff] %v275
                  %v277 = vld [vmem:[%s267 + $0x40] sm:$0xff]
                  %278 = vst [vmem:[%s268 + $0x20] sm:$0xff] %v277
                  %v279 = vld [vmem:[%s267 + $0x50] sm:$0xff]
                  %280 = vst [vmem:[%s268 + $0x28] sm:$0xff] %v279
                  %v281 = vld [vmem:[%s267 + $0x60] sm:$0xff]
                  %282 = vst [vmem:[%s268 + $0x30] sm:$0xff] %v281
                  %v283 = vld [vmem:[%s267 + $0x70] sm:$0xff]
                  %284 = vst [vmem:[%s268 + $0x38] sm:$0xff] %v283
                  %v285 = vld [vmem:[%s267 + $0x80] sm:$0xff]
                  %286 = vst [vmem:[%s268 + $0x40] sm:$0xff] %v285
                  %v287 = vld [vmem:[%s267 + $0x90] sm:$0xff]
                  %288 = vst [vmem:[%s268 + $0x48] sm:$0xff] %v287
                  %v289 = vld [vmem:[%s267 + $0xa0] sm:$0xff]
                  %290 = vst [vmem:[%s268 + $0x50] sm:$0xff] %v289
                  %v291 = vld [vmem:[%s267 + $0xb0] sm:$0xff]
                  %292 = vst [vmem:[%s268 + $0x58] sm:$0xff] %v291
                  %v293 = vld [vmem:[%s267 + $0xc0] sm:$0xff]
                  %294 = vst [vmem:[%s268 + $0x60] sm:$0xff] %v293
                  %v295 = vld [vmem:[%s267 + $0xd0] sm:$0xff]
                  %296 = vst [vmem:[%s268 + $0x68] sm:$0xff] %v295
                  %v297 = vld [vmem:[%s267 + $0xe0] sm:$0xff]
                  %298 = vst [vmem:[%s268 + $0x70] sm:$0xff] %v297
                  %v299 = vld [vmem:[%s267 + $0xf0] sm:$0xff]
                  %300 = vst [vmem:[%s268 + $0x78] sm:$0xff] %v299
                  %v301 = vld [vmem:[%s267 + $0x100] sm:$0xff]
                  %302 = vst [vmem:[%s268 + $0x80] sm:$0xff] %v301
                  %v303 = vld [vmem:[%s267 + $0x110] sm:$0xff]
                  %304 = vst [vmem:[%s268 + $0x88] sm:$0xff] %v303
                  %v305 = vld [vmem:[%s267 + $0x120] sm:$0xff]
                  %306 = vst [vmem:[%s268 + $0x90] sm:$0xff] %v305
                  %v307 = vld [vmem:[%s267 + $0x130] sm:$0xff]
                  %308 = vst [vmem:[%s268 + $0x98] sm:$0xff] %v307
                  %v309 = vld [vmem:[%s267 + $0x140] sm:$0xff]
                  %310 = vst [vmem:[%s268 + $0xa0] sm:$0xff] %v309
                  %v311 = vld [vmem:[%s267 + $0x150] sm:$0xff]
                  %312 = vst [vmem:[%s268 + $0xa8] sm:$0xff] %v311
                  %v313 = vld [vmem:[%s267 + $0x160] sm:$0xff]
                  %314 = vst [vmem:[%s268 + $0xb0] sm:$0xff] %v313
                  %v315 = vld [vmem:[%s267 + $0x170] sm:$0xff]
                  %316 = vst [vmem:[%s268 + $0xb8] sm:$0xff] %v315
                  %v317 = vld [vmem:[%s267 + $0x180] sm:$0xff]
                  %318 = vst [vmem:[%s268 + $0xc0] sm:$0xff] %v317
                  %v319 = vld [vmem:[%s267 + $0x190] sm:$0xff]
                  %320 = vst [vmem:[%s268 + $0xc8] sm:$0xff] %v319
                  %v321 = vld [vmem:[%s267 + $0x1a0] sm:$0xff]
                  %322 = vst [vmem:[%s268 + $0xd0] sm:$0xff] %v321
                  %v323 = vld [vmem:[%s267 + $0x1b0] sm:$0xff]
                  %324 = vst [vmem:[%s268 + $0xd8] sm:$0xff] %v323
                  %v325 = vld [vmem:[%s267 + $0x1c0] sm:$0xff]
                  %326 = vst [vmem:[%s268 + $0xe0] sm:$0xff] %v325
                  %v327 = vld [vmem:[%s267 + $0x1d0] sm:$0xff]
                  %328 = vst [vmem:[%s268 + $0xe8] sm:$0xff] %v327
                  %v329 = vld [vmem:[%s267 + $0x1e0] sm:$0xff]
                  %330 = vst [vmem:[%s268 + $0xf0] sm:$0xff] %v329
                  %v331 = vld [vmem:[%s267 + $0x1f0] sm:$0xff]
                  %332 = vst [vmem:[%s268 + $0xf8] sm:$0xff] %v331
                  %v333 = vld [vmem:[%s267 + $0x200] sm:$0xff]
                  %334 = vst [vmem:[%s268 + $0x100] sm:$0xff] %v333
                  %v335 = vld [vmem:[%s267 + $0x210] sm:$0xff]
                  %336 = vst [vmem:[%s268 + $0x108] sm:$0xff] %v335
                  %v337 = vld [vmem:[%s267 + $0x220] sm:$0xff]
                  %338 = vst [vmem:[%s268 + $0x110] sm:$0xff] %v337
                $region56: #{tpu_custom_call.1} parent=50 // loop_footer
                  %s266 = sadd.s32 1, %s262
                $region57: #{tpu_custom_call.1} parent=50 // loop_footer_branch
                  %261 = sbr.rel target = $region53
                $region58: #{tpu_custom_call.1} parent=50 // loop_exit
                  _
              $region51: #{tpu_custom_call.1} parent=35 // pred_fallthru
                _
              // Predicated region
              $region59: #{tpu_custom_call.1} parent=35 // pred_check
                _
              $region60: #{tpu_custom_call.1} parent=35 // pred_check_branch
                %340 = sbr.rel target = $region62
              $region61: #{tpu_custom_call.1} parent=35 // pred_region
                _
              $region62: #{tpu_custom_call.1} parent=35 // pred_fallthru
                _
            $region36: #{tpu_custom_call.1} parent=31 // pred_fallthru
              _
            // Predicated region
            $region37: #{tpu_custom_call.1} parent=31 // pred_check
              _
            $region38: #{tpu_custom_call.1} parent=31 // pred_check_branch
              %179 = sbr.rel target = $region40
            $region39: #{tpu_custom_call.1} parent=31 // pred_region
              loop: start=0, step=1, limit=1
              $region41: #{tpu_custom_call.1} parent=39 // loop_pre_header
                _
              $region42: #{tpu_custom_call.1} parent=39 // loop_header
                %s182 = sphi 0, %s186
                %p183 = scmp.ge.s32.totalorder %s182, 1
                %s187 = sphi %s173, %s173
                %s188 = sphi %s169, %s169
              $region43: #{tpu_custom_call.1} parent=39 // loop_header_branch
                %185 = sbr.rel (%p183) target = $region47
              $region44: #{tpu_custom_call.1} parent=39 // loop_body
                %v189 = vld [vmem:[%s187] sm:$0xff]
                %190 = vst [vmem:[%s188] sm:$0xff] %v189
                %v191 = vld [vmem:[%s187 + $0x10] sm:$0xff]
                %192 = vst [vmem:[%s188 + $0x8] sm:$0xff] %v191
                %v193 = vld [vmem:[%s187 + $0x20] sm:$0xff]
                %194 = vst [vmem:[%s188 + $0x10] sm:$0xff] %v193
                %v195 = vld [vmem:[%s187 + $0x30] sm:$0xff]
                %196 = vst [vmem:[%s188 + $0x18] sm:$0xff] %v195
                %v197 = vld [vmem:[%s187 + $0x40] sm:$0xff]
                %198 = vst [vmem:[%s188 + $0x20] sm:$0xff] %v197
                %v199 = vld [vmem:[%s187 + $0x50] sm:$0xff]
                %200 = vst [vmem:[%s188 + $0x28] sm:$0xff] %v199
                %v201 = vld [vmem:[%s187 + $0x60] sm:$0xff]
                %202 = vst [vmem:[%s188 + $0x30] sm:$0xff] %v201
                %v203 = vld [vmem:[%s187 + $0x70] sm:$0xff]
                %204 = vst [vmem:[%s188 + $0x38] sm:$0xff] %v203
                %v205 = vld [vmem:[%s187 + $0x80] sm:$0xff]
                %206 = vst [vmem:[%s188 + $0x40] sm:$0xff] %v205
                %v207 = vld [vmem:[%s187 + $0x90] sm:$0xff]
                %208 = vst [vmem:[%s188 + $0x48] sm:$0xff] %v207
                %v209 = vld [vmem:[%s187 + $0xa0] sm:$0xff]
                %210 = vst [vmem:[%s188 + $0x50] sm:$0xff] %v209
                %v211 = vld [vmem:[%s187 + $0xb0] sm:$0xff]
                %212 = vst [vmem:[%s188 + $0x58] sm:$0xff] %v211
                %v213 = vld [vmem:[%s187 + $0xc0] sm:$0xff]
                %214 = vst [vmem:[%s188 + $0x60] sm:$0xff] %v213
                %v215 = vld [vmem:[%s187 + $0xd0] sm:$0xff]
                %216 = vst [vmem:[%s188 + $0x68] sm:$0xff] %v215
                %v217 = vld [vmem:[%s187 + $0xe0] sm:$0xff]
                %218 = vst [vmem:[%s188 + $0x70] sm:$0xff] %v217
                %v219 = vld [vmem:[%s187 + $0xf0] sm:$0xff]
                %220 = vst [vmem:[%s188 + $0x78] sm:$0xff] %v219
                %v221 = vld [vmem:[%s187 + $0x100] sm:$0xff]
                %222 = vst [vmem:[%s188 + $0x80] sm:$0xff] %v221
                %v223 = vld [vmem:[%s187 + $0x110] sm:$0xff]
                %224 = vst [vmem:[%s188 + $0x88] sm:$0xff] %v223
                %v225 = vld [vmem:[%s187 + $0x120] sm:$0xff]
                %226 = vst [vmem:[%s188 + $0x90] sm:$0xff] %v225
                %v227 = vld [vmem:[%s187 + $0x130] sm:$0xff]
                %228 = vst [vmem:[%s188 + $0x98] sm:$0xff] %v227
                %v229 = vld [vmem:[%s187 + $0x140] sm:$0xff]
                %230 = vst [vmem:[%s188 + $0xa0] sm:$0xff] %v229
                %v231 = vld [vmem:[%s187 + $0x150] sm:$0xff]
                %232 = vst [vmem:[%s188 + $0xa8] sm:$0xff] %v231
                %v233 = vld [vmem:[%s187 + $0x160] sm:$0xff]
                %234 = vst [vmem:[%s188 + $0xb0] sm:$0xff] %v233
                %v235 = vld [vmem:[%s187 + $0x170] sm:$0xff]
                %236 = vst [vmem:[%s188 + $0xb8] sm:$0xff] %v235
                %v237 = vld [vmem:[%s187 + $0x180] sm:$0xff]
                %238 = vst [vmem:[%s188 + $0xc0] sm:$0xff] %v237
                %v239 = vld [vmem:[%s187 + $0x190] sm:$0xff]
                %240 = vst [vmem:[%s188 + $0xc8] sm:$0xff] %v239
                %v241 = vld [vmem:[%s187 + $0x1a0] sm:$0xff]
                %242 = vst [vmem:[%s188 + $0xd0] sm:$0xff] %v241
                %v243 = vld [vmem:[%s187 + $0x1b0] sm:$0xff]
                %244 = vst [vmem:[%s188 + $0xd8] sm:$0xff] %v243
                %v245 = vld [vmem:[%s187 + $0x1c0] sm:$0xff]
                %246 = vst [vmem:[%s188 + $0xe0] sm:$0xff] %v245
                %v247 = vld [vmem:[%s187 + $0x1d0] sm:$0xff]
                %248 = vst [vmem:[%s188 + $0xe8] sm:$0xff] %v247
                %v249 = vld [vmem:[%s187 + $0x1e0] sm:$0xff]
                %250 = vst [vmem:[%s188 + $0xf0] sm:$0xff] %v249
                %v251 = vld [vmem:[%s187 + $0x1f0] sm:$0xff]
                %252 = vst [vmem:[%s188 + $0xf8] sm:$0xff] %v251
                %v253 = vld [vmem:[%s187 + $0x200] sm:$0xff]
                %254 = vst [vmem:[%s188 + $0x100] sm:$0xff] %v253
                %v255 = vld [vmem:[%s187 + $0x210] sm:$0xff]
                %256 = vst [vmem:[%s188 + $0x108] sm:$0xff] %v255
                %v257 = vld [vmem:[%s187 + $0x220] sm:$0xff]
                %258 = vst [vmem:[%s188 + $0x110] sm:$0xff] %v257
              $region45: #{tpu_custom_call.1} parent=39 // loop_footer
                %s186 = sadd.s32 1, %s182
              $region46: #{tpu_custom_call.1} parent=39 // loop_footer_branch
                %181 = sbr.rel target = $region42
              $region47: #{tpu_custom_call.1} parent=39 // loop_exit
                _
            $region40: #{tpu_custom_call.1} parent=31 // pred_fallthru
              _
          $region32: #{tpu_custom_call.1} parent=27 // pred_fallthru
            _
          %341 = vnop
        $region28: #{tpu_custom_call.1} parent=19 // pred_fallthru
          _
      $region20: #{tpu_custom_call.1} parent=5 // pred_fallthru
        _
      %p342 = scmp.le.s32.totalorder 1, %s10
      %p343 = scmp.lt.s32.totalorder %s10, 5
      %p344 = pnand %p342, %p343
      %p345 = pneg %p344
      // Predicated region
      $region63: #{tpu_custom_call.1} parent=5 // pred_check
        _
      $region64: #{tpu_custom_call.1} parent=5 // pred_check_branch
        %347 = sbr.rel (%p344) target = $region66
      $region65: #{tpu_custom_call.1} parent=5 // pred_region
        %s348 = ssub.s32 %s10, 1
        // Predicated region
        $region67: #{tpu_custom_call.1} parent=65 // pred_check
          %p349 = pneg %p43
        $region68: #{tpu_custom_call.1} parent=65 // pred_check_branch
          %351 = sbr.rel (%p349) target = $region70
        $region69: #{tpu_custom_call.1} parent=65 // pred_region
          %352 = dma.done [#allocation3], 16
        $region70: #{tpu_custom_call.1} parent=65 // pred_fallthru
          _
        %s353 = sand.u32 %s84, 1
        %s354 = sand.u32 %s84, 1
        %s355 = smul.addr %s354, 280
        %s356 = scalar_lea.vmem [#allocation4], %s355
        // Predicated region
        $region71: #{tpu_custom_call.1} parent=65 // pred_check
          %p357 = pneg %p97
        $region72: #{tpu_custom_call.1} parent=65 // pred_check_branch
          %359 = sbr.rel (%p357) target = $region74
        $region73: #{tpu_custom_call.1} parent=65 // pred_region
          _
        $region74: #{tpu_custom_call.1} parent=65 // pred_fallthru
          _
        %360 = sfence
        %p361 = pneg %p43
        %p362 = pneg %p40
        %p363 = scmp.lt.s32.totalorder %s19, 1
        %s364 = scalar_select %p363, %s19, 1
        %s365 = smul.addr %s364, 30
        %s366 = smul.addr %s365, 8
        %s367 = scalar_lea.vmem %s1, %s366
        %p368 = pneg %p69
        %p369 = pneg %p66
        %s370 = sand.u32 %s84, 1
        %s371 = sand.u32 %s84, 1
        %s372 = smul.addr %s371, 280
        %s373 = scalar_lea.vmem [#allocation4], %s372
        %p374 = pneg %p97
        %p375 = pneg %p94
        %p376 = pneg %p125
        %p377 = pneg %p122
        %s378 = sand.u32 %s112, 1
        %s379 = sand.u32 %s112, 1
        %s380 = smul.addr %s379, 40
        %s381 = scalar_lea.vmem [#allocation5], %s380
        %p382 = scmp.lt.s32.totalorder %s19, 1
        %s383 = scalar_select %p382, %s19, 1
        %s384 = smul.addr %s383, 30
        %s385 = smul.addr %s384, 8
        %s386 = scalar_lea.vmem %s1, %s385
        %s387 = smul.u32 %s20, 128
        %s388 = sld [smem:[#allocation2 + %s19]]
        %p389 = scmp.lt.s32.totalorder %s387, %s388
        // Predicated region
        $region75: #{tpu_custom_call.1} parent=65 // pred_check
          %p390 = pneg %p389
        $region76: #{tpu_custom_call.1} parent=65 // pred_check_branch
          %392 = sbr.rel (%p390) target = $region78
        $region77: #{tpu_custom_call.1} parent=65 // pred_region
          %s393 = scalar_lea.vmem %s356, 40 [#allocation4]
          %v394 = vld [vmem:[%s393] sm:$0xff]
          %v395 = vld [vmem:[%s393 + $0x8] sm:$0xff]
          %v396 = vld [vmem:[%s393 + $0x10] sm:$0xff]
          %v397 = vld [vmem:[%s393 + $0x18] sm:$0xff]
          %v398 = vld [vmem:[%s393 + $0x20] sm:$0x1]
          %v399 = vld [vmem:[%s356] sm:$0xff]
          %v400 = vld [vmem:[%s356 + $0x8] sm:$0xff]
          %v401 = vld [vmem:[%s356 + $0x10] sm:$0xff]
          %v402 = vld [vmem:[%s356 + $0x18] sm:$0xff]
          %v403 = vld [vmem:[%s356 + $0x20] sm:$0x1]
          %v404 = vsub.f32 %v394, %v399
          %v405 = vsub.f32 %v395, %v400
          %v406 = vsub.f32 %v396, %v401
          %v407 = vsub.f32 %v397, %v402
          %v408 = vsub.f32 %v398, %v403
          %v409 = vld [vmem:[%s386] sm:$0xff]
          %v410 = vld [vmem:[%s386 + $0x8] sm:$0xff]
          %v411 = vld [vmem:[%s386 + $0x10] sm:$0xff]
          %v412 = vld [vmem:[%s386 + $0x18] sm:$0xff]
          %v413 = vld [vmem:[%s386 + $0x20] sm:$0x1]
          %415 = vset.pattern.permute.xlu0 0
          %416 = vperm.xlu0 %415, %v409
          %v417 = vpop.permute.xlu0 %416
          %420 = vset.pattern.permute.xlu0 0
          %421 = vperm.xlu0 %420, %v410
          %v422 = vpop.permute.xlu0 %421
          %425 = vset.pattern.permute.xlu0 0
          %426 = vperm.xlu0 %425, %v411
          %v427 = vpop.permute.xlu0 %426
          %430 = vset.pattern.permute.xlu0 0
          %431 = vperm.xlu0 %430, %v412
          %v432 = vpop.permute.xlu0 %431
          %435 = vset.pattern.permute.xlu0 0
          %436 = vperm.xlu0 %435, %v413
          %v437 = vpop.permute.xlu0 %436
          %v439 = vsub.f32 %v404, %v417
          %v440 = vsub.f32 %v405, %v422
          %v441 = vsub.f32 %v406, %v427
          %v442 = vsub.f32 %v407, %v432
          %v443 = vsub.f32 %v408, %v437
          %v444 = vand.u32 2147483647, %v439
          %vm445 = vcmp.le.f32.partialorder %v444, 0.7853982
          %vm446 = vcmp.lt.s32.totalorder %v439, 0
          %v447 = vand.u32 %v439, 2139095040
          %v448 = vshrl.u32 %v447, 23
          %v449 = vsub.s32 %v448, 127
          %v450 = vand.u32 2147483647, %v439
          %v451 = vand.u32 %v450, 8388607
          %v452 = vor.u32 %v451, 8388608
          %v453 = vsub.s32 0, %v452
          %v454 = vadd.s32 %v449, 1
          %vm455 = vcmp.gt.s32.totalorder %v454, 0
          %v456 = vsel %vm455, %v454, 0
          %v457 = vshrl.u32 %v456, 5
          %v458 = vand.u32 %v456, 31
          %v459 = vsub.s32 32, %v458
          %v460 = vshrl.u32 683565275, %v459
          %v461 = vshll.u32 683565275, %v458
          %v462 = vshrl.u32 2475754826, %v459
          %v463 = vor.u32 %v461, %v462
          %v464 = vshll.u32 2475754826, %v458
          %v465 = vshrl.u32 2131351028, %v459
          %v466 = vor.u32 %v464, %v465
          %v467 = vshll.u32 2131351028, %v458
          %v468 = vshrl.u32 2102212464, %v459
          %v469 = vor.u32 %v467, %v468
          %v470 = vshll.u32 2102212464, %v458
          %v471 = vshrl.u32 920167782, %v459
          %v472 = vor.u32 %v470, %v471
          %v473 = vshll.u32 920167782, %v458
          %v474 = vshrl.u32 1326507024, %v459
          %v475 = vor.u32 %v473, %v474
          %vm476 = vcmp.lt.s32.totalorder %v457, 1
          %vm477 = vcmp.lt.s32.totalorder %v457, 2
          %vm478 = vcmp.lt.s32.totalorder %v457, 3
          %vm479 = vcmp.lt.s32.totalorder %v457, 4
          %v480 = vsel %vm476, %v460, %v463
          %v481 = vsel %vm479, %v469, 2102212464
          %v482 = vsel %vm478, %v466, %v481
          %v483 = vsel %vm477, %v480, %v482
          %v484 = vsel %vm476, %v463, %v466
          %v485 = vsel %vm479, %v472, 920167782
          %v486 = vsel %vm478, %v469, %v485
          %v487 = vsel %vm477, %v484, %v486
          %v488 = vsel %vm476, %v466, %v469
          %v489 = vsel %vm479, %v475, 1326507024
          %v490 = vsel %vm478, %v472, %v489
          %v491 = vsel %vm477, %v488, %v490
          %v492 = vshll.u32 %v452, 8
          %v493 = vmul.u32.u64.compose %v492, %v491
          %v494 = vextract.low.u32 %v493
          %v495 = vextract.high.u32 %v493
          %v496 = vmul.u32.u64.compose %v492, %v487
          %v497 = vextract.low.u32 %v496
          %v498 = vextract.high.u32 %v496
          %v499 = vmul.u32 %v492, %v483
          %v500 = vadd.s32 %v495, %v497
          %vm501 = vc.u32 %v495, %v497
          %v502 = vadd.s32 %v498, 1
          %v503 = vsel %vm501, %v502, %v498
          %v504 = vadd.s32 %v499, %v503
          %v505 = vadd.s32 %v504, 536870912
          %v506 = vshrl.u32 %v505, 30
          %v507 = vshll.u32 %v506, 30
          %v508 = vsub.s32 %v504, %v507
          %vm509 = vcmp.lt.s32.totalorder %v508, 0
          %v510 = vsub.s32 0, %v508
          %v511 = vsel %vm509, %v510, %v508
          %v512 = vclz %v511
          %v513 = vsub.s32 %v512, 2
          %vm514 = vcmp.gt.s32.totalorder 0, %v513
          %v515 = vsel %vm514, 0, %v513
          %v516 = vsub.s32 32, %v515
          %v517 = vshll.u32 %v508, %v515
          %v518 = vshrl.u32 %v500, %v516
          %v519 = vor.u32 %v517, %v518
          %v520 = vsub.s32 4294967266, %v515
          %v521 = vadd.s32 %v520, 127
          %v522 = vshll.u32 %v521, 23
          %v523 = vor.u32 4788187, %v522
          %v524 = vand.u32 2147483647, %v523
          %v526 = vcvt.s32.f32 %v519
          %v527 = vmul.f32 %v526, %v524
          %v528 = vxor.u32 %v527, 2147483648
          %v529 = vsel %vm446, %v528, %v527
          %v530 = vsub.s32 4, %v506
          %v531 = vsel %vm446, %v530, %v506
          %v532 = vsel %vm445, %v439, %v529
          %v533 = vsel %vm445, 0, %v531
          %v534 = vcosq.f32.pop %v532
          %v535 = vsinq.f32.pop %v532
          %vm536 = vweird.f32 %v439
          %v537 = vand.u32 %v533, 3
          %vm538 = vcmp.lt.s32.totalorder %v537, 2
          %vm539 = vcmp.eq.s32.totalorder %v537, 0
          %v540 = vxor.u32 %v535, 2147483648
          %v541 = vsel %vm539, %v534, %v540
          %vm542 = vcmp.eq.s32.totalorder %v537, 2
          %v543 = vxor.u32 %v534, 2147483648
          %v544 = vsel %vm542, %v543, %v535
          %v545 = vsel %vm538, %v541, %v544
          %v546 = vsel %vm536, nan, %v545
          %v547 = vand.u32 2147483647, %v440
          %vm548 = vcmp.le.f32.partialorder %v547, 0.7853982
          %vm549 = vcmp.lt.s32.totalorder %v440, 0
          %v550 = vand.u32 %v440, 2139095040
          %v551 = vshrl.u32 %v550, 23
          %v552 = vsub.s32 %v551, 127
          %v553 = vand.u32 2147483647, %v440
          %v554 = vand.u32 %v553, 8388607
          %v555 = vor.u32 %v554, 8388608
          %v556 = vsub.s32 0, %v555
          %v557 = vadd.s32 %v552, 1
          %vm558 = vcmp.gt.s32.totalorder %v557, 0
          %v559 = vsel %vm558, %v557, 0
          %v560 = vshrl.u32 %v559, 5
          %v561 = vand.u32 %v559, 31
          %v562 = vsub.s32 32, %v561
          %v563 = vshrl.u32 683565275, %v562
          %v564 = vshll.u32 683565275, %v561
          %v565 = vshrl.u32 2475754826, %v562
          %v566 = vor.u32 %v564, %v565
          %v567 = vshll.u32 2475754826, %v561
          %v568 = vshrl.u32 2131351028, %v562
          %v569 = vor.u32 %v567, %v568
          %v570 = vshll.u32 2131351028, %v561
          %v571 = vshrl.u32 2102212464, %v562
          %v572 = vor.u32 %v570, %v571
          %v573 = vshll.u32 2102212464, %v561
          %v574 = vshrl.u32 920167782, %v562
          %v575 = vor.u32 %v573, %v574
          %v576 = vshll.u32 920167782, %v561
          %v577 = vshrl.u32 1326507024, %v562
          %v578 = vor.u32 %v576, %v577
          %vm579 = vcmp.lt.s32.totalorder %v560, 1
          %vm580 = vcmp.lt.s32.totalorder %v560, 2
          %vm581 = vcmp.lt.s32.totalorder %v560, 3
          %vm582 = vcmp.lt.s32.totalorder %v560, 4
          %v583 = vsel %vm579, %v563, %v566
          %v584 = vsel %vm582, %v572, 2102212464
          %v585 = vsel %vm581, %v569, %v584
          %v586 = vsel %vm580, %v583, %v585
          %v587 = vsel %vm579, %v566, %v569
          %v588 = vsel %vm582, %v575, 920167782
          %v589 = vsel %vm581, %v572, %v588
          %v590 = vsel %vm580, %v587, %v589
          %v591 = vsel %vm579, %v569, %v572
          %v592 = vsel %vm582, %v578, 1326507024
          %v593 = vsel %vm581, %v575, %v592
          %v594 = vsel %vm580, %v591, %v593
          %v595 = vshll.u32 %v555, 8
          %v596 = vmul.u32.u64.compose %v595, %v594
          %v597 = vextract.low.u32 %v596
          %v598 = vextract.high.u32 %v596
          %v599 = vmul.u32.u64.compose %v595, %v590
          %v600 = vextract.low.u32 %v599
          %v601 = vextract.high.u32 %v599
          %v602 = vmul.u32 %v595, %v586
          %v603 = vadd.s32 %v598, %v600
          %vm604 = vc.u32 %v598, %v600
          %v605 = vadd.s32 %v601, 1
          %v606 = vsel %vm604, %v605, %v601
          %v607 = vadd.s32 %v602, %v606
          %v608 = vadd.s32 %v607, 536870912
          %v609 = vshrl.u32 %v608, 30
          %v610 = vshll.u32 %v609, 30
          %v611 = vsub.s32 %v607, %v610
          %vm612 = vcmp.lt.s32.totalorder %v611, 0
          %v613 = vsub.s32 0, %v611
          %v614 = vsel %vm612, %v613, %v611
          %v615 = vclz %v614
          %v616 = vsub.s32 %v615, 2
          %vm617 = vcmp.gt.s32.totalorder 0, %v616
          %v618 = vsel %vm617, 0, %v616
          %v619 = vsub.s32 32, %v618
          %v620 = vshll.u32 %v611, %v618
          %v621 = vshrl.u32 %v603, %v619
          %v622 = vor.u32 %v620, %v621
          %v623 = vsub.s32 4294967266, %v618
          %v624 = vadd.s32 %v623, 127
          %v625 = vshll.u32 %v624, 23
          %v626 = vor.u32 4788187, %v625
          %v627 = vand.u32 2147483647, %v626
          %v629 = vcvt.s32.f32 %v622
          %v630 = vmul.f32 %v629, %v627
          %v631 = vxor.u32 %v630, 2147483648
          %v632 = vsel %vm549, %v631, %v630
          %v633 = vsub.s32 4, %v609
          %v634 = vsel %vm549, %v633, %v609
          %v635 = vsel %vm548, %v440, %v632
          %v636 = vsel %vm548, 0, %v634
          %v637 = vcosq.f32.pop %v635
          %v638 = vsinq.f32.pop %v635
          %vm639 = vweird.f32 %v440
          %v640 = vand.u32 %v636, 3
          %vm641 = vcmp.lt.s32.totalorder %v640, 2
          %vm642 = vcmp.eq.s32.totalorder %v640, 0
          %v643 = vxor.u32 %v638, 2147483648
          %v644 = vsel %vm642, %v637, %v643
          %vm645 = vcmp.eq.s32.totalorder %v640, 2
          %v646 = vxor.u32 %v637, 2147483648
          %v647 = vsel %vm645, %v646, %v638
          %v648 = vsel %vm641, %v644, %v647
          %v649 = vsel %vm639, nan, %v648
          %v650 = vand.u32 2147483647, %v441
          %vm651 = vcmp.le.f32.partialorder %v650, 0.7853982
          %vm652 = vcmp.lt.s32.totalorder %v441, 0
          %v653 = vand.u32 %v441, 2139095040
          %v654 = vshrl.u32 %v653, 23
          %v655 = vsub.s32 %v654, 127
          %v656 = vand.u32 2147483647, %v441
          %v657 = vand.u32 %v656, 8388607
          %v658 = vor.u32 %v657, 8388608
          %v659 = vsub.s32 0, %v658
          %v660 = vadd.s32 %v655, 1
          %vm661 = vcmp.gt.s32.totalorder %v660, 0
          %v662 = vsel %vm661, %v660, 0
          %v663 = vshrl.u32 %v662, 5
          %v664 = vand.u32 %v662, 31
          %v665 = vsub.s32 32, %v664
          %v666 = vshrl.u32 683565275, %v665
          %v667 = vshll.u32 683565275, %v664
          %v668 = vshrl.u32 2475754826, %v665
          %v669 = vor.u32 %v667, %v668
          %v670 = vshll.u32 2475754826, %v664
          %v671 = vshrl.u32 2131351028, %v665
          %v672 = vor.u32 %v670, %v671
          %v673 = vshll.u32 2131351028, %v664
          %v674 = vshrl.u32 2102212464, %v665
          %v675 = vor.u32 %v673, %v674
          %v676 = vshll.u32 2102212464, %v664
          %v677 = vshrl.u32 920167782, %v665
          %v678 = vor.u32 %v676, %v677
          %v679 = vshll.u32 920167782, %v664
          %v680 = vshrl.u32 1326507024, %v665
          %v681 = vor.u32 %v679, %v680
          %vm682 = vcmp.lt.s32.totalorder %v663, 1
          %vm683 = vcmp.lt.s32.totalorder %v663, 2
          %vm684 = vcmp.lt.s32.totalorder %v663, 3
          %vm685 = vcmp.lt.s32.totalorder %v663, 4
          %v686 = vsel %vm682, %v666, %v669
          %v687 = vsel %vm685, %v675, 2102212464
          %v688 = vsel %vm684, %v672, %v687
          %v689 = vsel %vm683, %v686, %v688
          %v690 = vsel %vm682, %v669, %v672
          %v691 = vsel %vm685, %v678, 920167782
          %v692 = vsel %vm684, %v675, %v691
          %v693 = vsel %vm683, %v690, %v692
          %v694 = vsel %vm682, %v672, %v675
          %v695 = vsel %vm685, %v681, 1326507024
          %v696 = vsel %vm684, %v678, %v695
          %v697 = vsel %vm683, %v694, %v696
          %v698 = vshll.u32 %v658, 8
          %v699 = vmul.u32.u64.compose %v698, %v697
          %v700 = vextract.low.u32 %v699
          %v701 = vextract.high.u32 %v699
          %v702 = vmul.u32.u64.compose %v698, %v693
          %v703 = vextract.low.u32 %v702
          %v704 = vextract.high.u32 %v702
          %v705 = vmul.u32 %v698, %v689
          %v706 = vadd.s32 %v701, %v703
          %vm707 = vc.u32 %v701, %v703
          %v708 = vadd.s32 %v704, 1
          %v709 = vsel %vm707, %v708, %v704
          %v710 = vadd.s32 %v705, %v709
          %v711 = vadd.s32 %v710, 536870912
          %v712 = vshrl.u32 %v711, 30
          %v713 = vshll.u32 %v712, 30
          %v714 = vsub.s32 %v710, %v713
          %vm715 = vcmp.lt.s32.totalorder %v714, 0
          %v716 = vsub.s32 0, %v714
          %v717 = vsel %vm715, %v716, %v714
          %v718 = vclz %v717
          %v719 = vsub.s32 %v718, 2
          %vm720 = vcmp.gt.s32.totalorder 0, %v719
          %v721 = vsel %vm720, 0, %v719
          %v722 = vsub.s32 32, %v721
          %v723 = vshll.u32 %v714, %v721
          %v724 = vshrl.u32 %v706, %v722
          %v725 = vor.u32 %v723, %v724
          %v726 = vsub.s32 4294967266, %v721
          %v727 = vadd.s32 %v726, 127
          %v728 = vshll.u32 %v727, 23
          %v729 = vor.u32 4788187, %v728
          %v730 = vand.u32 2147483647, %v729
          %v732 = vcvt.s32.f32 %v725
          %v733 = vmul.f32 %v732, %v730
          %v734 = vxor.u32 %v733, 2147483648
          %v735 = vsel %vm652, %v734, %v733
          %v736 = vsub.s32 4, %v712
          %v737 = vsel %vm652, %v736, %v712
          %v738 = vsel %vm651, %v441, %v735
          %v739 = vsel %vm651, 0, %v737
          %v740 = vcosq.f32.pop %v738
          %v741 = vsinq.f32.pop %v738
          %vm742 = vweird.f32 %v441
          %v743 = vand.u32 %v739, 3
          %vm744 = vcmp.lt.s32.totalorder %v743, 2
          %vm745 = vcmp.eq.s32.totalorder %v743, 0
          %v746 = vxor.u32 %v741, 2147483648
          %v747 = vsel %vm745, %v740, %v746
          %vm748 = vcmp.eq.s32.totalorder %v743, 2
          %v749 = vxor.u32 %v740, 2147483648
          %v750 = vsel %vm748, %v749, %v741
          %v751 = vsel %vm744, %v747, %v750
          %v752 = vsel %vm742, nan, %v751
          %v753 = vand.u32 2147483647, %v442
          %vm754 = vcmp.le.f32.partialorder %v753, 0.7853982
          %vm755 = vcmp.lt.s32.totalorder %v442, 0
          %v756 = vand.u32 %v442, 2139095040
          %v757 = vshrl.u32 %v756, 23
          %v758 = vsub.s32 %v757, 127
          %v759 = vand.u32 2147483647, %v442
          %v760 = vand.u32 %v759, 8388607
          %v761 = vor.u32 %v760, 8388608
          %v762 = vsub.s32 0, %v761
          %v763 = vadd.s32 %v758, 1
          %vm764 = vcmp.gt.s32.totalorder %v763, 0
          %v765 = vsel %vm764, %v763, 0
          %v766 = vshrl.u32 %v765, 5
          %v767 = vand.u32 %v765, 31
          %v768 = vsub.s32 32, %v767
          %v769 = vshrl.u32 683565275, %v768
          %v770 = vshll.u32 683565275, %v767
          %v771 = vshrl.u32 2475754826, %v768
          %v772 = vor.u32 %v770, %v771
          %v773 = vshll.u32 2475754826, %v767
          %v774 = vshrl.u32 2131351028, %v768
          %v775 = vor.u32 %v773, %v774
          %v776 = vshll.u32 2131351028, %v767
          %v777 = vshrl.u32 2102212464, %v768
          %v778 = vor.u32 %v776, %v777
          %v779 = vshll.u32 2102212464, %v767
          %v780 = vshrl.u32 920167782, %v768
          %v781 = vor.u32 %v779, %v780
          %v782 = vshll.u32 920167782, %v767
          %v783 = vshrl.u32 1326507024, %v768
          %v784 = vor.u32 %v782, %v783
          %vm785 = vcmp.lt.s32.totalorder %v766, 1
          %vm786 = vcmp.lt.s32.totalorder %v766, 2
          %vm787 = vcmp.lt.s32.totalorder %v766, 3
          %vm788 = vcmp.lt.s32.totalorder %v766, 4
          %v789 = vsel %vm785, %v769, %v772
          %v790 = vsel %vm788, %v778, 2102212464
          %v791 = vsel %vm787, %v775, %v790
          %v792 = vsel %vm786, %v789, %v791
          %v793 = vsel %vm785, %v772, %v775
          %v794 = vsel %vm788, %v781, 920167782
          %v795 = vsel %vm787, %v778, %v794
          %v796 = vsel %vm786, %v793, %v795
          %v797 = vsel %vm785, %v775, %v778
          %v798 = vsel %vm788, %v784, 1326507024
          %v799 = vsel %vm787, %v781, %v798
          %v800 = vsel %vm786, %v797, %v799
          %v801 = vshll.u32 %v761, 8
          %v802 = vmul.u32.u64.compose %v801, %v800
          %v803 = vextract.low.u32 %v802
          %v804 = vextract.high.u32 %v802
          %v805 = vmul.u32.u64.compose %v801, %v796
          %v806 = vextract.low.u32 %v805
          %v807 = vextract.high.u32 %v805
          %v808 = vmul.u32 %v801, %v792
          %v809 = vadd.s32 %v804, %v806
          %vm810 = vc.u32 %v804, %v806
          %v811 = vadd.s32 %v807, 1
          %v812 = vsel %vm810, %v811, %v807
          %v813 = vadd.s32 %v808, %v812
          %v814 = vadd.s32 %v813, 536870912
          %v815 = vshrl.u32 %v814, 30
          %v816 = vshll.u32 %v815, 30
          %v817 = vsub.s32 %v813, %v816
          %vm818 = vcmp.lt.s32.totalorder %v817, 0
          %v819 = vsub.s32 0, %v817
          %v820 = vsel %vm818, %v819, %v817
          %v821 = vclz %v820
          %v822 = vsub.s32 %v821, 2
          %vm823 = vcmp.gt.s32.totalorder 0, %v822
          %v824 = vsel %vm823, 0, %v822
          %v825 = vsub.s32 32, %v824
          %v826 = vshll.u32 %v817, %v824
          %v827 = vshrl.u32 %v809, %v825
          %v828 = vor.u32 %v826, %v827
          %v829 = vsub.s32 4294967266, %v824
          %v830 = vadd.s32 %v829, 127
          %v831 = vshll.u32 %v830, 23
          %v832 = vor.u32 4788187, %v831
          %v833 = vand.u32 2147483647, %v832
          %v835 = vcvt.s32.f32 %v828
          %v836 = vmul.f32 %v835, %v833
          %v837 = vxor.u32 %v836, 2147483648
          %v838 = vsel %vm755, %v837, %v836
          %v839 = vsub.s32 4, %v815
          %v840 = vsel %vm755, %v839, %v815
          %v841 = vsel %vm754, %v442, %v838
          %v842 = vsel %vm754, 0, %v840
          %v843 = vcosq.f32.pop %v841
          %v844 = vsinq.f32.pop %v841
          %vm845 = vweird.f32 %v442
          %v846 = vand.u32 %v842, 3
          %vm847 = vcmp.lt.s32.totalorder %v846, 2
          %vm848 = vcmp.eq.s32.totalorder %v846, 0
          %v849 = vxor.u32 %v844, 2147483648
          %v850 = vsel %vm848, %v843, %v849
          %vm851 = vcmp.eq.s32.totalorder %v846, 2
          %v852 = vxor.u32 %v843, 2147483648
          %v853 = vsel %vm851, %v852, %v844
          %v854 = vsel %vm847, %v850, %v853
          %v855 = vsel %vm845, nan, %v854
          %v856 = vand.u32 2147483647, %v443
          %vm857 = vcmp.le.f32.partialorder %v856, 0.7853982
          %vm858 = vcmp.lt.s32.totalorder %v443, 0
          %v859 = vand.u32 %v443, 2139095040
          %v860 = vshrl.u32 %v859, 23
          %v861 = vsub.s32 %v860, 127
          %v862 = vand.u32 2147483647, %v443
          %v863 = vand.u32 %v862, 8388607
          %v864 = vor.u32 %v863, 8388608
          %v865 = vsub.s32 0, %v864
          %v866 = vadd.s32 %v861, 1
          %vm867 = vcmp.gt.s32.totalorder %v866, 0
          %v868 = vsel %vm867, %v866, 0
          %v869 = vshrl.u32 %v868, 5
          %v870 = vand.u32 %v868, 31
          %v871 = vsub.s32 32, %v870
          %v872 = vshrl.u32 683565275, %v871
          %v873 = vshll.u32 683565275, %v870
          %v874 = vshrl.u32 2475754826, %v871
          %v875 = vor.u32 %v873, %v874
          %v876 = vshll.u32 2475754826, %v870
          %v877 = vshrl.u32 2131351028, %v871
          %v878 = vor.u32 %v876, %v877
          %v879 = vshll.u32 2131351028, %v870
          %v880 = vshrl.u32 2102212464, %v871
          %v881 = vor.u32 %v879, %v880
          %v882 = vshll.u32 2102212464, %v870
          %v883 = vshrl.u32 920167782, %v871
          %v884 = vor.u32 %v882, %v883
          %v885 = vshll.u32 920167782, %v870
          %v886 = vshrl.u32 1326507024, %v871
          %v887 = vor.u32 %v885, %v886
          %vm888 = vcmp.lt.s32.totalorder %v869, 1
          %vm889 = vcmp.lt.s32.totalorder %v869, 2
          %vm890 = vcmp.lt.s32.totalorder %v869, 3
          %vm891 = vcmp.lt.s32.totalorder %v869, 4
          %v892 = vsel %vm888, %v872, %v875
          %v893 = vsel %vm891, %v881, 2102212464
          %v894 = vsel %vm890, %v878, %v893
          %v895 = vsel %vm889, %v892, %v894
          %v896 = vsel %vm888, %v875, %v878
          %v897 = vsel %vm891, %v884, 920167782
          %v898 = vsel %vm890, %v881, %v897
          %v899 = vsel %vm889, %v896, %v898
          %v900 = vsel %vm888, %v878, %v881
          %v901 = vsel %vm891, %v887, 1326507024
          %v902 = vsel %vm890, %v884, %v901
          %v903 = vsel %vm889, %v900, %v902
          %v904 = vshll.u32 %v864, 8
          %v905 = vmul.u32.u64.compose %v904, %v903
          %v906 = vextract.low.u32 %v905
          %v907 = vextract.high.u32 %v905
          %v908 = vmul.u32.u64.compose %v904, %v899
          %v909 = vextract.low.u32 %v908
          %v910 = vextract.high.u32 %v908
          %v911 = vmul.u32 %v904, %v895
          %v912 = vadd.s32 %v907, %v909
          %vm913 = vc.u32 %v907, %v909
          %v914 = vadd.s32 %v910, 1
          %v915 = vsel %vm913, %v914, %v910
          %v916 = vadd.s32 %v911, %v915
          %v917 = vadd.s32 %v916, 536870912
          %v918 = vshrl.u32 %v917, 30
          %v919 = vshll.u32 %v918, 30
          %v920 = vsub.s32 %v916, %v919
          %vm921 = vcmp.lt.s32.totalorder %v920, 0
          %v922 = vsub.s32 0, %v920
          %v923 = vsel %vm921, %v922, %v920
          %v924 = vclz %v923
          %v925 = vsub.s32 %v924, 2
          %vm926 = vcmp.gt.s32.totalorder 0, %v925
          %v927 = vsel %vm926, 0, %v925
          %v928 = vsub.s32 32, %v927
          %v929 = vshll.u32 %v920, %v927
          %v930 = vshrl.u32 %v912, %v928
          %v931 = vor.u32 %v929, %v930
          %v932 = vsub.s32 4294967266, %v927
          %v933 = vadd.s32 %v932, 127
          %v934 = vshll.u32 %v933, 23
          %v935 = vor.u32 4788187, %v934
          %v936 = vand.u32 2147483647, %v935
          %v938 = vcvt.s32.f32 %v931
          %v939 = vmul.f32 %v938, %v936
          %v940 = vxor.u32 %v939, 2147483648
          %v941 = vsel %vm858, %v940, %v939
          %v942 = vsub.s32 4, %v918
          %v943 = vsel %vm858, %v942, %v918
          %v944 = vsel %vm857, %v443, %v941
          %v945 = vsel %vm857, 0, %v943
          %v946 = vcosq.f32.pop %v944
          %v947 = vsinq.f32.pop %v944
          %vm948 = vweird.f32 %v443
          %v949 = vand.u32 %v945, 3
          %vm950 = vcmp.lt.s32.totalorder %v949, 2
          %vm951 = vcmp.eq.s32.totalorder %v949, 0
          %v952 = vxor.u32 %v947, 2147483648
          %v953 = vsel %vm951, %v946, %v952
          %vm954 = vcmp.eq.s32.totalorder %v949, 2
          %v955 = vxor.u32 %v946, 2147483648
          %v956 = vsel %vm954, %v955, %v947
          %v957 = vsel %vm950, %v953, %v956
          %v958 = vsel %vm948, nan, %v957
          %v959 = vadd.f32 %v546, 0.0
          %v960 = vadd.f32 %v649, 0.0
          %v961 = vadd.f32 %v752, 0.0
          %v962 = vadd.f32 %v855, 0.0
          %v963 = vadd.f32 %v958, 0.0
          %s964 = scalar_lea.vmem %s356, 80 [#allocation4]
          %v965 = vld [vmem:[%s964] sm:$0xff]
          %v966 = vld [vmem:[%s964 + $0x8] sm:$0xff]
          %v967 = vld [vmem:[%s964 + $0x10] sm:$0xff]
          %v968 = vld [vmem:[%s964 + $0x18] sm:$0xff]
          %v969 = vld [vmem:[%s964 + $0x20] sm:$0x1]
          %v970 = vsub.f32 %v965, %v399
          %v971 = vsub.f32 %v966, %v400
          %v972 = vsub.f32 %v967, %v401
          %v973 = vsub.f32 %v968, %v402
          %v974 = vsub.f32 %v969, %v403
          %s975 = scalar_lea.vmem %s386, 40
          %v976 = vld [vmem:[%s975] sm:$0xff]
          %v977 = vld [vmem:[%s975 + $0x8] sm:$0xff]
          %v978 = vld [vmem:[%s975 + $0x10] sm:$0xff]
          %v979 = vld [vmem:[%s975 + $0x18] sm:$0xff]
          %v980 = vld [vmem:[%s975 + $0x20] sm:$0x1]
          %982 = vset.pattern.permute.xlu0 0
          %983 = vperm.xlu0 %982, %v976
          %v984 = vpop.permute.xlu0 %983
          %987 = vset.pattern.permute.xlu0 0
          %988 = vperm.xlu0 %987, %v977
          %v989 = vpop.permute.xlu0 %988
          %992 = vset.pattern.permute.xlu0 0
          %993 = vperm.xlu0 %992, %v978
          %v994 = vpop.permute.xlu0 %993
          %997 = vset.pattern.permute.xlu0 0
          %998 = vperm.xlu0 %997, %v979
          %v999 = vpop.permute.xlu0 %998
          %1002 = vset.pattern.permute.xlu0 0
          %1003 = vperm.xlu0 %1002, %v980
          %v1004 = vpop.permute.xlu0 %1003
          %v1006 = vsub.f32 %v970, %v984
          %v1007 = vsub.f32 %v971, %v989
          %v1008 = vsub.f32 %v972, %v994
          %v1009 = vsub.f32 %v973, %v999
          %v1010 = vsub.f32 %v974, %v1004
          %v1011 = vand.u32 2147483647, %v1006
          %vm1012 = vcmp.le.f32.partialorder %v1011, 0.7853982
          %vm1013 = vcmp.lt.s32.totalorder %v1006, 0
          %v1014 = vand.u32 %v1006, 2139095040
          %v1015 = vshrl.u32 %v1014, 23
          %v1016 = vsub.s32 %v1015, 127
          %v1017 = vand.u32 2147483647, %v1006
          %v1018 = vand.u32 %v1017, 8388607
          %v1019 = vor.u32 %v1018, 8388608
          %v1020 = vsub.s32 0, %v1019
          %v1021 = vadd.s32 %v1016, 1
          %vm1022 = vcmp.gt.s32.totalorder %v1021, 0
          %v1023 = vsel %vm1022, %v1021, 0
          %v1024 = vshrl.u32 %v1023, 5
          %v1025 = vand.u32 %v1023, 31
          %v1026 = vsub.s32 32, %v1025
          %v1027 = vshrl.u32 683565275, %v1026
          %v1028 = vshll.u32 683565275, %v1025
          %v1029 = vshrl.u32 2475754826, %v1026
          %v1030 = vor.u32 %v1028, %v1029
          %v1031 = vshll.u32 2475754826, %v1025
          %v1032 = vshrl.u32 2131351028, %v1026
          %v1033 = vor.u32 %v1031, %v1032
          %v1034 = vshll.u32 2131351028, %v1025
          %v1035 = vshrl.u32 2102212464, %v1026
          %v1036 = vor.u32 %v1034, %v1035
          %v1037 = vshll.u32 2102212464, %v1025
          %v1038 = vshrl.u32 920167782, %v1026
          %v1039 = vor.u32 %v1037, %v1038
          %v1040 = vshll.u32 920167782, %v1025
          %v1041 = vshrl.u32 1326507024, %v1026
          %v1042 = vor.u32 %v1040, %v1041
          %vm1043 = vcmp.lt.s32.totalorder %v1024, 1
          %vm1044 = vcmp.lt.s32.totalorder %v1024, 2
          %vm1045 = vcmp.lt.s32.totalorder %v1024, 3
          %vm1046 = vcmp.lt.s32.totalorder %v1024, 4
          %v1047 = vsel %vm1043, %v1027, %v1030
          %v1048 = vsel %vm1046, %v1036, 2102212464
          %v1049 = vsel %vm1045, %v1033, %v1048
          %v1050 = vsel %vm1044, %v1047, %v1049
          %v1051 = vsel %vm1043, %v1030, %v1033
          %v1052 = vsel %vm1046, %v1039, 920167782
          %v1053 = vsel %vm1045, %v1036, %v1052
          %v1054 = vsel %vm1044, %v1051, %v1053
          %v1055 = vsel %vm1043, %v1033, %v1036
          %v1056 = vsel %vm1046, %v1042, 1326507024
          %v1057 = vsel %vm1045, %v1039, %v1056
          %v1058 = vsel %vm1044, %v1055, %v1057
          %v1059 = vshll.u32 %v1019, 8
          %v1060 = vmul.u32.u64.compose %v1059, %v1058
          %v1061 = vextract.low.u32 %v1060
          %v1062 = vextract.high.u32 %v1060
          %v1063 = vmul.u32.u64.compose %v1059, %v1054
          %v1064 = vextract.low.u32 %v1063
          %v1065 = vextract.high.u32 %v1063
          %v1066 = vmul.u32 %v1059, %v1050
          %v1067 = vadd.s32 %v1062, %v1064
          %vm1068 = vc.u32 %v1062, %v1064
          %v1069 = vadd.s32 %v1065, 1
          %v1070 = vsel %vm1068, %v1069, %v1065
          %v1071 = vadd.s32 %v1066, %v1070
          %v1072 = vadd.s32 %v1071, 536870912
          %v1073 = vshrl.u32 %v1072, 30
          %v1074 = vshll.u32 %v1073, 30
          %v1075 = vsub.s32 %v1071, %v1074
          %vm1076 = vcmp.lt.s32.totalorder %v1075, 0
          %v1077 = vsub.s32 0, %v1075
          %v1078 = vsel %vm1076, %v1077, %v1075
          %v1079 = vclz %v1078
          %v1080 = vsub.s32 %v1079, 2
          %vm1081 = vcmp.gt.s32.totalorder 0, %v1080
          %v1082 = vsel %vm1081, 0, %v1080
          %v1083 = vsub.s32 32, %v1082
          %v1084 = vshll.u32 %v1075, %v1082
          %v1085 = vshrl.u32 %v1067, %v1083
          %v1086 = vor.u32 %v1084, %v1085
          %v1087 = vsub.s32 4294967266, %v1082
          %v1088 = vadd.s32 %v1087, 127
          %v1089 = vshll.u32 %v1088, 23
          %v1090 = vor.u32 4788187, %v1089
          %v1091 = vand.u32 2147483647, %v1090
          %v1093 = vcvt.s32.f32 %v1086
          %v1094 = vmul.f32 %v1093, %v1091
          %v1095 = vxor.u32 %v1094, 2147483648
          %v1096 = vsel %vm1013, %v1095, %v1094
          %v1097 = vsub.s32 4, %v1073
          %v1098 = vsel %vm1013, %v1097, %v1073
          %v1099 = vsel %vm1012, %v1006, %v1096
          %v1100 = vsel %vm1012, 0, %v1098
          %v1101 = vcosq.f32.pop %v1099
          %v1102 = vsinq.f32.pop %v1099
          %vm1103 = vweird.f32 %v1006
          %v1104 = vand.u32 %v1100, 3
          %vm1105 = vcmp.lt.s32.totalorder %v1104, 2
          %vm1106 = vcmp.eq.s32.totalorder %v1104, 0
          %v1107 = vxor.u32 %v1102, 2147483648
          %v1108 = vsel %vm1106, %v1101, %v1107
          %vm1109 = vcmp.eq.s32.totalorder %v1104, 2
          %v1110 = vxor.u32 %v1101, 2147483648
          %v1111 = vsel %vm1109, %v1110, %v1102
          %v1112 = vsel %vm1105, %v1108, %v1111
          %v1113 = vsel %vm1103, nan, %v1112
          %v1114 = vand.u32 2147483647, %v1007
          %vm1115 = vcmp.le.f32.partialorder %v1114, 0.7853982
          %vm1116 = vcmp.lt.s32.totalorder %v1007, 0
          %v1117 = vand.u32 %v1007, 2139095040
          %v1118 = vshrl.u32 %v1117, 23
          %v1119 = vsub.s32 %v1118, 127
          %v1120 = vand.u32 2147483647, %v1007
          %v1121 = vand.u32 %v1120, 8388607
          %v1122 = vor.u32 %v1121, 8388608
          %v1123 = vsub.s32 0, %v1122
          %v1124 = vadd.s32 %v1119, 1
          %vm1125 = vcmp.gt.s32.totalorder %v1124, 0
          %v1126 = vsel %vm1125, %v1124, 0
          %v1127 = vshrl.u32 %v1126, 5
          %v1128 = vand.u32 %v1126, 31
          %v1129 = vsub.s32 32, %v1128
          %v1130 = vshrl.u32 683565275, %v1129
          %v1131 = vshll.u32 683565275, %v1128
          %v1132 = vshrl.u32 2475754826, %v1129
          %v1133 = vor.u32 %v1131, %v1132
          %v1134 = vshll.u32 2475754826, %v1128
          %v1135 = vshrl.u32 2131351028, %v1129
          %v1136 = vor.u32 %v1134, %v1135
          %v1137 = vshll.u32 2131351028, %v1128
          %v1138 = vshrl.u32 2102212464, %v1129
          %v1139 = vor.u32 %v1137, %v1138
          %v1140 = vshll.u32 2102212464, %v1128
          %v1141 = vshrl.u32 920167782, %v1129
          %v1142 = vor.u32 %v1140, %v1141
          %v1143 = vshll.u32 920167782, %v1128
          %v1144 = vshrl.u32 1326507024, %v1129
          %v1145 = vor.u32 %v1143, %v1144
          %vm1146 = vcmp.lt.s32.totalorder %v1127, 1
          %vm1147 = vcmp.lt.s32.totalorder %v1127, 2
          %vm1148 = vcmp.lt.s32.totalorder %v1127, 3
          %vm1149 = vcmp.lt.s32.totalorder %v1127, 4
          %v1150 = vsel %vm1146, %v1130, %v1133
          %v1151 = vsel %vm1149, %v1139, 2102212464
          %v1152 = vsel %vm1148, %v1136, %v1151
          %v1153 = vsel %vm1147, %v1150, %v1152
          %v1154 = vsel %vm1146, %v1133, %v1136
          %v1155 = vsel %vm1149, %v1142, 920167782
          %v1156 = vsel %vm1148, %v1139, %v1155
          %v1157 = vsel %vm1147, %v1154, %v1156
          %v1158 = vsel %vm1146, %v1136, %v1139
          %v1159 = vsel %vm1149, %v1145, 1326507024
          %v1160 = vsel %vm1148, %v1142, %v1159
          %v1161 = vsel %vm1147, %v1158, %v1160
          %v1162 = vshll.u32 %v1122, 8
          %v1163 = vmul.u32.u64.compose %v1162, %v1161
          %v1164 = vextract.low.u32 %v1163
          %v1165 = vextract.high.u32 %v1163
          %v1166 = vmul.u32.u64.compose %v1162, %v1157
          %v1167 = vextract.low.u32 %v1166
          %v1168 = vextract.high.u32 %v1166
          %v1169 = vmul.u32 %v1162, %v1153
          %v1170 = vadd.s32 %v1165, %v1167
          %vm1171 = vc.u32 %v1165, %v1167
          %v1172 = vadd.s32 %v1168, 1
          %v1173 = vsel %vm1171, %v1172, %v1168
          %v1174 = vadd.s32 %v1169, %v1173
          %v1175 = vadd.s32 %v1174, 536870912
          %v1176 = vshrl.u32 %v1175, 30
          %v1177 = vshll.u32 %v1176, 30
          %v1178 = vsub.s32 %v1174, %v1177
          %vm1179 = vcmp.lt.s32.totalorder %v1178, 0
          %v1180 = vsub.s32 0, %v1178
          %v1181 = vsel %vm1179, %v1180, %v1178
          %v1182 = vclz %v1181
          %v1183 = vsub.s32 %v1182, 2
          %vm1184 = vcmp.gt.s32.totalorder 0, %v1183
          %v1185 = vsel %vm1184, 0, %v1183
          %v1186 = vsub.s32 32, %v1185
          %v1187 = vshll.u32 %v1178, %v1185
          %v1188 = vshrl.u32 %v1170, %v1186
          %v1189 = vor.u32 %v1187, %v1188
          %v1190 = vsub.s32 4294967266, %v1185
          %v1191 = vadd.s32 %v1190, 127
          %v1192 = vshll.u32 %v1191, 23
          %v1193 = vor.u32 4788187, %v1192
          %v1194 = vand.u32 2147483647, %v1193
          %v1196 = vcvt.s32.f32 %v1189
          %v1197 = vmul.f32 %v1196, %v1194
          %v1198 = vxor.u32 %v1197, 2147483648
          %v1199 = vsel %vm1116, %v1198, %v1197
          %v1200 = vsub.s32 4, %v1176
          %v1201 = vsel %vm1116, %v1200, %v1176
          %v1202 = vsel %vm1115, %v1007, %v1199
          %v1203 = vsel %vm1115, 0, %v1201
          %v1204 = vcosq.f32.pop %v1202
          %v1205 = vsinq.f32.pop %v1202
          %vm1206 = vweird.f32 %v1007
          %v1207 = vand.u32 %v1203, 3
          %vm1208 = vcmp.lt.s32.totalorder %v1207, 2
          %vm1209 = vcmp.eq.s32.totalorder %v1207, 0
          %v1210 = vxor.u32 %v1205, 2147483648
          %v1211 = vsel %vm1209, %v1204, %v1210
          %vm1212 = vcmp.eq.s32.totalorder %v1207, 2
          %v1213 = vxor.u32 %v1204, 2147483648
          %v1214 = vsel %vm1212, %v1213, %v1205
          %v1215 = vsel %vm1208, %v1211, %v1214
          %v1216 = vsel %vm1206, nan, %v1215
          %v1217 = vand.u32 2147483647, %v1008
          %vm1218 = vcmp.le.f32.partialorder %v1217, 0.7853982
          %vm1219 = vcmp.lt.s32.totalorder %v1008, 0
          %v1220 = vand.u32 %v1008, 2139095040
          %v1221 = vshrl.u32 %v1220, 23
          %v1222 = vsub.s32 %v1221, 127
          %v1223 = vand.u32 2147483647, %v1008
          %v1224 = vand.u32 %v1223, 8388607
          %v1225 = vor.u32 %v1224, 8388608
          %v1226 = vsub.s32 0, %v1225
          %v1227 = vadd.s32 %v1222, 1
          %vm1228 = vcmp.gt.s32.totalorder %v1227, 0
          %v1229 = vsel %vm1228, %v1227, 0
          %v1230 = vshrl.u32 %v1229, 5
          %v1231 = vand.u32 %v1229, 31
          %v1232 = vsub.s32 32, %v1231
          %v1233 = vshrl.u32 683565275, %v1232
          %v1234 = vshll.u32 683565275, %v1231
          %v1235 = vshrl.u32 2475754826, %v1232
          %v1236 = vor.u32 %v1234, %v1235
          %v1237 = vshll.u32 2475754826, %v1231
          %v1238 = vshrl.u32 2131351028, %v1232
          %v1239 = vor.u32 %v1237, %v1238
          %v1240 = vshll.u32 2131351028, %v1231
          %v1241 = vshrl.u32 2102212464, %v1232
          %v1242 = vor.u32 %v1240, %v1241
          %v1243 = vshll.u32 2102212464, %v1231
          %v1244 = vshrl.u32 920167782, %v1232
          %v1245 = vor.u32 %v1243, %v1244
          %v1246 = vshll.u32 920167782, %v1231
          %v1247 = vshrl.u32 1326507024, %v1232
          %v1248 = vor.u32 %v1246, %v1247
          %vm1249 = vcmp.lt.s32.totalorder %v1230, 1
          %vm1250 = vcmp.lt.s32.totalorder %v1230, 2
          %vm1251 = vcmp.lt.s32.totalorder %v1230, 3
          %vm1252 = vcmp.lt.s32.totalorder %v1230, 4
          %v1253 = vsel %vm1249, %v1233, %v1236
          %v1254 = vsel %vm1252, %v1242, 2102212464
          %v1255 = vsel %vm1251, %v1239, %v1254
          %v1256 = vsel %vm1250, %v1253, %v1255
          %v1257 = vsel %vm1249, %v1236, %v1239
          %v1258 = vsel %vm1252, %v1245, 920167782
          %v1259 = vsel %vm1251, %v1242, %v1258
          %v1260 = vsel %vm1250, %v1257, %v1259
          %v1261 = vsel %vm1249, %v1239, %v1242
          %v1262 = vsel %vm1252, %v1248, 1326507024
          %v1263 = vsel %vm1251, %v1245, %v1262
          %v1264 = vsel %vm1250, %v1261, %v1263
          %v1265 = vshll.u32 %v1225, 8
          %v1266 = vmul.u32.u64.compose %v1265, %v1264
          %v1267 = vextract.low.u32 %v1266
          %v1268 = vextract.high.u32 %v1266
          %v1269 = vmul.u32.u64.compose %v1265, %v1260
          %v1270 = vextract.low.u32 %v1269
          %v1271 = vextract.high.u32 %v1269
          %v1272 = vmul.u32 %v1265, %v1256
          %v1273 = vadd.s32 %v1268, %v1270
          %vm1274 = vc.u32 %v1268, %v1270
          %v1275 = vadd.s32 %v1271, 1
          %v1276 = vsel %vm1274, %v1275, %v1271
          %v1277 = vadd.s32 %v1272, %v1276
          %v1278 = vadd.s32 %v1277, 536870912
          %v1279 = vshrl.u32 %v1278, 30
          %v1280 = vshll.u32 %v1279, 30
          %v1281 = vsub.s32 %v1277, %v1280
          %vm1282 = vcmp.lt.s32.totalorder %v1281, 0
          %v1283 = vsub.s32 0, %v1281
          %v1284 = vsel %vm1282, %v1283, %v1281
          %v1285 = vclz %v1284
          %v1286 = vsub.s32 %v1285, 2
          %vm1287 = vcmp.gt.s32.totalorder 0, %v1286
          %v1288 = vsel %vm1287, 0, %v1286
          %v1289 = vsub.s32 32, %v1288
          %v1290 = vshll.u32 %v1281, %v1288
          %v1291 = vshrl.u32 %v1273, %v1289
          %v1292 = vor.u32 %v1290, %v1291
          %v1293 = vsub.s32 4294967266, %v1288
          %v1294 = vadd.s32 %v1293, 127
          %v1295 = vshll.u32 %v1294, 23
          %v1296 = vor.u32 4788187, %v1295
          %v1297 = vand.u32 2147483647, %v1296
          %v1299 = vcvt.s32.f32 %v1292
          %v1300 = vmul.f32 %v1299, %v1297
          %v1301 = vxor.u32 %v1300, 2147483648
          %v1302 = vsel %vm1219, %v1301, %v1300
          %v1303 = vsub.s32 4, %v1279
          %v1304 = vsel %vm1219, %v1303, %v1279
          %v1305 = vsel %vm1218, %v1008, %v1302
          %v1306 = vsel %vm1218, 0, %v1304
          %v1307 = vcosq.f32.pop %v1305
          %v1308 = vsinq.f32.pop %v1305
          %vm1309 = vweird.f32 %v1008
          %v1310 = vand.u32 %v1306, 3
          %vm1311 = vcmp.lt.s32.totalorder %v1310, 2
          %vm1312 = vcmp.eq.s32.totalorder %v1310, 0
          %v1313 = vxor.u32 %v1308, 2147483648
          %v1314 = vsel %vm1312, %v1307, %v1313
          %vm1315 = vcmp.eq.s32.totalorder %v1310, 2
          %v1316 = vxor.u32 %v1307, 2147483648
          %v1317 = vsel %vm1315, %v1316, %v1308
          %v1318 = vsel %vm1311, %v1314, %v1317
          %v1319 = vsel %vm1309, nan, %v1318
          %v1320 = vand.u32 2147483647, %v1009
          %vm1321 = vcmp.le.f32.partialorder %v1320, 0.7853982
          %vm1322 = vcmp.lt.s32.totalorder %v1009, 0
          %v1323 = vand.u32 %v1009, 2139095040
          %v1324 = vshrl.u32 %v1323, 23
          %v1325 = vsub.s32 %v1324, 127
          %v1326 = vand.u32 2147483647, %v1009
          %v1327 = vand.u32 %v1326, 8388607
          %v1328 = vor.u32 %v1327, 8388608
          %v1329 = vsub.s32 0, %v1328
          %v1330 = vadd.s32 %v1325, 1
          %vm1331 = vcmp.gt.s32.totalorder %v1330, 0
          %v1332 = vsel %vm1331, %v1330, 0
          %v1333 = vshrl.u32 %v1332, 5
          %v1334 = vand.u32 %v1332, 31
          %v1335 = vsub.s32 32, %v1334
          %v1336 = vshrl.u32 683565275, %v1335
          %v1337 = vshll.u32 683565275, %v1334
          %v1338 = vshrl.u32 2475754826, %v1335
          %v1339 = vor.u32 %v1337, %v1338
          %v1340 = vshll.u32 2475754826, %v1334
          %v1341 = vshrl.u32 2131351028, %v1335
          %v1342 = vor.u32 %v1340, %v1341
          %v1343 = vshll.u32 2131351028, %v1334
          %v1344 = vshrl.u32 2102212464, %v1335
          %v1345 = vor.u32 %v1343, %v1344
          %v1346 = vshll.u32 2102212464, %v1334
          %v1347 = vshrl.u32 920167782, %v1335
          %v1348 = vor.u32 %v1346, %v1347
          %v1349 = vshll.u32 920167782, %v1334
          %v1350 = vshrl.u32 1326507024, %v1335
          %v1351 = vor.u32 %v1349, %v1350
          %vm1352 = vcmp.lt.s32.totalorder %v1333, 1
          %vm1353 = vcmp.lt.s32.totalorder %v1333, 2
          %vm1354 = vcmp.lt.s32.totalorder %v1333, 3
          %vm1355 = vcmp.lt.s32.totalorder %v1333, 4
          %v1356 = vsel %vm1352, %v1336, %v1339
          %v1357 = vsel %vm1355, %v1345, 2102212464
          %v1358 = vsel %vm1354, %v1342, %v1357
          %v1359 = vsel %vm1353, %v1356, %v1358
          %v1360 = vsel %vm1352, %v1339, %v1342
          %v1361 = vsel %vm1355, %v1348, 920167782
          %v1362 = vsel %vm1354, %v1345, %v1361
          %v1363 = vsel %vm1353, %v1360, %v1362
          %v1364 = vsel %vm1352, %v1342, %v1345
          %v1365 = vsel %vm1355, %v1351, 1326507024
          %v1366 = vsel %vm1354, %v1348, %v1365
          %v1367 = vsel %vm1353, %v1364, %v1366
          %v1368 = vshll.u32 %v1328, 8
          %v1369 = vmul.u32.u64.compose %v1368, %v1367
          %v1370 = vextract.low.u32 %v1369
          %v1371 = vextract.high.u32 %v1369
          %v1372 = vmul.u32.u64.compose %v1368, %v1363
          %v1373 = vextract.low.u32 %v1372
          %v1374 = vextract.high.u32 %v1372
          %v1375 = vmul.u32 %v1368, %v1359
          %v1376 = vadd.s32 %v1371, %v1373
          %vm1377 = vc.u32 %v1371, %v1373
          %v1378 = vadd.s32 %v1374, 1
          %v1379 = vsel %vm1377, %v1378, %v1374
          %v1380 = vadd.s32 %v1375, %v1379
          %v1381 = vadd.s32 %v1380, 536870912
          %v1382 = vshrl.u32 %v1381, 30
          %v1383 = vshll.u32 %v1382, 30
          %v1384 = vsub.s32 %v1380, %v1383
          %vm1385 = vcmp.lt.s32.totalorder %v1384, 0
          %v1386 = vsub.s32 0, %v1384
          %v1387 = vsel %vm1385, %v1386, %v1384
          %v1388 = vclz %v1387
          %v1389 = vsub.s32 %v1388, 2
          %vm1390 = vcmp.gt.s32.totalorder 0, %v1389
          %v1391 = vsel %vm1390, 0, %v1389
          %v1392 = vsub.s32 32, %v1391
          %v1393 = vshll.u32 %v1384, %v1391
          %v1394 = vshrl.u32 %v1376, %v1392
          %v1395 = vor.u32 %v1393, %v1394
          %v1396 = vsub.s32 4294967266, %v1391
          %v1397 = vadd.s32 %v1396, 127
          %v1398 = vshll.u32 %v1397, 23
          %v1399 = vor.u32 4788187, %v1398
          %v1400 = vand.u32 2147483647, %v1399
          %v1402 = vcvt.s32.f32 %v1395
          %v1403 = vmul.f32 %v1402, %v1400
          %v1404 = vxor.u32 %v1403, 2147483648
          %v1405 = vsel %vm1322, %v1404, %v1403
          %v1406 = vsub.s32 4, %v1382
          %v1407 = vsel %vm1322, %v1406, %v1382
          %v1408 = vsel %vm1321, %v1009, %v1405
          %v1409 = vsel %vm1321, 0, %v1407
          %v1410 = vcosq.f32.pop %v1408
          %v1411 = vsinq.f32.pop %v1408
          %vm1412 = vweird.f32 %v1009
          %v1413 = vand.u32 %v1409, 3
          %vm1414 = vcmp.lt.s32.totalorder %v1413, 2
          %vm1415 = vcmp.eq.s32.totalorder %v1413, 0
          %v1416 = vxor.u32 %v1411, 2147483648
          %v1417 = vsel %vm1415, %v1410, %v1416
          %vm1418 = vcmp.eq.s32.totalorder %v1413, 2
          %v1419 = vxor.u32 %v1410, 2147483648
          %v1420 = vsel %vm1418, %v1419, %v1411
          %v1421 = vsel %vm1414, %v1417, %v1420
          %v1422 = vsel %vm1412, nan, %v1421
          %v1423 = vand.u32 2147483647, %v1010
          %vm1424 = vcmp.le.f32.partialorder %v1423, 0.7853982
          %vm1425 = vcmp.lt.s32.totalorder %v1010, 0
          %v1426 = vand.u32 %v1010, 2139095040
          %v1427 = vshrl.u32 %v1426, 23
          %v1428 = vsub.s32 %v1427, 127
          %v1429 = vand.u32 2147483647, %v1010
          %v1430 = vand.u32 %v1429, 8388607
          %v1431 = vor.u32 %v1430, 8388608
          %v1432 = vsub.s32 0, %v1431
          %v1433 = vadd.s32 %v1428, 1
          %vm1434 = vcmp.gt.s32.totalorder %v1433, 0
          %v1435 = vsel %vm1434, %v1433, 0
          %v1436 = vshrl.u32 %v1435, 5
          %v1437 = vand.u32 %v1435, 31
          %v1438 = vsub.s32 32, %v1437
          %v1439 = vshrl.u32 683565275, %v1438
          %v1440 = vshll.u32 683565275, %v1437
          %v1441 = vshrl.u32 2475754826, %v1438
          %v1442 = vor.u32 %v1440, %v1441
          %v1443 = vshll.u32 2475754826, %v1437
          %v1444 = vshrl.u32 2131351028, %v1438
          %v1445 = vor.u32 %v1443, %v1444
          %v1446 = vshll.u32 2131351028, %v1437
          %v1447 = vshrl.u32 2102212464, %v1438
          %v1448 = vor.u32 %v1446, %v1447
          %v1449 = vshll.u32 2102212464, %v1437
          %v1450 = vshrl.u32 920167782, %v1438
          %v1451 = vor.u32 %v1449, %v1450
          %v1452 = vshll.u32 920167782, %v1437
          %v1453 = vshrl.u32 1326507024, %v1438
          %v1454 = vor.u32 %v1452, %v1453
          %vm1455 = vcmp.lt.s32.totalorder %v1436, 1
          %vm1456 = vcmp.lt.s32.totalorder %v1436, 2
          %vm1457 = vcmp.lt.s32.totalorder %v1436, 3
          %vm1458 = vcmp.lt.s32.totalorder %v1436, 4
          %v1459 = vsel %vm1455, %v1439, %v1442
          %v1460 = vsel %vm1458, %v1448, 2102212464
          %v1461 = vsel %vm1457, %v1445, %v1460
          %v1462 = vsel %vm1456, %v1459, %v1461
          %v1463 = vsel %vm1455, %v1442, %v1445
          %v1464 = vsel %vm1458, %v1451, 920167782
          %v1465 = vsel %vm1457, %v1448, %v1464
          %v1466 = vsel %vm1456, %v1463, %v1465
          %v1467 = vsel %vm1455, %v1445, %v1448
          %v1468 = vsel %vm1458, %v1454, 1326507024
          %v1469 = vsel %vm1457, %v1451, %v1468
          %v1470 = vsel %vm1456, %v1467, %v1469
          %v1471 = vshll.u32 %v1431, 8
          %v1472 = vmul.u32.u64.compose %v1471, %v1470
          %v1473 = vextract.low.u32 %v1472
          %v1474 = vextract.high.u32 %v1472
          %v1475 = vmul.u32.u64.compose %v1471, %v1466
          %v1476 = vextract.low.u32 %v1475
          %v1477 = vextract.high.u32 %v1475
          %v1478 = vmul.u32 %v1471, %v1462
          %v1479 = vadd.s32 %v1474, %v1476
          %vm1480 = vc.u32 %v1474, %v1476
          %v1481 = vadd.s32 %v1477, 1
          %v1482 = vsel %vm1480, %v1481, %v1477
          %v1483 = vadd.s32 %v1478, %v1482
          %v1484 = vadd.s32 %v1483, 536870912
          %v1485 = vshrl.u32 %v1484, 30
          %v1486 = vshll.u32 %v1485, 30
          %v1487 = vsub.s32 %v1483, %v1486
          %vm1488 = vcmp.lt.s32.totalorder %v1487, 0
          %v1489 = vsub.s32 0, %v1487
          %v1490 = vsel %vm1488, %v1489, %v1487
          %v1491 = vclz %v1490
          %v1492 = vsub.s32 %v1491, 2
          %vm1493 = vcmp.gt.s32.totalorder 0, %v1492
          %v1494 = vsel %vm1493, 0, %v1492
          %v1495 = vsub.s32 32, %v1494
          %v1496 = vshll.u32 %v1487, %v1494
          %v1497 = vshrl.u32 %v1479, %v1495
          %v1498 = vor.u32 %v1496, %v1497
          %v1499 = vsub.s32 4294967266, %v1494
          %v1500 = vadd.s32 %v1499, 127
          %v1501 = vshll.u32 %v1500, 23
          %v1502 = vor.u32 4788187, %v1501
          %v1503 = vand.u32 2147483647, %v1502
          %v1505 = vcvt.s32.f32 %v1498
          %v1506 = vmul.f32 %v1505, %v1503
          %v1507 = vxor.u32 %v1506, 2147483648
          %v1508 = vsel %vm1425, %v1507, %v1506
          %v1509 = vsub.s32 4, %v1485
          %v1510 = vsel %vm1425, %v1509, %v1485
          %v1511 = vsel %vm1424, %v1010, %v1508
          %v1512 = vsel %vm1424, 0, %v1510
          %v1513 = vcosq.f32.pop %v1511
          %v1514 = vsinq.f32.pop %v1511
          %vm1515 = vweird.f32 %v1010
          %v1516 = vand.u32 %v1512, 3
          %vm1517 = vcmp.lt.s32.totalorder %v1516, 2
          %vm1518 = vcmp.eq.s32.totalorder %v1516, 0
          %v1519 = vxor.u32 %v1514, 2147483648
          %v1520 = vsel %vm1518, %v1513, %v1519
          %vm1521 = vcmp.eq.s32.totalorder %v1516, 2
          %v1522 = vxor.u32 %v1513, 2147483648
          %v1523 = vsel %vm1521, %v1522, %v1514
          %v1524 = vsel %vm1517, %v1520, %v1523
          %v1525 = vsel %vm1515, nan, %v1524
          %v1526 = vadd.f32 %v959, %v1113
          %v1527 = vadd.f32 %v960, %v1216
          %v1528 = vadd.f32 %v961, %v1319
          %v1529 = vadd.f32 %v962, %v1422
          %v1530 = vadd.f32 %v963, %v1525
          %s1531 = scalar_lea.vmem %s356, 120 [#allocation4]
          %v1532 = vld [vmem:[%s1531] sm:$0xff]
          %v1533 = vld [vmem:[%s1531 + $0x8] sm:$0xff]
          %v1534 = vld [vmem:[%s1531 + $0x10] sm:$0xff]
          %v1535 = vld [vmem:[%s1531 + $0x18] sm:$0xff]
          %v1536 = vld [vmem:[%s1531 + $0x20] sm:$0x1]
          %v1537 = vsub.f32 %v1532, %v399
          %v1538 = vsub.f32 %v1533, %v400
          %v1539 = vsub.f32 %v1534, %v401
          %v1540 = vsub.f32 %v1535, %v402
          %v1541 = vsub.f32 %v1536, %v403
          %s1542 = scalar_lea.vmem %s386, 80
          %v1543 = vld [vmem:[%s1542] sm:$0xff]
          %v1544 = vld [vmem:[%s1542 + $0x8] sm:$0xff]
          %v1545 = vld [vmem:[%s1542 + $0x10] sm:$0xff]
          %v1546 = vld [vmem:[%s1542 + $0x18] sm:$0xff]
          %v1547 = vld [vmem:[%s1542 + $0x20] sm:$0x1]
          %1549 = vset.pattern.permute.xlu0 0
          %1550 = vperm.xlu0 %1549, %v1543
          %v1551 = vpop.permute.xlu0 %1550
          %1554 = vset.pattern.permute.xlu0 0
          %1555 = vperm.xlu0 %1554, %v1544
          %v1556 = vpop.permute.xlu0 %1555
          %1559 = vset.pattern.permute.xlu0 0
          %1560 = vperm.xlu0 %1559, %v1545
          %v1561 = vpop.permute.xlu0 %1560
          %1564 = vset.pattern.permute.xlu0 0
          %1565 = vperm.xlu0 %1564, %v1546
          %v1566 = vpop.permute.xlu0 %1565
          %1569 = vset.pattern.permute.xlu0 0
          %1570 = vperm.xlu0 %1569, %v1547
          %v1571 = vpop.permute.xlu0 %1570
          %v1573 = vsub.f32 %v1537, %v1551
          %v1574 = vsub.f32 %v1538, %v1556
          %v1575 = vsub.f32 %v1539, %v1561
          %v1576 = vsub.f32 %v1540, %v1566
          %v1577 = vsub.f32 %v1541, %v1571
          %v1578 = vand.u32 2147483647, %v1573
          %vm1579 = vcmp.le.f32.partialorder %v1578, 0.7853982
          %vm1580 = vcmp.lt.s32.totalorder %v1573, 0
          %v1581 = vand.u32 %v1573, 2139095040
          %v1582 = vshrl.u32 %v1581, 23
          %v1583 = vsub.s32 %v1582, 127
          %v1584 = vand.u32 2147483647, %v1573
          %v1585 = vand.u32 %v1584, 8388607
          %v1586 = vor.u32 %v1585, 8388608
          %v1587 = vsub.s32 0, %v1586
          %v1588 = vadd.s32 %v1583, 1
          %vm1589 = vcmp.gt.s32.totalorder %v1588, 0
          %v1590 = vsel %vm1589, %v1588, 0
          %v1591 = vshrl.u32 %v1590, 5
          %v1592 = vand.u32 %v1590, 31
          %v1593 = vsub.s32 32, %v1592
          %v1594 = vshrl.u32 683565275, %v1593
          %v1595 = vshll.u32 683565275, %v1592
          %v1596 = vshrl.u32 2475754826, %v1593
          %v1597 = vor.u32 %v1595, %v1596
          %v1598 = vshll.u32 2475754826, %v1592
          %v1599 = vshrl.u32 2131351028, %v1593
          %v1600 = vor.u32 %v1598, %v1599
          %v1601 = vshll.u32 2131351028, %v1592
          %v1602 = vshrl.u32 2102212464, %v1593
          %v1603 = vor.u32 %v1601, %v1602
          %v1604 = vshll.u32 2102212464, %v1592
          %v1605 = vshrl.u32 920167782, %v1593
          %v1606 = vor.u32 %v1604, %v1605
          %v1607 = vshll.u32 920167782, %v1592
          %v1608 = vshrl.u32 1326507024, %v1593
          %v1609 = vor.u32 %v1607, %v1608
          %vm1610 = vcmp.lt.s32.totalorder %v1591, 1
          %vm1611 = vcmp.lt.s32.totalorder %v1591, 2
          %vm1612 = vcmp.lt.s32.totalorder %v1591, 3
          %vm1613 = vcmp.lt.s32.totalorder %v1591, 4
          %v1614 = vsel %vm1610, %v1594, %v1597
          %v1615 = vsel %vm1613, %v1603, 2102212464
          %v1616 = vsel %vm1612, %v1600, %v1615
          %v1617 = vsel %vm1611, %v1614, %v1616
          %v1618 = vsel %vm1610, %v1597, %v1600
          %v1619 = vsel %vm1613, %v1606, 920167782
          %v1620 = vsel %vm1612, %v1603, %v1619
          %v1621 = vsel %vm1611, %v1618, %v1620
          %v1622 = vsel %vm1610, %v1600, %v1603
          %v1623 = vsel %vm1613, %v1609, 1326507024
          %v1624 = vsel %vm1612, %v1606, %v1623
          %v1625 = vsel %vm1611, %v1622, %v1624
          %v1626 = vshll.u32 %v1586, 8
          %v1627 = vmul.u32.u64.compose %v1626, %v1625
          %v1628 = vextract.low.u32 %v1627
          %v1629 = vextract.high.u32 %v1627
          %v1630 = vmul.u32.u64.compose %v1626, %v1621
          %v1631 = vextract.low.u32 %v1630
          %v1632 = vextract.high.u32 %v1630
          %v1633 = vmul.u32 %v1626, %v1617
          %v1634 = vadd.s32 %v1629, %v1631
          %vm1635 = vc.u32 %v1629, %v1631
          %v1636 = vadd.s32 %v1632, 1
          %v1637 = vsel %vm1635, %v1636, %v1632
          %v1638 = vadd.s32 %v1633, %v1637
          %v1639 = vadd.s32 %v1638, 536870912
          %v1640 = vshrl.u32 %v1639, 30
          %v1641 = vshll.u32 %v1640, 30
          %v1642 = vsub.s32 %v1638, %v1641
          %vm1643 = vcmp.lt.s32.totalorder %v1642, 0
          %v1644 = vsub.s32 0, %v1642
          %v1645 = vsel %vm1643, %v1644, %v1642
          %v1646 = vclz %v1645
          %v1647 = vsub.s32 %v1646, 2
          %vm1648 = vcmp.gt.s32.totalorder 0, %v1647
          %v1649 = vsel %vm1648, 0, %v1647
          %v1650 = vsub.s32 32, %v1649
          %v1651 = vshll.u32 %v1642, %v1649
          %v1652 = vshrl.u32 %v1634, %v1650
          %v1653 = vor.u32 %v1651, %v1652
          %v1654 = vsub.s32 4294967266, %v1649
          %v1655 = vadd.s32 %v1654, 127
          %v1656 = vshll.u32 %v1655, 23
          %v1657 = vor.u32 4788187, %v1656
          %v1658 = vand.u32 2147483647, %v1657
          %v1660 = vcvt.s32.f32 %v1653
          %v1661 = vmul.f32 %v1660, %v1658
          %v1662 = vxor.u32 %v1661, 2147483648
          %v1663 = vsel %vm1580, %v1662, %v1661
          %v1664 = vsub.s32 4, %v1640
          %v1665 = vsel %vm1580, %v1664, %v1640
          %v1666 = vsel %vm1579, %v1573, %v1663
          %v1667 = vsel %vm1579, 0, %v1665
          %v1668 = vcosq.f32.pop %v1666
          %v1669 = vsinq.f32.pop %v1666
          %vm1670 = vweird.f32 %v1573
          %v1671 = vand.u32 %v1667, 3
          %vm1672 = vcmp.lt.s32.totalorder %v1671, 2
          %vm1673 = vcmp.eq.s32.totalorder %v1671, 0
          %v1674 = vxor.u32 %v1669, 2147483648
          %v1675 = vsel %vm1673, %v1668, %v1674
          %vm1676 = vcmp.eq.s32.totalorder %v1671, 2
          %v1677 = vxor.u32 %v1668, 2147483648
          %v1678 = vsel %vm1676, %v1677, %v1669
          %v1679 = vsel %vm1672, %v1675, %v1678
          %v1680 = vsel %vm1670, nan, %v1679
          %v1681 = vand.u32 2147483647, %v1574
          %vm1682 = vcmp.le.f32.partialorder %v1681, 0.7853982
          %vm1683 = vcmp.lt.s32.totalorder %v1574, 0
          %v1684 = vand.u32 %v1574, 2139095040
          %v1685 = vshrl.u32 %v1684, 23
          %v1686 = vsub.s32 %v1685, 127
          %v1687 = vand.u32 2147483647, %v1574
          %v1688 = vand.u32 %v1687, 8388607
          %v1689 = vor.u32 %v1688, 8388608
          %v1690 = vsub.s32 0, %v1689
          %v1691 = vadd.s32 %v1686, 1
          %vm1692 = vcmp.gt.s32.totalorder %v1691, 0
          %v1693 = vsel %vm1692, %v1691, 0
          %v1694 = vshrl.u32 %v1693, 5
          %v1695 = vand.u32 %v1693, 31
          %v1696 = vsub.s32 32, %v1695
          %v1697 = vshrl.u32 683565275, %v1696
          %v1698 = vshll.u32 683565275, %v1695
          %v1699 = vshrl.u32 2475754826, %v1696
          %v1700 = vor.u32 %v1698, %v1699
          %v1701 = vshll.u32 2475754826, %v1695
          %v1702 = vshrl.u32 2131351028, %v1696
          %v1703 = vor.u32 %v1701, %v1702
          %v1704 = vshll.u32 2131351028, %v1695
          %v1705 = vshrl.u32 2102212464, %v1696
          %v1706 = vor.u32 %v1704, %v1705
          %v1707 = vshll.u32 2102212464, %v1695
          %v1708 = vshrl.u32 920167782, %v1696
          %v1709 = vor.u32 %v1707, %v1708
          %v1710 = vshll.u32 920167782, %v1695
          %v1711 = vshrl.u32 1326507024, %v1696
          %v1712 = vor.u32 %v1710, %v1711
          %vm1713 = vcmp.lt.s32.totalorder %v1694, 1
          %vm1714 = vcmp.lt.s32.totalorder %v1694, 2
          %vm1715 = vcmp.lt.s32.totalorder %v1694, 3
          %vm1716 = vcmp.lt.s32.totalorder %v1694, 4
          %v1717 = vsel %vm1713, %v1697, %v1700
          %v1718 = vsel %vm1716, %v1706, 2102212464
          %v1719 = vsel %vm1715, %v1703, %v1718
          %v1720 = vsel %vm1714, %v1717, %v1719
          %v1721 = vsel %vm1713, %v1700, %v1703
          %v1722 = vsel %vm1716, %v1709, 920167782
          %v1723 = vsel %vm1715, %v1706, %v1722
          %v1724 = vsel %vm1714, %v1721, %v1723
          %v1725 = vsel %vm1713, %v1703, %v1706
          %v1726 = vsel %vm1716, %v1712, 1326507024
          %v1727 = vsel %vm1715, %v1709, %v1726
          %v1728 = vsel %vm1714, %v1725, %v1727
          %v1729 = vshll.u32 %v1689, 8
          %v1730 = vmul.u32.u64.compose %v1729, %v1728
          %v1731 = vextract.low.u32 %v1730
          %v1732 = vextract.high.u32 %v1730
          %v1733 = vmul.u32.u64.compose %v1729, %v1724
          %v1734 = vextract.low.u32 %v1733
          %v1735 = vextract.high.u32 %v1733
          %v1736 = vmul.u32 %v1729, %v1720
          %v1737 = vadd.s32 %v1732, %v1734
          %vm1738 = vc.u32 %v1732, %v1734
          %v1739 = vadd.s32 %v1735, 1
          %v1740 = vsel %vm1738, %v1739, %v1735
          %v1741 = vadd.s32 %v1736, %v1740
          %v1742 = vadd.s32 %v1741, 536870912
          %v1743 = vshrl.u32 %v1742, 30
          %v1744 = vshll.u32 %v1743, 30
          %v1745 = vsub.s32 %v1741, %v1744
          %vm1746 = vcmp.lt.s32.totalorder %v1745, 0
          %v1747 = vsub.s32 0, %v1745
          %v1748 = vsel %vm1746, %v1747, %v1745
          %v1749 = vclz %v1748
          %v1750 = vsub.s32 %v1749, 2
          %vm1751 = vcmp.gt.s32.totalorder 0, %v1750
          %v1752 = vsel %vm1751, 0, %v1750
          %v1753 = vsub.s32 32, %v1752
          %v1754 = vshll.u32 %v1745, %v1752
          %v1755 = vshrl.u32 %v1737, %v1753
          %v1756 = vor.u32 %v1754, %v1755
          %v1757 = vsub.s32 4294967266, %v1752
          %v1758 = vadd.s32 %v1757, 127
          %v1759 = vshll.u32 %v1758, 23
          %v1760 = vor.u32 4788187, %v1759
          %v1761 = vand.u32 2147483647, %v1760
          %v1763 = vcvt.s32.f32 %v1756
          %v1764 = vmul.f32 %v1763, %v1761
          %v1765 = vxor.u32 %v1764, 2147483648
          %v1766 = vsel %vm1683, %v1765, %v1764
          %v1767 = vsub.s32 4, %v1743
          %v1768 = vsel %vm1683, %v1767, %v1743
          %v1769 = vsel %vm1682, %v1574, %v1766
          %v1770 = vsel %vm1682, 0, %v1768
          %v1771 = vcosq.f32.pop %v1769
          %v1772 = vsinq.f32.pop %v1769
          %vm1773 = vweird.f32 %v1574
          %v1774 = vand.u32 %v1770, 3
          %vm1775 = vcmp.lt.s32.totalorder %v1774, 2
          %vm1776 = vcmp.eq.s32.totalorder %v1774, 0
          %v1777 = vxor.u32 %v1772, 2147483648
          %v1778 = vsel %vm1776, %v1771, %v1777
          %vm1779 = vcmp.eq.s32.totalorder %v1774, 2
          %v1780 = vxor.u32 %v1771, 2147483648
          %v1781 = vsel %vm1779, %v1780, %v1772
          %v1782 = vsel %vm1775, %v1778, %v1781
          %v1783 = vsel %vm1773, nan, %v1782
          %v1784 = vand.u32 2147483647, %v1575
          %vm1785 = vcmp.le.f32.partialorder %v1784, 0.7853982
          %vm1786 = vcmp.lt.s32.totalorder %v1575, 0
          %v1787 = vand.u32 %v1575, 2139095040
          %v1788 = vshrl.u32 %v1787, 23
          %v1789 = vsub.s32 %v1788, 127
          %v1790 = vand.u32 2147483647, %v1575
          %v1791 = vand.u32 %v1790, 8388607
          %v1792 = vor.u32 %v1791, 8388608
          %v1793 = vsub.s32 0, %v1792
          %v1794 = vadd.s32 %v1789, 1
          %vm1795 = vcmp.gt.s32.totalorder %v1794, 0
          %v1796 = vsel %vm1795, %v1794, 0
          %v1797 = vshrl.u32 %v1796, 5
          %v1798 = vand.u32 %v1796, 31
          %v1799 = vsub.s32 32, %v1798
          %v1800 = vshrl.u32 683565275, %v1799
          %v1801 = vshll.u32 683565275, %v1798
          %v1802 = vshrl.u32 2475754826, %v1799
          %v1803 = vor.u32 %v1801, %v1802
          %v1804 = vshll.u32 2475754826, %v1798
          %v1805 = vshrl.u32 2131351028, %v1799
          %v1806 = vor.u32 %v1804, %v1805
          %v1807 = vshll.u32 2131351028, %v1798
          %v1808 = vshrl.u32 2102212464, %v1799
          %v1809 = vor.u32 %v1807, %v1808
          %v1810 = vshll.u32 2102212464, %v1798
          %v1811 = vshrl.u32 920167782, %v1799
          %v1812 = vor.u32 %v1810, %v1811
          %v1813 = vshll.u32 920167782, %v1798
          %v1814 = vshrl.u32 1326507024, %v1799
          %v1815 = vor.u32 %v1813, %v1814
          %vm1816 = vcmp.lt.s32.totalorder %v1797, 1
          %vm1817 = vcmp.lt.s32.totalorder %v1797, 2
          %vm1818 = vcmp.lt.s32.totalorder %v1797, 3
          %vm1819 = vcmp.lt.s32.totalorder %v1797, 4
          %v1820 = vsel %vm1816, %v1800, %v1803
          %v1821 = vsel %vm1819, %v1809, 2102212464
          %v1822 = vsel %vm1818, %v1806, %v1821
          %v1823 = vsel %vm1817, %v1820, %v1822
          %v1824 = vsel %vm1816, %v1803, %v1806
          %v1825 = vsel %vm1819, %v1812, 920167782
          %v1826 = vsel %vm1818, %v1809, %v1825
          %v1827 = vsel %vm1817, %v1824, %v1826
          %v1828 = vsel %vm1816, %v1806, %v1809
          %v1829 = vsel %vm1819, %v1815, 1326507024
          %v1830 = vsel %vm1818, %v1812, %v1829
          %v1831 = vsel %vm1817, %v1828, %v1830
          %v1832 = vshll.u32 %v1792, 8
          %v1833 = vmul.u32.u64.compose %v1832, %v1831
          %v1834 = vextract.low.u32 %v1833
          %v1835 = vextract.high.u32 %v1833
          %v1836 = vmul.u32.u64.compose %v1832, %v1827
          %v1837 = vextract.low.u32 %v1836
          %v1838 = vextract.high.u32 %v1836
          %v1839 = vmul.u32 %v1832, %v1823
          %v1840 = vadd.s32 %v1835, %v1837
          %vm1841 = vc.u32 %v1835, %v1837
          %v1842 = vadd.s32 %v1838, 1
          %v1843 = vsel %vm1841, %v1842, %v1838
          %v1844 = vadd.s32 %v1839, %v1843
          %v1845 = vadd.s32 %v1844, 536870912
          %v1846 = vshrl.u32 %v1845, 30
          %v1847 = vshll.u32 %v1846, 30
          %v1848 = vsub.s32 %v1844, %v1847
          %vm1849 = vcmp.lt.s32.totalorder %v1848, 0
          %v1850 = vsub.s32 0, %v1848
          %v1851 = vsel %vm1849, %v1850, %v1848
          %v1852 = vclz %v1851
          %v1853 = vsub.s32 %v1852, 2
          %vm1854 = vcmp.gt.s32.totalorder 0, %v1853
          %v1855 = vsel %vm1854, 0, %v1853
          %v1856 = vsub.s32 32, %v1855
          %v1857 = vshll.u32 %v1848, %v1855
          %v1858 = vshrl.u32 %v1840, %v1856
          %v1859 = vor.u32 %v1857, %v1858
          %v1860 = vsub.s32 4294967266, %v1855
          %v1861 = vadd.s32 %v1860, 127
          %v1862 = vshll.u32 %v1861, 23
          %v1863 = vor.u32 4788187, %v1862
          %v1864 = vand.u32 2147483647, %v1863
          %v1866 = vcvt.s32.f32 %v1859
          %v1867 = vmul.f32 %v1866, %v1864
          %v1868 = vxor.u32 %v1867, 2147483648
          %v1869 = vsel %vm1786, %v1868, %v1867
          %v1870 = vsub.s32 4, %v1846
          %v1871 = vsel %vm1786, %v1870, %v1846
          %v1872 = vsel %vm1785, %v1575, %v1869
          %v1873 = vsel %vm1785, 0, %v1871
          %v1874 = vcosq.f32.pop %v1872
          %v1875 = vsinq.f32.pop %v1872
          %vm1876 = vweird.f32 %v1575
          %v1877 = vand.u32 %v1873, 3
          %vm1878 = vcmp.lt.s32.totalorder %v1877, 2
          %vm1879 = vcmp.eq.s32.totalorder %v1877, 0
          %v1880 = vxor.u32 %v1875, 2147483648
          %v1881 = vsel %vm1879, %v1874, %v1880
          %vm1882 = vcmp.eq.s32.totalorder %v1877, 2
          %v1883 = vxor.u32 %v1874, 2147483648
          %v1884 = vsel %vm1882, %v1883, %v1875
          %v1885 = vsel %vm1878, %v1881, %v1884
          %v1886 = vsel %vm1876, nan, %v1885
          %v1887 = vand.u32 2147483647, %v1576
          %vm1888 = vcmp.le.f32.partialorder %v1887, 0.7853982
          %vm1889 = vcmp.lt.s32.totalorder %v1576, 0
          %v1890 = vand.u32 %v1576, 2139095040
          %v1891 = vshrl.u32 %v1890, 23
          %v1892 = vsub.s32 %v1891, 127
          %v1893 = vand.u32 2147483647, %v1576
          %v1894 = vand.u32 %v1893, 8388607
          %v1895 = vor.u32 %v1894, 8388608
          %v1896 = vsub.s32 0, %v1895
          %v1897 = vadd.s32 %v1892, 1
          %vm1898 = vcmp.gt.s32.totalorder %v1897, 0
          %v1899 = vsel %vm1898, %v1897, 0
          %v1900 = vshrl.u32 %v1899, 5
          %v1901 = vand.u32 %v1899, 31
          %v1902 = vsub.s32 32, %v1901
          %v1903 = vshrl.u32 683565275, %v1902
          %v1904 = vshll.u32 683565275, %v1901
          %v1905 = vshrl.u32 2475754826, %v1902
          %v1906 = vor.u32 %v1904, %v1905
          %v1907 = vshll.u32 2475754826, %v1901
          %v1908 = vshrl.u32 2131351028, %v1902
          %v1909 = vor.u32 %v1907, %v1908
          %v1910 = vshll.u32 2131351028, %v1901
          %v1911 = vshrl.u32 2102212464, %v1902
          %v1912 = vor.u32 %v1910, %v1911
          %v1913 = vshll.u32 2102212464, %v1901
          %v1914 = vshrl.u32 920167782, %v1902
          %v1915 = vor.u32 %v1913, %v1914
          %v1916 = vshll.u32 920167782, %v1901
          %v1917 = vshrl.u32 1326507024, %v1902
          %v1918 = vor.u32 %v1916, %v1917
          %vm1919 = vcmp.lt.s32.totalorder %v1900, 1
          %vm1920 = vcmp.lt.s32.totalorder %v1900, 2
          %vm1921 = vcmp.lt.s32.totalorder %v1900, 3
          %vm1922 = vcmp.lt.s32.totalorder %v1900, 4
          %v1923 = vsel %vm1919, %v1903, %v1906
          %v1924 = vsel %vm1922, %v1912, 2102212464
          %v1925 = vsel %vm1921, %v1909, %v1924
          %v1926 = vsel %vm1920, %v1923, %v1925
          %v1927 = vsel %vm1919, %v1906, %v1909
          %v1928 = vsel %vm1922, %v1915, 920167782
          %v1929 = vsel %vm1921, %v1912, %v1928
          %v1930 = vsel %vm1920, %v1927, %v1929
          %v1931 = vsel %vm1919, %v1909, %v1912
          %v1932 = vsel %vm1922, %v1918, 1326507024
          %v1933 = vsel %vm1921, %v1915, %v1932
          %v1934 = vsel %vm1920, %v1931, %v1933
          %v1935 = vshll.u32 %v1895, 8
          %v1936 = vmul.u32.u64.compose %v1935, %v1934
          %v1937 = vextract.low.u32 %v1936
          %v1938 = vextract.high.u32 %v1936
          %v1939 = vmul.u32.u64.compose %v1935, %v1930
          %v1940 = vextract.low.u32 %v1939
          %v1941 = vextract.high.u32 %v1939
          %v1942 = vmul.u32 %v1935, %v1926
          %v1943 = vadd.s32 %v1938, %v1940
          %vm1944 = vc.u32 %v1938, %v1940
          %v1945 = vadd.s32 %v1941, 1
          %v1946 = vsel %vm1944, %v1945, %v1941
          %v1947 = vadd.s32 %v1942, %v1946
          %v1948 = vadd.s32 %v1947, 536870912
          %v1949 = vshrl.u32 %v1948, 30
          %v1950 = vshll.u32 %v1949, 30
          %v1951 = vsub.s32 %v1947, %v1950
          %vm1952 = vcmp.lt.s32.totalorder %v1951, 0
          %v1953 = vsub.s32 0, %v1951
          %v1954 = vsel %vm1952, %v1953, %v1951
          %v1955 = vclz %v1954
          %v1956 = vsub.s32 %v1955, 2
          %vm1957 = vcmp.gt.s32.totalorder 0, %v1956
          %v1958 = vsel %vm1957, 0, %v1956
          %v1959 = vsub.s32 32, %v1958
          %v1960 = vshll.u32 %v1951, %v1958
          %v1961 = vshrl.u32 %v1943, %v1959
          %v1962 = vor.u32 %v1960, %v1961
          %v1963 = vsub.s32 4294967266, %v1958
          %v1964 = vadd.s32 %v1963, 127
          %v1965 = vshll.u32 %v1964, 23
          %v1966 = vor.u32 4788187, %v1965
          %v1967 = vand.u32 2147483647, %v1966
          %v1969 = vcvt.s32.f32 %v1962
          %v1970 = vmul.f32 %v1969, %v1967
          %v1971 = vxor.u32 %v1970, 2147483648
          %v1972 = vsel %vm1889, %v1971, %v1970
          %v1973 = vsub.s32 4, %v1949
          %v1974 = vsel %vm1889, %v1973, %v1949
          %v1975 = vsel %vm1888, %v1576, %v1972
          %v1976 = vsel %vm1888, 0, %v1974
          %v1977 = vcosq.f32.pop %v1975
          %v1978 = vsinq.f32.pop %v1975
          %vm1979 = vweird.f32 %v1576
          %v1980 = vand.u32 %v1976, 3
          %vm1981 = vcmp.lt.s32.totalorder %v1980, 2
          %vm1982 = vcmp.eq.s32.totalorder %v1980, 0
          %v1983 = vxor.u32 %v1978, 2147483648
          %v1984 = vsel %vm1982, %v1977, %v1983
          %vm1985 = vcmp.eq.s32.totalorder %v1980, 2
          %v1986 = vxor.u32 %v1977, 2147483648
          %v1987 = vsel %vm1985, %v1986, %v1978
          %v1988 = vsel %vm1981, %v1984, %v1987
          %v1989 = vsel %vm1979, nan, %v1988
          %v1990 = vand.u32 2147483647, %v1577
          %vm1991 = vcmp.le.f32.partialorder %v1990, 0.7853982
          %vm1992 = vcmp.lt.s32.totalorder %v1577, 0
          %v1993 = vand.u32 %v1577, 2139095040
          %v1994 = vshrl.u32 %v1993, 23
          %v1995 = vsub.s32 %v1994, 127
          %v1996 = vand.u32 2147483647, %v1577
          %v1997 = vand.u32 %v1996, 8388607
          %v1998 = vor.u32 %v1997, 8388608
          %v1999 = vsub.s32 0, %v1998
          %v2000 = vadd.s32 %v1995, 1
          %vm2001 = vcmp.gt.s32.totalorder %v2000, 0
          %v2002 = vsel %vm2001, %v2000, 0
          %v2003 = vshrl.u32 %v2002, 5
          %v2004 = vand.u32 %v2002, 31
          %v2005 = vsub.s32 32, %v2004
          %v2006 = vshrl.u32 683565275, %v2005
          %v2007 = vshll.u32 683565275, %v2004
          %v2008 = vshrl.u32 2475754826, %v2005
          %v2009 = vor.u32 %v2007, %v2008
          %v2010 = vshll.u32 2475754826, %v2004
          %v2011 = vshrl.u32 2131351028, %v2005
          %v2012 = vor.u32 %v2010, %v2011
          %v2013 = vshll.u32 2131351028, %v2004
          %v2014 = vshrl.u32 2102212464, %v2005
          %v2015 = vor.u32 %v2013, %v2014
          %v2016 = vshll.u32 2102212464, %v2004
          %v2017 = vshrl.u32 920167782, %v2005
          %v2018 = vor.u32 %v2016, %v2017
          %v2019 = vshll.u32 920167782, %v2004
          %v2020 = vshrl.u32 1326507024, %v2005
          %v2021 = vor.u32 %v2019, %v2020
          %vm2022 = vcmp.lt.s32.totalorder %v2003, 1
          %vm2023 = vcmp.lt.s32.totalorder %v2003, 2
          %vm2024 = vcmp.lt.s32.totalorder %v2003, 3
          %vm2025 = vcmp.lt.s32.totalorder %v2003, 4
          %v2026 = vsel %vm2022, %v2006, %v2009
          %v2027 = vsel %vm2025, %v2015, 2102212464
          %v2028 = vsel %vm2024, %v2012, %v2027
          %v2029 = vsel %vm2023, %v2026, %v2028
          %v2030 = vsel %vm2022, %v2009, %v2012
          %v2031 = vsel %vm2025, %v2018, 920167782
          %v2032 = vsel %vm2024, %v2015, %v2031
          %v2033 = vsel %vm2023, %v2030, %v2032
          %v2034 = vsel %vm2022, %v2012, %v2015
          %v2035 = vsel %vm2025, %v2021, 1326507024
          %v2036 = vsel %vm2024, %v2018, %v2035
          %v2037 = vsel %vm2023, %v2034, %v2036
          %v2038 = vshll.u32 %v1998, 8
          %v2039 = vmul.u32.u64.compose %v2038, %v2037
          %v2040 = vextract.low.u32 %v2039
          %v2041 = vextract.high.u32 %v2039
          %v2042 = vmul.u32.u64.compose %v2038, %v2033
          %v2043 = vextract.low.u32 %v2042
          %v2044 = vextract.high.u32 %v2042
          %v2045 = vmul.u32 %v2038, %v2029
          %v2046 = vadd.s32 %v2041, %v2043
          %vm2047 = vc.u32 %v2041, %v2043
          %v2048 = vadd.s32 %v2044, 1
          %v2049 = vsel %vm2047, %v2048, %v2044
          %v2050 = vadd.s32 %v2045, %v2049
          %v2051 = vadd.s32 %v2050, 536870912
          %v2052 = vshrl.u32 %v2051, 30
          %v2053 = vshll.u32 %v2052, 30
          %v2054 = vsub.s32 %v2050, %v2053
          %vm2055 = vcmp.lt.s32.totalorder %v2054, 0
          %v2056 = vsub.s32 0, %v2054
          %v2057 = vsel %vm2055, %v2056, %v2054
          %v2058 = vclz %v2057
          %v2059 = vsub.s32 %v2058, 2
          %vm2060 = vcmp.gt.s32.totalorder 0, %v2059
          %v2061 = vsel %vm2060, 0, %v2059
          %v2062 = vsub.s32 32, %v2061
          %v2063 = vshll.u32 %v2054, %v2061
          %v2064 = vshrl.u32 %v2046, %v2062
          %v2065 = vor.u32 %v2063, %v2064
          %v2066 = vsub.s32 4294967266, %v2061
          %v2067 = vadd.s32 %v2066, 127
          %v2068 = vshll.u32 %v2067, 23
          %v2069 = vor.u32 4788187, %v2068
          %v2070 = vand.u32 2147483647, %v2069
          %v2072 = vcvt.s32.f32 %v2065
          %v2073 = vmul.f32 %v2072, %v2070
          %v2074 = vxor.u32 %v2073, 2147483648
          %v2075 = vsel %vm1992, %v2074, %v2073
          %v2076 = vsub.s32 4, %v2052
          %v2077 = vsel %vm1992, %v2076, %v2052
          %v2078 = vsel %vm1991, %v1577, %v2075
          %v2079 = vsel %vm1991, 0, %v2077
          %v2080 = vcosq.f32.pop %v2078
          %v2081 = vsinq.f32.pop %v2078
          %vm2082 = vweird.f32 %v1577
          %v2083 = vand.u32 %v2079, 3
          %vm2084 = vcmp.lt.s32.totalorder %v2083, 2
          %vm2085 = vcmp.eq.s32.totalorder %v2083, 0
          %v2086 = vxor.u32 %v2081, 2147483648
          %v2087 = vsel %vm2085, %v2080, %v2086
          %vm2088 = vcmp.eq.s32.totalorder %v2083, 2
          %v2089 = vxor.u32 %v2080, 2147483648
          %v2090 = vsel %vm2088, %v2089, %v2081
          %v2091 = vsel %vm2084, %v2087, %v2090
          %v2092 = vsel %vm2082, nan, %v2091
          %v2093 = vadd.f32 %v1526, %v1680
          %v2094 = vadd.f32 %v1527, %v1783
          %v2095 = vadd.f32 %v1528, %v1886
          %v2096 = vadd.f32 %v1529, %v1989
          %v2097 = vadd.f32 %v1530, %v2092
          %s2098 = scalar_lea.vmem %s356, 160 [#allocation4]
          %v2099 = vld [vmem:[%s2098] sm:$0xff]
          %v2100 = vld [vmem:[%s2098 + $0x8] sm:$0xff]
          %v2101 = vld [vmem:[%s2098 + $0x10] sm:$0xff]
          %v2102 = vld [vmem:[%s2098 + $0x18] sm:$0xff]
          %v2103 = vld [vmem:[%s2098 + $0x20] sm:$0x1]
          %v2104 = vsub.f32 %v2099, %v399
          %v2105 = vsub.f32 %v2100, %v400
          %v2106 = vsub.f32 %v2101, %v401
          %v2107 = vsub.f32 %v2102, %v402
          %v2108 = vsub.f32 %v2103, %v403
          %s2109 = scalar_lea.vmem %s386, 120
          %v2110 = vld [vmem:[%s2109] sm:$0xff]
          %v2111 = vld [vmem:[%s2109 + $0x8] sm:$0xff]
          %v2112 = vld [vmem:[%s2109 + $0x10] sm:$0xff]
          %v2113 = vld [vmem:[%s2109 + $0x18] sm:$0xff]
          %v2114 = vld [vmem:[%s2109 + $0x20] sm:$0x1]
          %2116 = vset.pattern.permute.xlu0 0
          %2117 = vperm.xlu0 %2116, %v2110
          %v2118 = vpop.permute.xlu0 %2117
          %2121 = vset.pattern.permute.xlu0 0
          %2122 = vperm.xlu0 %2121, %v2111
          %v2123 = vpop.permute.xlu0 %2122
          %2126 = vset.pattern.permute.xlu0 0
          %2127 = vperm.xlu0 %2126, %v2112
          %v2128 = vpop.permute.xlu0 %2127
          %2131 = vset.pattern.permute.xlu0 0
          %2132 = vperm.xlu0 %2131, %v2113
          %v2133 = vpop.permute.xlu0 %2132
          %2136 = vset.pattern.permute.xlu0 0
          %2137 = vperm.xlu0 %2136, %v2114
          %v2138 = vpop.permute.xlu0 %2137
          %v2140 = vsub.f32 %v2104, %v2118
          %v2141 = vsub.f32 %v2105, %v2123
          %v2142 = vsub.f32 %v2106, %v2128
          %v2143 = vsub.f32 %v2107, %v2133
          %v2144 = vsub.f32 %v2108, %v2138
          %v2145 = vand.u32 2147483647, %v2140
          %vm2146 = vcmp.le.f32.partialorder %v2145, 0.7853982
          %vm2147 = vcmp.lt.s32.totalorder %v2140, 0
          %v2148 = vand.u32 %v2140, 2139095040
          %v2149 = vshrl.u32 %v2148, 23
          %v2150 = vsub.s32 %v2149, 127
          %v2151 = vand.u32 2147483647, %v2140
          %v2152 = vand.u32 %v2151, 8388607
          %v2153 = vor.u32 %v2152, 8388608
          %v2154 = vsub.s32 0, %v2153
          %v2155 = vadd.s32 %v2150, 1
          %vm2156 = vcmp.gt.s32.totalorder %v2155, 0
          %v2157 = vsel %vm2156, %v2155, 0
          %v2158 = vshrl.u32 %v2157, 5
          %v2159 = vand.u32 %v2157, 31
          %v2160 = vsub.s32 32, %v2159
          %v2161 = vshrl.u32 683565275, %v2160
          %v2162 = vshll.u32 683565275, %v2159
          %v2163 = vshrl.u32 2475754826, %v2160
          %v2164 = vor.u32 %v2162, %v2163
          %v2165 = vshll.u32 2475754826, %v2159
          %v2166 = vshrl.u32 2131351028, %v2160
          %v2167 = vor.u32 %v2165, %v2166
          %v2168 = vshll.u32 2131351028, %v2159
          %v2169 = vshrl.u32 2102212464, %v2160
          %v2170 = vor.u32 %v2168, %v2169
          %v2171 = vshll.u32 2102212464, %v2159
          %v2172 = vshrl.u32 920167782, %v2160
          %v2173 = vor.u32 %v2171, %v2172
          %v2174 = vshll.u32 920167782, %v2159
          %v2175 = vshrl.u32 1326507024, %v2160
          %v2176 = vor.u32 %v2174, %v2175
          %vm2177 = vcmp.lt.s32.totalorder %v2158, 1
          %vm2178 = vcmp.lt.s32.totalorder %v2158, 2
          %vm2179 = vcmp.lt.s32.totalorder %v2158, 3
          %vm2180 = vcmp.lt.s32.totalorder %v2158, 4
          %v2181 = vsel %vm2177, %v2161, %v2164
          %v2182 = vsel %vm2180, %v2170, 2102212464
          %v2183 = vsel %vm2179, %v2167, %v2182
          %v2184 = vsel %vm2178, %v2181, %v2183
          %v2185 = vsel %vm2177, %v2164, %v2167
          %v2186 = vsel %vm2180, %v2173, 920167782
          %v2187 = vsel %vm2179, %v2170, %v2186
          %v2188 = vsel %vm2178, %v2185, %v2187
          %v2189 = vsel %vm2177, %v2167, %v2170
          %v2190 = vsel %vm2180, %v2176, 1326507024
          %v2191 = vsel %vm2179, %v2173, %v2190
          %v2192 = vsel %vm2178, %v2189, %v2191
          %v2193 = vshll.u32 %v2153, 8
          %v2194 = vmul.u32.u64.compose %v2193, %v2192
          %v2195 = vextract.low.u32 %v2194
          %v2196 = vextract.high.u32 %v2194
          %v2197 = vmul.u32.u64.compose %v2193, %v2188
          %v2198 = vextract.low.u32 %v2197
          %v2199 = vextract.high.u32 %v2197
          %v2200 = vmul.u32 %v2193, %v2184
          %v2201 = vadd.s32 %v2196, %v2198
          %vm2202 = vc.u32 %v2196, %v2198
          %v2203 = vadd.s32 %v2199, 1
          %v2204 = vsel %vm2202, %v2203, %v2199
          %v2205 = vadd.s32 %v2200, %v2204
          %v2206 = vadd.s32 %v2205, 536870912
          %v2207 = vshrl.u32 %v2206, 30
          %v2208 = vshll.u32 %v2207, 30
          %v2209 = vsub.s32 %v2205, %v2208
          %vm2210 = vcmp.lt.s32.totalorder %v2209, 0
          %v2211 = vsub.s32 0, %v2209
          %v2212 = vsel %vm2210, %v2211, %v2209
          %v2213 = vclz %v2212
          %v2214 = vsub.s32 %v2213, 2
          %vm2215 = vcmp.gt.s32.totalorder 0, %v2214
          %v2216 = vsel %vm2215, 0, %v2214
          %v2217 = vsub.s32 32, %v2216
          %v2218 = vshll.u32 %v2209, %v2216
          %v2219 = vshrl.u32 %v2201, %v2217
          %v2220 = vor.u32 %v2218, %v2219
          %v2221 = vsub.s32 4294967266, %v2216
          %v2222 = vadd.s32 %v2221, 127
          %v2223 = vshll.u32 %v2222, 23
          %v2224 = vor.u32 4788187, %v2223
          %v2225 = vand.u32 2147483647, %v2224
          %v2227 = vcvt.s32.f32 %v2220
          %v2228 = vmul.f32 %v2227, %v2225
          %v2229 = vxor.u32 %v2228, 2147483648
          %v2230 = vsel %vm2147, %v2229, %v2228
          %v2231 = vsub.s32 4, %v2207
          %v2232 = vsel %vm2147, %v2231, %v2207
          %v2233 = vsel %vm2146, %v2140, %v2230
          %v2234 = vsel %vm2146, 0, %v2232
          %v2235 = vcosq.f32.pop %v2233
          %v2236 = vsinq.f32.pop %v2233
          %vm2237 = vweird.f32 %v2140
          %v2238 = vand.u32 %v2234, 3
          %vm2239 = vcmp.lt.s32.totalorder %v2238, 2
          %vm2240 = vcmp.eq.s32.totalorder %v2238, 0
          %v2241 = vxor.u32 %v2236, 2147483648
          %v2242 = vsel %vm2240, %v2235, %v2241
          %vm2243 = vcmp.eq.s32.totalorder %v2238, 2
          %v2244 = vxor.u32 %v2235, 2147483648
          %v2245 = vsel %vm2243, %v2244, %v2236
          %v2246 = vsel %vm2239, %v2242, %v2245
          %v2247 = vsel %vm2237, nan, %v2246
          %v2248 = vand.u32 2147483647, %v2141
          %vm2249 = vcmp.le.f32.partialorder %v2248, 0.7853982
          %vm2250 = vcmp.lt.s32.totalorder %v2141, 0
          %v2251 = vand.u32 %v2141, 2139095040
          %v2252 = vshrl.u32 %v2251, 23
          %v2253 = vsub.s32 %v2252, 127
          %v2254 = vand.u32 2147483647, %v2141
          %v2255 = vand.u32 %v2254, 8388607
          %v2256 = vor.u32 %v2255, 8388608
          %v2257 = vsub.s32 0, %v2256
          %v2258 = vadd.s32 %v2253, 1
          %vm2259 = vcmp.gt.s32.totalorder %v2258, 0
          %v2260 = vsel %vm2259, %v2258, 0
          %v2261 = vshrl.u32 %v2260, 5
          %v2262 = vand.u32 %v2260, 31
          %v2263 = vsub.s32 32, %v2262
          %v2264 = vshrl.u32 683565275, %v2263
          %v2265 = vshll.u32 683565275, %v2262
          %v2266 = vshrl.u32 2475754826, %v2263
          %v2267 = vor.u32 %v2265, %v2266
          %v2268 = vshll.u32 2475754826, %v2262
          %v2269 = vshrl.u32 2131351028, %v2263
          %v2270 = vor.u32 %v2268, %v2269
          %v2271 = vshll.u32 2131351028, %v2262
          %v2272 = vshrl.u32 2102212464, %v2263
          %v2273 = vor.u32 %v2271, %v2272
          %v2274 = vshll.u32 2102212464, %v2262
          %v2275 = vshrl.u32 920167782, %v2263
          %v2276 = vor.u32 %v2274, %v2275
          %v2277 = vshll.u32 920167782, %v2262
          %v2278 = vshrl.u32 1326507024, %v2263
          %v2279 = vor.u32 %v2277, %v2278
          %vm2280 = vcmp.lt.s32.totalorder %v2261, 1
          %vm2281 = vcmp.lt.s32.totalorder %v2261, 2
          %vm2282 = vcmp.lt.s32.totalorder %v2261, 3
          %vm2283 = vcmp.lt.s32.totalorder %v2261, 4
          %v2284 = vsel %vm2280, %v2264, %v2267
          %v2285 = vsel %vm2283, %v2273, 2102212464
          %v2286 = vsel %vm2282, %v2270, %v2285
          %v2287 = vsel %vm2281, %v2284, %v2286
          %v2288 = vsel %vm2280, %v2267, %v2270
          %v2289 = vsel %vm2283, %v2276, 920167782
          %v2290 = vsel %vm2282, %v2273, %v2289
          %v2291 = vsel %vm2281, %v2288, %v2290
          %v2292 = vsel %vm2280, %v2270, %v2273
          %v2293 = vsel %vm2283, %v2279, 1326507024
          %v2294 = vsel %vm2282, %v2276, %v2293
          %v2295 = vsel %vm2281, %v2292, %v2294
          %v2296 = vshll.u32 %v2256, 8
          %v2297 = vmul.u32.u64.compose %v2296, %v2295
          %v2298 = vextract.low.u32 %v2297
          %v2299 = vextract.high.u32 %v2297
          %v2300 = vmul.u32.u64.compose %v2296, %v2291
          %v2301 = vextract.low.u32 %v2300
          %v2302 = vextract.high.u32 %v2300
          %v2303 = vmul.u32 %v2296, %v2287
          %v2304 = vadd.s32 %v2299, %v2301
          %vm2305 = vc.u32 %v2299, %v2301
          %v2306 = vadd.s32 %v2302, 1
          %v2307 = vsel %vm2305, %v2306, %v2302
          %v2308 = vadd.s32 %v2303, %v2307
          %v2309 = vadd.s32 %v2308, 536870912
          %v2310 = vshrl.u32 %v2309, 30
          %v2311 = vshll.u32 %v2310, 30
          %v2312 = vsub.s32 %v2308, %v2311
          %vm2313 = vcmp.lt.s32.totalorder %v2312, 0
          %v2314 = vsub.s32 0, %v2312
          %v2315 = vsel %vm2313, %v2314, %v2312
          %v2316 = vclz %v2315
          %v2317 = vsub.s32 %v2316, 2
          %vm2318 = vcmp.gt.s32.totalorder 0, %v2317
          %v2319 = vsel %vm2318, 0, %v2317
          %v2320 = vsub.s32 32, %v2319
          %v2321 = vshll.u32 %v2312, %v2319
          %v2322 = vshrl.u32 %v2304, %v2320
          %v2323 = vor.u32 %v2321, %v2322
          %v2324 = vsub.s32 4294967266, %v2319
          %v2325 = vadd.s32 %v2324, 127
          %v2326 = vshll.u32 %v2325, 23
          %v2327 = vor.u32 4788187, %v2326
          %v2328 = vand.u32 2147483647, %v2327
          %v2330 = vcvt.s32.f32 %v2323
          %v2331 = vmul.f32 %v2330, %v2328
          %v2332 = vxor.u32 %v2331, 2147483648
          %v2333 = vsel %vm2250, %v2332, %v2331
          %v2334 = vsub.s32 4, %v2310
          %v2335 = vsel %vm2250, %v2334, %v2310
          %v2336 = vsel %vm2249, %v2141, %v2333
          %v2337 = vsel %vm2249, 0, %v2335
          %v2338 = vcosq.f32.pop %v2336
          %v2339 = vsinq.f32.pop %v2336
          %vm2340 = vweird.f32 %v2141
          %v2341 = vand.u32 %v2337, 3
          %vm2342 = vcmp.lt.s32.totalorder %v2341, 2
          %vm2343 = vcmp.eq.s32.totalorder %v2341, 0
          %v2344 = vxor.u32 %v2339, 2147483648
          %v2345 = vsel %vm2343, %v2338, %v2344
          %vm2346 = vcmp.eq.s32.totalorder %v2341, 2
          %v2347 = vxor.u32 %v2338, 2147483648
          %v2348 = vsel %vm2346, %v2347, %v2339
          %v2349 = vsel %vm2342, %v2345, %v2348
          %v2350 = vsel %vm2340, nan, %v2349
          %v2351 = vand.u32 2147483647, %v2142
          %vm2352 = vcmp.le.f32.partialorder %v2351, 0.7853982
          %vm2353 = vcmp.lt.s32.totalorder %v2142, 0
          %v2354 = vand.u32 %v2142, 2139095040
          %v2355 = vshrl.u32 %v2354, 23
          %v2356 = vsub.s32 %v2355, 127
          %v2357 = vand.u32 2147483647, %v2142
          %v2358 = vand.u32 %v2357, 8388607
          %v2359 = vor.u32 %v2358, 8388608
          %v2360 = vsub.s32 0, %v2359
          %v2361 = vadd.s32 %v2356, 1
          %vm2362 = vcmp.gt.s32.totalorder %v2361, 0
          %v2363 = vsel %vm2362, %v2361, 0
          %v2364 = vshrl.u32 %v2363, 5
          %v2365 = vand.u32 %v2363, 31
          %v2366 = vsub.s32 32, %v2365
          %v2367 = vshrl.u32 683565275, %v2366
          %v2368 = vshll.u32 683565275, %v2365
          %v2369 = vshrl.u32 2475754826, %v2366
          %v2370 = vor.u32 %v2368, %v2369
          %v2371 = vshll.u32 2475754826, %v2365
          %v2372 = vshrl.u32 2131351028, %v2366
          %v2373 = vor.u32 %v2371, %v2372
          %v2374 = vshll.u32 2131351028, %v2365
          %v2375 = vshrl.u32 2102212464, %v2366
          %v2376 = vor.u32 %v2374, %v2375
          %v2377 = vshll.u32 2102212464, %v2365
          %v2378 = vshrl.u32 920167782, %v2366
          %v2379 = vor.u32 %v2377, %v2378
          %v2380 = vshll.u32 920167782, %v2365
          %v2381 = vshrl.u32 1326507024, %v2366
          %v2382 = vor.u32 %v2380, %v2381
          %vm2383 = vcmp.lt.s32.totalorder %v2364, 1
          %vm2384 = vcmp.lt.s32.totalorder %v2364, 2
          %vm2385 = vcmp.lt.s32.totalorder %v2364, 3
          %vm2386 = vcmp.lt.s32.totalorder %v2364, 4
          %v2387 = vsel %vm2383, %v2367, %v2370
          %v2388 = vsel %vm2386, %v2376, 2102212464
          %v2389 = vsel %vm2385, %v2373, %v2388
          %v2390 = vsel %vm2384, %v2387, %v2389
          %v2391 = vsel %vm2383, %v2370, %v2373
          %v2392 = vsel %vm2386, %v2379, 920167782
          %v2393 = vsel %vm2385, %v2376, %v2392
          %v2394 = vsel %vm2384, %v2391, %v2393
          %v2395 = vsel %vm2383, %v2373, %v2376
          %v2396 = vsel %vm2386, %v2382, 1326507024
          %v2397 = vsel %vm2385, %v2379, %v2396
          %v2398 = vsel %vm2384, %v2395, %v2397
          %v2399 = vshll.u32 %v2359, 8
          %v2400 = vmul.u32.u64.compose %v2399, %v2398
          %v2401 = vextract.low.u32 %v2400
          %v2402 = vextract.high.u32 %v2400
          %v2403 = vmul.u32.u64.compose %v2399, %v2394
          %v2404 = vextract.low.u32 %v2403
          %v2405 = vextract.high.u32 %v2403
          %v2406 = vmul.u32 %v2399, %v2390
          %v2407 = vadd.s32 %v2402, %v2404
          %vm2408 = vc.u32 %v2402, %v2404
          %v2409 = vadd.s32 %v2405, 1
          %v2410 = vsel %vm2408, %v2409, %v2405
          %v2411 = vadd.s32 %v2406, %v2410
          %v2412 = vadd.s32 %v2411, 536870912
          %v2413 = vshrl.u32 %v2412, 30
          %v2414 = vshll.u32 %v2413, 30
          %v2415 = vsub.s32 %v2411, %v2414
          %vm2416 = vcmp.lt.s32.totalorder %v2415, 0
          %v2417 = vsub.s32 0, %v2415
          %v2418 = vsel %vm2416, %v2417, %v2415
          %v2419 = vclz %v2418
          %v2420 = vsub.s32 %v2419, 2
          %vm2421 = vcmp.gt.s32.totalorder 0, %v2420
          %v2422 = vsel %vm2421, 0, %v2420
          %v2423 = vsub.s32 32, %v2422
          %v2424 = vshll.u32 %v2415, %v2422
          %v2425 = vshrl.u32 %v2407, %v2423
          %v2426 = vor.u32 %v2424, %v2425
          %v2427 = vsub.s32 4294967266, %v2422
          %v2428 = vadd.s32 %v2427, 127
          %v2429 = vshll.u32 %v2428, 23
          %v2430 = vor.u32 4788187, %v2429
          %v2431 = vand.u32 2147483647, %v2430
          %v2433 = vcvt.s32.f32 %v2426
          %v2434 = vmul.f32 %v2433, %v2431
          %v2435 = vxor.u32 %v2434, 2147483648
          %v2436 = vsel %vm2353, %v2435, %v2434
          %v2437 = vsub.s32 4, %v2413
          %v2438 = vsel %vm2353, %v2437, %v2413
          %v2439 = vsel %vm2352, %v2142, %v2436
          %v2440 = vsel %vm2352, 0, %v2438
          %v2441 = vcosq.f32.pop %v2439
          %v2442 = vsinq.f32.pop %v2439
          %vm2443 = vweird.f32 %v2142
          %v2444 = vand.u32 %v2440, 3
          %vm2445 = vcmp.lt.s32.totalorder %v2444, 2
          %vm2446 = vcmp.eq.s32.totalorder %v2444, 0
          %v2447 = vxor.u32 %v2442, 2147483648
          %v2448 = vsel %vm2446, %v2441, %v2447
          %vm2449 = vcmp.eq.s32.totalorder %v2444, 2
          %v2450 = vxor.u32 %v2441, 2147483648
          %v2451 = vsel %vm2449, %v2450, %v2442
          %v2452 = vsel %vm2445, %v2448, %v2451
          %v2453 = vsel %vm2443, nan, %v2452
          %v2454 = vand.u32 2147483647, %v2143
          %vm2455 = vcmp.le.f32.partialorder %v2454, 0.7853982
          %vm2456 = vcmp.lt.s32.totalorder %v2143, 0
          %v2457 = vand.u32 %v2143, 2139095040
          %v2458 = vshrl.u32 %v2457, 23
          %v2459 = vsub.s32 %v2458, 127
          %v2460 = vand.u32 2147483647, %v2143
          %v2461 = vand.u32 %v2460, 8388607
          %v2462 = vor.u32 %v2461, 8388608
          %v2463 = vsub.s32 0, %v2462
          %v2464 = vadd.s32 %v2459, 1
          %vm2465 = vcmp.gt.s32.totalorder %v2464, 0
          %v2466 = vsel %vm2465, %v2464, 0
          %v2467 = vshrl.u32 %v2466, 5
          %v2468 = vand.u32 %v2466, 31
          %v2469 = vsub.s32 32, %v2468
          %v2470 = vshrl.u32 683565275, %v2469
          %v2471 = vshll.u32 683565275, %v2468
          %v2472 = vshrl.u32 2475754826, %v2469
          %v2473 = vor.u32 %v2471, %v2472
          %v2474 = vshll.u32 2475754826, %v2468
          %v2475 = vshrl.u32 2131351028, %v2469
          %v2476 = vor.u32 %v2474, %v2475
          %v2477 = vshll.u32 2131351028, %v2468
          %v2478 = vshrl.u32 2102212464, %v2469
          %v2479 = vor.u32 %v2477, %v2478
          %v2480 = vshll.u32 2102212464, %v2468
          %v2481 = vshrl.u32 920167782, %v2469
          %v2482 = vor.u32 %v2480, %v2481
          %v2483 = vshll.u32 920167782, %v2468
          %v2484 = vshrl.u32 1326507024, %v2469
          %v2485 = vor.u32 %v2483, %v2484
          %vm2486 = vcmp.lt.s32.totalorder %v2467, 1
          %vm2487 = vcmp.lt.s32.totalorder %v2467, 2
          %vm2488 = vcmp.lt.s32.totalorder %v2467, 3
          %vm2489 = vcmp.lt.s32.totalorder %v2467, 4
          %v2490 = vsel %vm2486, %v2470, %v2473
          %v2491 = vsel %vm2489, %v2479, 2102212464
          %v2492 = vsel %vm2488, %v2476, %v2491
          %v2493 = vsel %vm2487, %v2490, %v2492
          %v2494 = vsel %vm2486, %v2473, %v2476
          %v2495 = vsel %vm2489, %v2482, 920167782
          %v2496 = vsel %vm2488, %v2479, %v2495
          %v2497 = vsel %vm2487, %v2494, %v2496
          %v2498 = vsel %vm2486, %v2476, %v2479
          %v2499 = vsel %vm2489, %v2485, 1326507024
          %v2500 = vsel %vm2488, %v2482, %v2499
          %v2501 = vsel %vm2487, %v2498, %v2500
          %v2502 = vshll.u32 %v2462, 8
          %v2503 = vmul.u32.u64.compose %v2502, %v2501
          %v2504 = vextract.low.u32 %v2503
          %v2505 = vextract.high.u32 %v2503
          %v2506 = vmul.u32.u64.compose %v2502, %v2497
          %v2507 = vextract.low.u32 %v2506
          %v2508 = vextract.high.u32 %v2506
          %v2509 = vmul.u32 %v2502, %v2493
          %v2510 = vadd.s32 %v2505, %v2507
          %vm2511 = vc.u32 %v2505, %v2507
          %v2512 = vadd.s32 %v2508, 1
          %v2513 = vsel %vm2511, %v2512, %v2508
          %v2514 = vadd.s32 %v2509, %v2513
          %v2515 = vadd.s32 %v2514, 536870912
          %v2516 = vshrl.u32 %v2515, 30
          %v2517 = vshll.u32 %v2516, 30
          %v2518 = vsub.s32 %v2514, %v2517
          %vm2519 = vcmp.lt.s32.totalorder %v2518, 0
          %v2520 = vsub.s32 0, %v2518
          %v2521 = vsel %vm2519, %v2520, %v2518
          %v2522 = vclz %v2521
          %v2523 = vsub.s32 %v2522, 2
          %vm2524 = vcmp.gt.s32.totalorder 0, %v2523
          %v2525 = vsel %vm2524, 0, %v2523
          %v2526 = vsub.s32 32, %v2525
          %v2527 = vshll.u32 %v2518, %v2525
          %v2528 = vshrl.u32 %v2510, %v2526
          %v2529 = vor.u32 %v2527, %v2528
          %v2530 = vsub.s32 4294967266, %v2525
          %v2531 = vadd.s32 %v2530, 127
          %v2532 = vshll.u32 %v2531, 23
          %v2533 = vor.u32 4788187, %v2532
          %v2534 = vand.u32 2147483647, %v2533
          %v2536 = vcvt.s32.f32 %v2529
          %v2537 = vmul.f32 %v2536, %v2534
          %v2538 = vxor.u32 %v2537, 2147483648
          %v2539 = vsel %vm2456, %v2538, %v2537
          %v2540 = vsub.s32 4, %v2516
          %v2541 = vsel %vm2456, %v2540, %v2516
          %v2542 = vsel %vm2455, %v2143, %v2539
          %v2543 = vsel %vm2455, 0, %v2541
          %v2544 = vcosq.f32.pop %v2542
          %v2545 = vsinq.f32.pop %v2542
          %vm2546 = vweird.f32 %v2143
          %v2547 = vand.u32 %v2543, 3
          %vm2548 = vcmp.lt.s32.totalorder %v2547, 2
          %vm2549 = vcmp.eq.s32.totalorder %v2547, 0
          %v2550 = vxor.u32 %v2545, 2147483648
          %v2551 = vsel %vm2549, %v2544, %v2550
          %vm2552 = vcmp.eq.s32.totalorder %v2547, 2
          %v2553 = vxor.u32 %v2544, 2147483648
          %v2554 = vsel %vm2552, %v2553, %v2545
          %v2555 = vsel %vm2548, %v2551, %v2554
          %v2556 = vsel %vm2546, nan, %v2555
          %v2557 = vand.u32 2147483647, %v2144
          %vm2558 = vcmp.le.f32.partialorder %v2557, 0.7853982
          %vm2559 = vcmp.lt.s32.totalorder %v2144, 0
          %v2560 = vand.u32 %v2144, 2139095040
          %v2561 = vshrl.u32 %v2560, 23
          %v2562 = vsub.s32 %v2561, 127
          %v2563 = vand.u32 2147483647, %v2144
          %v2564 = vand.u32 %v2563, 8388607
          %v2565 = vor.u32 %v2564, 8388608
          %v2566 = vsub.s32 0, %v2565
          %v2567 = vadd.s32 %v2562, 1
          %vm2568 = vcmp.gt.s32.totalorder %v2567, 0
          %v2569 = vsel %vm2568, %v2567, 0
          %v2570 = vshrl.u32 %v2569, 5
          %v2571 = vand.u32 %v2569, 31
          %v2572 = vsub.s32 32, %v2571
          %v2573 = vshrl.u32 683565275, %v2572
          %v2574 = vshll.u32 683565275, %v2571
          %v2575 = vshrl.u32 2475754826, %v2572
          %v2576 = vor.u32 %v2574, %v2575
          %v2577 = vshll.u32 2475754826, %v2571
          %v2578 = vshrl.u32 2131351028, %v2572
          %v2579 = vor.u32 %v2577, %v2578
          %v2580 = vshll.u32 2131351028, %v2571
          %v2581 = vshrl.u32 2102212464, %v2572
          %v2582 = vor.u32 %v2580, %v2581
          %v2583 = vshll.u32 2102212464, %v2571
          %v2584 = vshrl.u32 920167782, %v2572
          %v2585 = vor.u32 %v2583, %v2584
          %v2586 = vshll.u32 920167782, %v2571
          %v2587 = vshrl.u32 1326507024, %v2572
          %v2588 = vor.u32 %v2586, %v2587
          %vm2589 = vcmp.lt.s32.totalorder %v2570, 1
          %vm2590 = vcmp.lt.s32.totalorder %v2570, 2
          %vm2591 = vcmp.lt.s32.totalorder %v2570, 3
          %vm2592 = vcmp.lt.s32.totalorder %v2570, 4
          %v2593 = vsel %vm2589, %v2573, %v2576
          %v2594 = vsel %vm2592, %v2582, 2102212464
          %v2595 = vsel %vm2591, %v2579, %v2594
          %v2596 = vsel %vm2590, %v2593, %v2595
          %v2597 = vsel %vm2589, %v2576, %v2579
          %v2598 = vsel %vm2592, %v2585, 920167782
          %v2599 = vsel %vm2591, %v2582, %v2598
          %v2600 = vsel %vm2590, %v2597, %v2599
          %v2601 = vsel %vm2589, %v2579, %v2582
          %v2602 = vsel %vm2592, %v2588, 1326507024
          %v2603 = vsel %vm2591, %v2585, %v2602
          %v2604 = vsel %vm2590, %v2601, %v2603
          %v2605 = vshll.u32 %v2565, 8
          %v2606 = vmul.u32.u64.compose %v2605, %v2604
          %v2607 = vextract.low.u32 %v2606
          %v2608 = vextract.high.u32 %v2606
          %v2609 = vmul.u32.u64.compose %v2605, %v2600
          %v2610 = vextract.low.u32 %v2609
          %v2611 = vextract.high.u32 %v2609
          %v2612 = vmul.u32 %v2605, %v2596
          %v2613 = vadd.s32 %v2608, %v2610
          %vm2614 = vc.u32 %v2608, %v2610
          %v2615 = vadd.s32 %v2611, 1
          %v2616 = vsel %vm2614, %v2615, %v2611
          %v2617 = vadd.s32 %v2612, %v2616
          %v2618 = vadd.s32 %v2617, 536870912
          %v2619 = vshrl.u32 %v2618, 30
          %v2620 = vshll.u32 %v2619, 30
          %v2621 = vsub.s32 %v2617, %v2620
          %vm2622 = vcmp.lt.s32.totalorder %v2621, 0
          %v2623 = vsub.s32 0, %v2621
          %v2624 = vsel %vm2622, %v2623, %v2621
          %v2625 = vclz %v2624
          %v2626 = vsub.s32 %v2625, 2
          %vm2627 = vcmp.gt.s32.totalorder 0, %v2626
          %v2628 = vsel %vm2627, 0, %v2626
          %v2629 = vsub.s32 32, %v2628
          %v2630 = vshll.u32 %v2621, %v2628
          %v2631 = vshrl.u32 %v2613, %v2629
          %v2632 = vor.u32 %v2630, %v2631
          %v2633 = vsub.s32 4294967266, %v2628
          %v2634 = vadd.s32 %v2633, 127
          %v2635 = vshll.u32 %v2634, 23
          %v2636 = vor.u32 4788187, %v2635
          %v2637 = vand.u32 2147483647, %v2636
          %v2639 = vcvt.s32.f32 %v2632
          %v2640 = vmul.f32 %v2639, %v2637
          %v2641 = vxor.u32 %v2640, 2147483648
          %v2642 = vsel %vm2559, %v2641, %v2640
          %v2643 = vsub.s32 4, %v2619
          %v2644 = vsel %vm2559, %v2643, %v2619
          %v2645 = vsel %vm2558, %v2144, %v2642
          %v2646 = vsel %vm2558, 0, %v2644
          %v2647 = vcosq.f32.pop %v2645
          %v2648 = vsinq.f32.pop %v2645
          %vm2649 = vweird.f32 %v2144
          %v2650 = vand.u32 %v2646, 3
          %vm2651 = vcmp.lt.s32.totalorder %v2650, 2
          %vm2652 = vcmp.eq.s32.totalorder %v2650, 0
          %v2653 = vxor.u32 %v2648, 2147483648
          %v2654 = vsel %vm2652, %v2647, %v2653
          %vm2655 = vcmp.eq.s32.totalorder %v2650, 2
          %v2656 = vxor.u32 %v2647, 2147483648
          %v2657 = vsel %vm2655, %v2656, %v2648
          %v2658 = vsel %vm2651, %v2654, %v2657
          %v2659 = vsel %vm2649, nan, %v2658
          %v2660 = vadd.f32 %v2093, %v2247
          %v2661 = vadd.f32 %v2094, %v2350
          %v2662 = vadd.f32 %v2095, %v2453
          %v2663 = vadd.f32 %v2096, %v2556
          %v2664 = vadd.f32 %v2097, %v2659
          %s2665 = scalar_lea.vmem %s356, 200 [#allocation4]
          %v2666 = vld [vmem:[%s2665] sm:$0xff]
          %v2667 = vld [vmem:[%s2665 + $0x8] sm:$0xff]
          %v2668 = vld [vmem:[%s2665 + $0x10] sm:$0xff]
          %v2669 = vld [vmem:[%s2665 + $0x18] sm:$0xff]
          %v2670 = vld [vmem:[%s2665 + $0x20] sm:$0x1]
          %v2671 = vsub.f32 %v2666, %v399
          %v2672 = vsub.f32 %v2667, %v400
          %v2673 = vsub.f32 %v2668, %v401
          %v2674 = vsub.f32 %v2669, %v402
          %v2675 = vsub.f32 %v2670, %v403
          %s2676 = scalar_lea.vmem %s386, 160
          %v2677 = vld [vmem:[%s2676] sm:$0xff]
          %v2678 = vld [vmem:[%s2676 + $0x8] sm:$0xff]
          %v2679 = vld [vmem:[%s2676 + $0x10] sm:$0xff]
          %v2680 = vld [vmem:[%s2676 + $0x18] sm:$0xff]
          %v2681 = vld [vmem:[%s2676 + $0x20] sm:$0x1]
          %2683 = vset.pattern.permute.xlu0 0
          %2684 = vperm.xlu0 %2683, %v2677
          %v2685 = vpop.permute.xlu0 %2684
          %2688 = vset.pattern.permute.xlu0 0
          %2689 = vperm.xlu0 %2688, %v2678
          %v2690 = vpop.permute.xlu0 %2689
          %2693 = vset.pattern.permute.xlu0 0
          %2694 = vperm.xlu0 %2693, %v2679
          %v2695 = vpop.permute.xlu0 %2694
          %2698 = vset.pattern.permute.xlu0 0
          %2699 = vperm.xlu0 %2698, %v2680
          %v2700 = vpop.permute.xlu0 %2699
          %2703 = vset.pattern.permute.xlu0 0
          %2704 = vperm.xlu0 %2703, %v2681
          %v2705 = vpop.permute.xlu0 %2704
          %v2707 = vsub.f32 %v2671, %v2685
          %v2708 = vsub.f32 %v2672, %v2690
          %v2709 = vsub.f32 %v2673, %v2695
          %v2710 = vsub.f32 %v2674, %v2700
          %v2711 = vsub.f32 %v2675, %v2705
          %v2712 = vand.u32 2147483647, %v2707
          %vm2713 = vcmp.le.f32.partialorder %v2712, 0.7853982
          %vm2714 = vcmp.lt.s32.totalorder %v2707, 0
          %v2715 = vand.u32 %v2707, 2139095040
          %v2716 = vshrl.u32 %v2715, 23
          %v2717 = vsub.s32 %v2716, 127
          %v2718 = vand.u32 2147483647, %v2707
          %v2719 = vand.u32 %v2718, 8388607
          %v2720 = vor.u32 %v2719, 8388608
          %v2721 = vsub.s32 0, %v2720
          %v2722 = vadd.s32 %v2717, 1
          %vm2723 = vcmp.gt.s32.totalorder %v2722, 0
          %v2724 = vsel %vm2723, %v2722, 0
          %v2725 = vshrl.u32 %v2724, 5
          %v2726 = vand.u32 %v2724, 31
          %v2727 = vsub.s32 32, %v2726
          %v2728 = vshrl.u32 683565275, %v2727
          %v2729 = vshll.u32 683565275, %v2726
          %v2730 = vshrl.u32 2475754826, %v2727
          %v2731 = vor.u32 %v2729, %v2730
          %v2732 = vshll.u32 2475754826, %v2726
          %v2733 = vshrl.u32 2131351028, %v2727
          %v2734 = vor.u32 %v2732, %v2733
          %v2735 = vshll.u32 2131351028, %v2726
          %v2736 = vshrl.u32 2102212464, %v2727
          %v2737 = vor.u32 %v2735, %v2736
          %v2738 = vshll.u32 2102212464, %v2726
          %v2739 = vshrl.u32 920167782, %v2727
          %v2740 = vor.u32 %v2738, %v2739
          %v2741 = vshll.u32 920167782, %v2726
          %v2742 = vshrl.u32 1326507024, %v2727
          %v2743 = vor.u32 %v2741, %v2742
          %vm2744 = vcmp.lt.s32.totalorder %v2725, 1
          %vm2745 = vcmp.lt.s32.totalorder %v2725, 2
          %vm2746 = vcmp.lt.s32.totalorder %v2725, 3
          %vm2747 = vcmp.lt.s32.totalorder %v2725, 4
          %v2748 = vsel %vm2744, %v2728, %v2731
          %v2749 = vsel %vm2747, %v2737, 2102212464
          %v2750 = vsel %vm2746, %v2734, %v2749
          %v2751 = vsel %vm2745, %v2748, %v2750
          %v2752 = vsel %vm2744, %v2731, %v2734
          %v2753 = vsel %vm2747, %v2740, 920167782
          %v2754 = vsel %vm2746, %v2737, %v2753
          %v2755 = vsel %vm2745, %v2752, %v2754
          %v2756 = vsel %vm2744, %v2734, %v2737
          %v2757 = vsel %vm2747, %v2743, 1326507024
          %v2758 = vsel %vm2746, %v2740, %v2757
          %v2759 = vsel %vm2745, %v2756, %v2758
          %v2760 = vshll.u32 %v2720, 8
          %v2761 = vmul.u32.u64.compose %v2760, %v2759
          %v2762 = vextract.low.u32 %v2761
          %v2763 = vextract.high.u32 %v2761
          %v2764 = vmul.u32.u64.compose %v2760, %v2755
          %v2765 = vextract.low.u32 %v2764
          %v2766 = vextract.high.u32 %v2764
          %v2767 = vmul.u32 %v2760, %v2751
          %v2768 = vadd.s32 %v2763, %v2765
          %vm2769 = vc.u32 %v2763, %v2765
          %v2770 = vadd.s32 %v2766, 1
          %v2771 = vsel %vm2769, %v2770, %v2766
          %v2772 = vadd.s32 %v2767, %v2771
          %v2773 = vadd.s32 %v2772, 536870912
          %v2774 = vshrl.u32 %v2773, 30
          %v2775 = vshll.u32 %v2774, 30
          %v2776 = vsub.s32 %v2772, %v2775
          %vm2777 = vcmp.lt.s32.totalorder %v2776, 0
          %v2778 = vsub.s32 0, %v2776
          %v2779 = vsel %vm2777, %v2778, %v2776
          %v2780 = vclz %v2779
          %v2781 = vsub.s32 %v2780, 2
          %vm2782 = vcmp.gt.s32.totalorder 0, %v2781
          %v2783 = vsel %vm2782, 0, %v2781
          %v2784 = vsub.s32 32, %v2783
          %v2785 = vshll.u32 %v2776, %v2783
          %v2786 = vshrl.u32 %v2768, %v2784
          %v2787 = vor.u32 %v2785, %v2786
          %v2788 = vsub.s32 4294967266, %v2783
          %v2789 = vadd.s32 %v2788, 127
          %v2790 = vshll.u32 %v2789, 23
          %v2791 = vor.u32 4788187, %v2790
          %v2792 = vand.u32 2147483647, %v2791
          %v2794 = vcvt.s32.f32 %v2787
          %v2795 = vmul.f32 %v2794, %v2792
          %v2796 = vxor.u32 %v2795, 2147483648
          %v2797 = vsel %vm2714, %v2796, %v2795
          %v2798 = vsub.s32 4, %v2774
          %v2799 = vsel %vm2714, %v2798, %v2774
          %v2800 = vsel %vm2713, %v2707, %v2797
          %v2801 = vsel %vm2713, 0, %v2799
          %v2802 = vcosq.f32.pop %v2800
          %v2803 = vsinq.f32.pop %v2800
          %vm2804 = vweird.f32 %v2707
          %v2805 = vand.u32 %v2801, 3
          %vm2806 = vcmp.lt.s32.totalorder %v2805, 2
          %vm2807 = vcmp.eq.s32.totalorder %v2805, 0
          %v2808 = vxor.u32 %v2803, 2147483648
          %v2809 = vsel %vm2807, %v2802, %v2808
          %vm2810 = vcmp.eq.s32.totalorder %v2805, 2
          %v2811 = vxor.u32 %v2802, 2147483648
          %v2812 = vsel %vm2810, %v2811, %v2803
          %v2813 = vsel %vm2806, %v2809, %v2812
          %v2814 = vsel %vm2804, nan, %v2813
          %v2815 = vand.u32 2147483647, %v2708
          %vm2816 = vcmp.le.f32.partialorder %v2815, 0.7853982
          %vm2817 = vcmp.lt.s32.totalorder %v2708, 0
          %v2818 = vand.u32 %v2708, 2139095040
          %v2819 = vshrl.u32 %v2818, 23
          %v2820 = vsub.s32 %v2819, 127
          %v2821 = vand.u32 2147483647, %v2708
          %v2822 = vand.u32 %v2821, 8388607
          %v2823 = vor.u32 %v2822, 8388608
          %v2824 = vsub.s32 0, %v2823
          %v2825 = vadd.s32 %v2820, 1
          %vm2826 = vcmp.gt.s32.totalorder %v2825, 0
          %v2827 = vsel %vm2826, %v2825, 0
          %v2828 = vshrl.u32 %v2827, 5
          %v2829 = vand.u32 %v2827, 31
          %v2830 = vsub.s32 32, %v2829
          %v2831 = vshrl.u32 683565275, %v2830
          %v2832 = vshll.u32 683565275, %v2829
          %v2833 = vshrl.u32 2475754826, %v2830
          %v2834 = vor.u32 %v2832, %v2833
          %v2835 = vshll.u32 2475754826, %v2829
          %v2836 = vshrl.u32 2131351028, %v2830
          %v2837 = vor.u32 %v2835, %v2836
          %v2838 = vshll.u32 2131351028, %v2829
          %v2839 = vshrl.u32 2102212464, %v2830
          %v2840 = vor.u32 %v2838, %v2839
          %v2841 = vshll.u32 2102212464, %v2829
          %v2842 = vshrl.u32 920167782, %v2830
          %v2843 = vor.u32 %v2841, %v2842
          %v2844 = vshll.u32 920167782, %v2829
          %v2845 = vshrl.u32 1326507024, %v2830
          %v2846 = vor.u32 %v2844, %v2845
          %vm2847 = vcmp.lt.s32.totalorder %v2828, 1
          %vm2848 = vcmp.lt.s32.totalorder %v2828, 2
          %vm2849 = vcmp.lt.s32.totalorder %v2828, 3
          %vm2850 = vcmp.lt.s32.totalorder %v2828, 4
          %v2851 = vsel %vm2847, %v2831, %v2834
          %v2852 = vsel %vm2850, %v2840, 2102212464
          %v2853 = vsel %vm2849, %v2837, %v2852
          %v2854 = vsel %vm2848, %v2851, %v2853
          %v2855 = vsel %vm2847, %v2834, %v2837
          %v2856 = vsel %vm2850, %v2843, 920167782
          %v2857 = vsel %vm2849, %v2840, %v2856
          %v2858 = vsel %vm2848, %v2855, %v2857
          %v2859 = vsel %vm2847, %v2837, %v2840
          %v2860 = vsel %vm2850, %v2846, 1326507024
          %v2861 = vsel %vm2849, %v2843, %v2860
          %v2862 = vsel %vm2848, %v2859, %v2861
          %v2863 = vshll.u32 %v2823, 8
          %v2864 = vmul.u32.u64.compose %v2863, %v2862
          %v2865 = vextract.low.u32 %v2864
          %v2866 = vextract.high.u32 %v2864
          %v2867 = vmul.u32.u64.compose %v2863, %v2858
          %v2868 = vextract.low.u32 %v2867
          %v2869 = vextract.high.u32 %v2867
          %v2870 = vmul.u32 %v2863, %v2854
          %v2871 = vadd.s32 %v2866, %v2868
          %vm2872 = vc.u32 %v2866, %v2868
          %v2873 = vadd.s32 %v2869, 1
          %v2874 = vsel %vm2872, %v2873, %v2869
          %v2875 = vadd.s32 %v2870, %v2874
          %v2876 = vadd.s32 %v2875, 536870912
          %v2877 = vshrl.u32 %v2876, 30
          %v2878 = vshll.u32 %v2877, 30
          %v2879 = vsub.s32 %v2875, %v2878
          %vm2880 = vcmp.lt.s32.totalorder %v2879, 0
          %v2881 = vsub.s32 0, %v2879
          %v2882 = vsel %vm2880, %v2881, %v2879
          %v2883 = vclz %v2882
          %v2884 = vsub.s32 %v2883, 2
          %vm2885 = vcmp.gt.s32.totalorder 0, %v2884
          %v2886 = vsel %vm2885, 0, %v2884
          %v2887 = vsub.s32 32, %v2886
          %v2888 = vshll.u32 %v2879, %v2886
          %v2889 = vshrl.u32 %v2871, %v2887
          %v2890 = vor.u32 %v2888, %v2889
          %v2891 = vsub.s32 4294967266, %v2886
          %v2892 = vadd.s32 %v2891, 127
          %v2893 = vshll.u32 %v2892, 23
          %v2894 = vor.u32 4788187, %v2893
          %v2895 = vand.u32 2147483647, %v2894
          %v2897 = vcvt.s32.f32 %v2890
          %v2898 = vmul.f32 %v2897, %v2895
          %v2899 = vxor.u32 %v2898, 2147483648
          %v2900 = vsel %vm2817, %v2899, %v2898
          %v2901 = vsub.s32 4, %v2877
          %v2902 = vsel %vm2817, %v2901, %v2877
          %v2903 = vsel %vm2816, %v2708, %v2900
          %v2904 = vsel %vm2816, 0, %v2902
          %v2905 = vcosq.f32.pop %v2903
          %v2906 = vsinq.f32.pop %v2903
          %vm2907 = vweird.f32 %v2708
          %v2908 = vand.u32 %v2904, 3
          %vm2909 = vcmp.lt.s32.totalorder %v2908, 2
          %vm2910 = vcmp.eq.s32.totalorder %v2908, 0
          %v2911 = vxor.u32 %v2906, 2147483648
          %v2912 = vsel %vm2910, %v2905, %v2911
          %vm2913 = vcmp.eq.s32.totalorder %v2908, 2
          %v2914 = vxor.u32 %v2905, 2147483648
          %v2915 = vsel %vm2913, %v2914, %v2906
          %v2916 = vsel %vm2909, %v2912, %v2915
          %v2917 = vsel %vm2907, nan, %v2916
          %v2918 = vand.u32 2147483647, %v2709
          %vm2919 = vcmp.le.f32.partialorder %v2918, 0.7853982
          %vm2920 = vcmp.lt.s32.totalorder %v2709, 0
          %v2921 = vand.u32 %v2709, 2139095040
          %v2922 = vshrl.u32 %v2921, 23
          %v2923 = vsub.s32 %v2922, 127
          %v2924 = vand.u32 2147483647, %v2709
          %v2925 = vand.u32 %v2924, 8388607
          %v2926 = vor.u32 %v2925, 8388608
          %v2927 = vsub.s32 0, %v2926
          %v2928 = vadd.s32 %v2923, 1
          %vm2929 = vcmp.gt.s32.totalorder %v2928, 0
          %v2930 = vsel %vm2929, %v2928, 0
          %v2931 = vshrl.u32 %v2930, 5
          %v2932 = vand.u32 %v2930, 31
          %v2933 = vsub.s32 32, %v2932
          %v2934 = vshrl.u32 683565275, %v2933
          %v2935 = vshll.u32 683565275, %v2932
          %v2936 = vshrl.u32 2475754826, %v2933
          %v2937 = vor.u32 %v2935, %v2936
          %v2938 = vshll.u32 2475754826, %v2932
          %v2939 = vshrl.u32 2131351028, %v2933
          %v2940 = vor.u32 %v2938, %v2939
          %v2941 = vshll.u32 2131351028, %v2932
          %v2942 = vshrl.u32 2102212464, %v2933
          %v2943 = vor.u32 %v2941, %v2942
          %v2944 = vshll.u32 2102212464, %v2932
          %v2945 = vshrl.u32 920167782, %v2933
          %v2946 = vor.u32 %v2944, %v2945
          %v2947 = vshll.u32 920167782, %v2932
          %v2948 = vshrl.u32 1326507024, %v2933
          %v2949 = vor.u32 %v2947, %v2948
          %vm2950 = vcmp.lt.s32.totalorder %v2931, 1
          %vm2951 = vcmp.lt.s32.totalorder %v2931, 2
          %vm2952 = vcmp.lt.s32.totalorder %v2931, 3
          %vm2953 = vcmp.lt.s32.totalorder %v2931, 4
          %v2954 = vsel %vm2950, %v2934, %v2937
          %v2955 = vsel %vm2953, %v2943, 2102212464
          %v2956 = vsel %vm2952, %v2940, %v2955
          %v2957 = vsel %vm2951, %v2954, %v2956
          %v2958 = vsel %vm2950, %v2937, %v2940
          %v2959 = vsel %vm2953, %v2946, 920167782
          %v2960 = vsel %vm2952, %v2943, %v2959
          %v2961 = vsel %vm2951, %v2958, %v2960
          %v2962 = vsel %vm2950, %v2940, %v2943
          %v2963 = vsel %vm2953, %v2949, 1326507024
          %v2964 = vsel %vm2952, %v2946, %v2963
          %v2965 = vsel %vm2951, %v2962, %v2964
          %v2966 = vshll.u32 %v2926, 8
          %v2967 = vmul.u32.u64.compose %v2966, %v2965
          %v2968 = vextract.low.u32 %v2967
          %v2969 = vextract.high.u32 %v2967
          %v2970 = vmul.u32.u64.compose %v2966, %v2961
          %v2971 = vextract.low.u32 %v2970
          %v2972 = vextract.high.u32 %v2970
          %v2973 = vmul.u32 %v2966, %v2957
          %v2974 = vadd.s32 %v2969, %v2971
          %vm2975 = vc.u32 %v2969, %v2971
          %v2976 = vadd.s32 %v2972, 1
          %v2977 = vsel %vm2975, %v2976, %v2972
          %v2978 = vadd.s32 %v2973, %v2977
          %v2979 = vadd.s32 %v2978, 536870912
          %v2980 = vshrl.u32 %v2979, 30
          %v2981 = vshll.u32 %v2980, 30
          %v2982 = vsub.s32 %v2978, %v2981
          %vm2983 = vcmp.lt.s32.totalorder %v2982, 0
          %v2984 = vsub.s32 0, %v2982
          %v2985 = vsel %vm2983, %v2984, %v2982
          %v2986 = vclz %v2985
          %v2987 = vsub.s32 %v2986, 2
          %vm2988 = vcmp.gt.s32.totalorder 0, %v2987
          %v2989 = vsel %vm2988, 0, %v2987
          %v2990 = vsub.s32 32, %v2989
          %v2991 = vshll.u32 %v2982, %v2989
          %v2992 = vshrl.u32 %v2974, %v2990
          %v2993 = vor.u32 %v2991, %v2992
          %v2994 = vsub.s32 4294967266, %v2989
          %v2995 = vadd.s32 %v2994, 127
          %v2996 = vshll.u32 %v2995, 23
          %v2997 = vor.u32 4788187, %v2996
          %v2998 = vand.u32 2147483647, %v2997
          %v3000 = vcvt.s32.f32 %v2993
          %v3001 = vmul.f32 %v3000, %v2998
          %v3002 = vxor.u32 %v3001, 2147483648
          %v3003 = vsel %vm2920, %v3002, %v3001
          %v3004 = vsub.s32 4, %v2980
          %v3005 = vsel %vm2920, %v3004, %v2980
          %v3006 = vsel %vm2919, %v2709, %v3003
          %v3007 = vsel %vm2919, 0, %v3005
          %v3008 = vcosq.f32.pop %v3006
          %v3009 = vsinq.f32.pop %v3006
          %vm3010 = vweird.f32 %v2709
          %v3011 = vand.u32 %v3007, 3
          %vm3012 = vcmp.lt.s32.totalorder %v3011, 2
          %vm3013 = vcmp.eq.s32.totalorder %v3011, 0
          %v3014 = vxor.u32 %v3009, 2147483648
          %v3015 = vsel %vm3013, %v3008, %v3014
          %vm3016 = vcmp.eq.s32.totalorder %v3011, 2
          %v3017 = vxor.u32 %v3008, 2147483648
          %v3018 = vsel %vm3016, %v3017, %v3009
          %v3019 = vsel %vm3012, %v3015, %v3018
          %v3020 = vsel %vm3010, nan, %v3019
          %v3021 = vand.u32 2147483647, %v2710
          %vm3022 = vcmp.le.f32.partialorder %v3021, 0.7853982
          %vm3023 = vcmp.lt.s32.totalorder %v2710, 0
          %v3024 = vand.u32 %v2710, 2139095040
          %v3025 = vshrl.u32 %v3024, 23
          %v3026 = vsub.s32 %v3025, 127
          %v3027 = vand.u32 2147483647, %v2710
          %v3028 = vand.u32 %v3027, 8388607
          %v3029 = vor.u32 %v3028, 8388608
          %v3030 = vsub.s32 0, %v3029
          %v3031 = vadd.s32 %v3026, 1
          %vm3032 = vcmp.gt.s32.totalorder %v3031, 0
          %v3033 = vsel %vm3032, %v3031, 0
          %v3034 = vshrl.u32 %v3033, 5
          %v3035 = vand.u32 %v3033, 31
          %v3036 = vsub.s32 32, %v3035
          %v3037 = vshrl.u32 683565275, %v3036
          %v3038 = vshll.u32 683565275, %v3035
          %v3039 = vshrl.u32 2475754826, %v3036
          %v3040 = vor.u32 %v3038, %v3039
          %v3041 = vshll.u32 2475754826, %v3035
          %v3042 = vshrl.u32 2131351028, %v3036
          %v3043 = vor.u32 %v3041, %v3042
          %v3044 = vshll.u32 2131351028, %v3035
          %v3045 = vshrl.u32 2102212464, %v3036
          %v3046 = vor.u32 %v3044, %v3045
          %v3047 = vshll.u32 2102212464, %v3035
          %v3048 = vshrl.u32 920167782, %v3036
          %v3049 = vor.u32 %v3047, %v3048
          %v3050 = vshll.u32 920167782, %v3035
          %v3051 = vshrl.u32 1326507024, %v3036
          %v3052 = vor.u32 %v3050, %v3051
          %vm3053 = vcmp.lt.s32.totalorder %v3034, 1
          %vm3054 = vcmp.lt.s32.totalorder %v3034, 2
          %vm3055 = vcmp.lt.s32.totalorder %v3034, 3
          %vm3056 = vcmp.lt.s32.totalorder %v3034, 4
          %v3057 = vsel %vm3053, %v3037, %v3040
          %v3058 = vsel %vm3056, %v3046, 2102212464
          %v3059 = vsel %vm3055, %v3043, %v3058
          %v3060 = vsel %vm3054, %v3057, %v3059
          %v3061 = vsel %vm3053, %v3040, %v3043
          %v3062 = vsel %vm3056, %v3049, 920167782
          %v3063 = vsel %vm3055, %v3046, %v3062
          %v3064 = vsel %vm3054, %v3061, %v3063
          %v3065 = vsel %vm3053, %v3043, %v3046
          %v3066 = vsel %vm3056, %v3052, 1326507024
          %v3067 = vsel %vm3055, %v3049, %v3066
          %v3068 = vsel %vm3054, %v3065, %v3067
          %v3069 = vshll.u32 %v3029, 8
          %v3070 = vmul.u32.u64.compose %v3069, %v3068
          %v3071 = vextract.low.u32 %v3070
          %v3072 = vextract.high.u32 %v3070
          %v3073 = vmul.u32.u64.compose %v3069, %v3064
          %v3074 = vextract.low.u32 %v3073
          %v3075 = vextract.high.u32 %v3073
          %v3076 = vmul.u32 %v3069, %v3060
          %v3077 = vadd.s32 %v3072, %v3074
          %vm3078 = vc.u32 %v3072, %v3074
          %v3079 = vadd.s32 %v3075, 1
          %v3080 = vsel %vm3078, %v3079, %v3075
          %v3081 = vadd.s32 %v3076, %v3080
          %v3082 = vadd.s32 %v3081, 536870912
          %v3083 = vshrl.u32 %v3082, 30
          %v3084 = vshll.u32 %v3083, 30
          %v3085 = vsub.s32 %v3081, %v3084
          %vm3086 = vcmp.lt.s32.totalorder %v3085, 0
          %v3087 = vsub.s32 0, %v3085
          %v3088 = vsel %vm3086, %v3087, %v3085
          %v3089 = vclz %v3088
          %v3090 = vsub.s32 %v3089, 2
          %vm3091 = vcmp.gt.s32.totalorder 0, %v3090
          %v3092 = vsel %vm3091, 0, %v3090
          %v3093 = vsub.s32 32, %v3092
          %v3094 = vshll.u32 %v3085, %v3092
          %v3095 = vshrl.u32 %v3077, %v3093
          %v3096 = vor.u32 %v3094, %v3095
          %v3097 = vsub.s32 4294967266, %v3092
          %v3098 = vadd.s32 %v3097, 127
          %v3099 = vshll.u32 %v3098, 23
          %v3100 = vor.u32 4788187, %v3099
          %v3101 = vand.u32 2147483647, %v3100
          %v3103 = vcvt.s32.f32 %v3096
          %v3104 = vmul.f32 %v3103, %v3101
          %v3105 = vxor.u32 %v3104, 2147483648
          %v3106 = vsel %vm3023, %v3105, %v3104
          %v3107 = vsub.s32 4, %v3083
          %v3108 = vsel %vm3023, %v3107, %v3083
          %v3109 = vsel %vm3022, %v2710, %v3106
          %v3110 = vsel %vm3022, 0, %v3108
          %v3111 = vcosq.f32.pop %v3109
          %v3112 = vsinq.f32.pop %v3109
          %vm3113 = vweird.f32 %v2710
          %v3114 = vand.u32 %v3110, 3
          %vm3115 = vcmp.lt.s32.totalorder %v3114, 2
          %vm3116 = vcmp.eq.s32.totalorder %v3114, 0
          %v3117 = vxor.u32 %v3112, 2147483648
          %v3118 = vsel %vm3116, %v3111, %v3117
          %vm3119 = vcmp.eq.s32.totalorder %v3114, 2
          %v3120 = vxor.u32 %v3111, 2147483648
          %v3121 = vsel %vm3119, %v3120, %v3112
          %v3122 = vsel %vm3115, %v3118, %v3121
          %v3123 = vsel %vm3113, nan, %v3122
          %v3124 = vand.u32 2147483647, %v2711
          %vm3125 = vcmp.le.f32.partialorder %v3124, 0.7853982
          %vm3126 = vcmp.lt.s32.totalorder %v2711, 0
          %v3127 = vand.u32 %v2711, 2139095040
          %v3128 = vshrl.u32 %v3127, 23
          %v3129 = vsub.s32 %v3128, 127
          %v3130 = vand.u32 2147483647, %v2711
          %v3131 = vand.u32 %v3130, 8388607
          %v3132 = vor.u32 %v3131, 8388608
          %v3133 = vsub.s32 0, %v3132
          %v3134 = vadd.s32 %v3129, 1
          %vm3135 = vcmp.gt.s32.totalorder %v3134, 0
          %v3136 = vsel %vm3135, %v3134, 0
          %v3137 = vshrl.u32 %v3136, 5
          %v3138 = vand.u32 %v3136, 31
          %v3139 = vsub.s32 32, %v3138
          %v3140 = vshrl.u32 683565275, %v3139
          %v3141 = vshll.u32 683565275, %v3138
          %v3142 = vshrl.u32 2475754826, %v3139
          %v3143 = vor.u32 %v3141, %v3142
          %v3144 = vshll.u32 2475754826, %v3138
          %v3145 = vshrl.u32 2131351028, %v3139
          %v3146 = vor.u32 %v3144, %v3145
          %v3147 = vshll.u32 2131351028, %v3138
          %v3148 = vshrl.u32 2102212464, %v3139
          %v3149 = vor.u32 %v3147, %v3148
          %v3150 = vshll.u32 2102212464, %v3138
          %v3151 = vshrl.u32 920167782, %v3139
          %v3152 = vor.u32 %v3150, %v3151
          %v3153 = vshll.u32 920167782, %v3138
          %v3154 = vshrl.u32 1326507024, %v3139
          %v3155 = vor.u32 %v3153, %v3154
          %vm3156 = vcmp.lt.s32.totalorder %v3137, 1
          %vm3157 = vcmp.lt.s32.totalorder %v3137, 2
          %vm3158 = vcmp.lt.s32.totalorder %v3137, 3
          %vm3159 = vcmp.lt.s32.totalorder %v3137, 4
          %v3160 = vsel %vm3156, %v3140, %v3143
          %v3161 = vsel %vm3159, %v3149, 2102212464
          %v3162 = vsel %vm3158, %v3146, %v3161
          %v3163 = vsel %vm3157, %v3160, %v3162
          %v3164 = vsel %vm3156, %v3143, %v3146
          %v3165 = vsel %vm3159, %v3152, 920167782
          %v3166 = vsel %vm3158, %v3149, %v3165
          %v3167 = vsel %vm3157, %v3164, %v3166
          %v3168 = vsel %vm3156, %v3146, %v3149
          %v3169 = vsel %vm3159, %v3155, 1326507024
          %v3170 = vsel %vm3158, %v3152, %v3169
          %v3171 = vsel %vm3157, %v3168, %v3170
          %v3172 = vshll.u32 %v3132, 8
          %v3173 = vmul.u32.u64.compose %v3172, %v3171
          %v3174 = vextract.low.u32 %v3173
          %v3175 = vextract.high.u32 %v3173
          %v3176 = vmul.u32.u64.compose %v3172, %v3167
          %v3177 = vextract.low.u32 %v3176
          %v3178 = vextract.high.u32 %v3176
          %v3179 = vmul.u32 %v3172, %v3163
          %v3180 = vadd.s32 %v3175, %v3177
          %vm3181 = vc.u32 %v3175, %v3177
          %v3182 = vadd.s32 %v3178, 1
          %v3183 = vsel %vm3181, %v3182, %v3178
          %v3184 = vadd.s32 %v3179, %v3183
          %v3185 = vadd.s32 %v3184, 536870912
          %v3186 = vshrl.u32 %v3185, 30
          %v3187 = vshll.u32 %v3186, 30
          %v3188 = vsub.s32 %v3184, %v3187
          %vm3189 = vcmp.lt.s32.totalorder %v3188, 0
          %v3190 = vsub.s32 0, %v3188
          %v3191 = vsel %vm3189, %v3190, %v3188
          %v3192 = vclz %v3191
          %v3193 = vsub.s32 %v3192, 2
          %vm3194 = vcmp.gt.s32.totalorder 0, %v3193
          %v3195 = vsel %vm3194, 0, %v3193
          %v3196 = vsub.s32 32, %v3195
          %v3197 = vshll.u32 %v3188, %v3195
          %v3198 = vshrl.u32 %v3180, %v3196
          %v3199 = vor.u32 %v3197, %v3198
          %v3200 = vsub.s32 4294967266, %v3195
          %v3201 = vadd.s32 %v3200, 127
          %v3202 = vshll.u32 %v3201, 23
          %v3203 = vor.u32 4788187, %v3202
          %v3204 = vand.u32 2147483647, %v3203
          %v3206 = vcvt.s32.f32 %v3199
          %v3207 = vmul.f32 %v3206, %v3204
          %v3208 = vxor.u32 %v3207, 2147483648
          %v3209 = vsel %vm3126, %v3208, %v3207
          %v3210 = vsub.s32 4, %v3186
          %v3211 = vsel %vm3126, %v3210, %v3186
          %v3212 = vsel %vm3125, %v2711, %v3209
          %v3213 = vsel %vm3125, 0, %v3211
          %v3214 = vcosq.f32.pop %v3212
          %v3215 = vsinq.f32.pop %v3212
          %vm3216 = vweird.f32 %v2711
          %v3217 = vand.u32 %v3213, 3
          %vm3218 = vcmp.lt.s32.totalorder %v3217, 2
          %vm3219 = vcmp.eq.s32.totalorder %v3217, 0
          %v3220 = vxor.u32 %v3215, 2147483648
          %v3221 = vsel %vm3219, %v3214, %v3220
          %vm3222 = vcmp.eq.s32.totalorder %v3217, 2
          %v3223 = vxor.u32 %v3214, 2147483648
          %v3224 = vsel %vm3222, %v3223, %v3215
          %v3225 = vsel %vm3218, %v3221, %v3224
          %v3226 = vsel %vm3216, nan, %v3225
          %v3227 = vadd.f32 %v2660, %v2814
          %v3228 = vadd.f32 %v2661, %v2917
          %v3229 = vadd.f32 %v2662, %v3020
          %v3230 = vadd.f32 %v2663, %v3123
          %v3231 = vadd.f32 %v2664, %v3226
          %s3232 = scalar_lea.vmem %s356, 240 [#allocation4]
          %v3233 = vld [vmem:[%s3232] sm:$0xff]
          %v3234 = vld [vmem:[%s3232 + $0x8] sm:$0xff]
          %v3235 = vld [vmem:[%s3232 + $0x10] sm:$0xff]
          %v3236 = vld [vmem:[%s3232 + $0x18] sm:$0xff]
          %v3237 = vld [vmem:[%s3232 + $0x20] sm:$0x1]
          %v3238 = vsub.f32 %v3233, %v399
          %v3239 = vsub.f32 %v3234, %v400
          %v3240 = vsub.f32 %v3235, %v401
          %v3241 = vsub.f32 %v3236, %v402
          %v3242 = vsub.f32 %v3237, %v403
          %s3243 = scalar_lea.vmem %s386, 200
          %v3244 = vld [vmem:[%s3243] sm:$0xff]
          %v3245 = vld [vmem:[%s3243 + $0x8] sm:$0xff]
          %v3246 = vld [vmem:[%s3243 + $0x10] sm:$0xff]
          %v3247 = vld [vmem:[%s3243 + $0x18] sm:$0xff]
          %v3248 = vld [vmem:[%s3243 + $0x20] sm:$0x1]
          %3250 = vset.pattern.permute.xlu0 0
          %3251 = vperm.xlu0 %3250, %v3244
          %v3252 = vpop.permute.xlu0 %3251
          %3255 = vset.pattern.permute.xlu0 0
          %3256 = vperm.xlu0 %3255, %v3245
          %v3257 = vpop.permute.xlu0 %3256
          %3260 = vset.pattern.permute.xlu0 0
          %3261 = vperm.xlu0 %3260, %v3246
          %v3262 = vpop.permute.xlu0 %3261
          %3265 = vset.pattern.permute.xlu0 0
          %3266 = vperm.xlu0 %3265, %v3247
          %v3267 = vpop.permute.xlu0 %3266
          %3270 = vset.pattern.permute.xlu0 0
          %3271 = vperm.xlu0 %3270, %v3248
          %v3272 = vpop.permute.xlu0 %3271
          %v3274 = vsub.f32 %v3238, %v3252
          %v3275 = vsub.f32 %v3239, %v3257
          %v3276 = vsub.f32 %v3240, %v3262
          %v3277 = vsub.f32 %v3241, %v3267
          %v3278 = vsub.f32 %v3242, %v3272
          %v3279 = vand.u32 2147483647, %v3274
          %vm3280 = vcmp.le.f32.partialorder %v3279, 0.7853982
          %vm3281 = vcmp.lt.s32.totalorder %v3274, 0
          %v3282 = vand.u32 %v3274, 2139095040
          %v3283 = vshrl.u32 %v3282, 23
          %v3284 = vsub.s32 %v3283, 127
          %v3285 = vand.u32 2147483647, %v3274
          %v3286 = vand.u32 %v3285, 8388607
          %v3287 = vor.u32 %v3286, 8388608
          %v3288 = vsub.s32 0, %v3287
          %v3289 = vadd.s32 %v3284, 1
          %vm3290 = vcmp.gt.s32.totalorder %v3289, 0
          %v3291 = vsel %vm3290, %v3289, 0
          %v3292 = vshrl.u32 %v3291, 5
          %v3293 = vand.u32 %v3291, 31
          %v3294 = vsub.s32 32, %v3293
          %v3295 = vshrl.u32 683565275, %v3294
          %v3296 = vshll.u32 683565275, %v3293
          %v3297 = vshrl.u32 2475754826, %v3294
          %v3298 = vor.u32 %v3296, %v3297
          %v3299 = vshll.u32 2475754826, %v3293
          %v3300 = vshrl.u32 2131351028, %v3294
          %v3301 = vor.u32 %v3299, %v3300
          %v3302 = vshll.u32 2131351028, %v3293
          %v3303 = vshrl.u32 2102212464, %v3294
          %v3304 = vor.u32 %v3302, %v3303
          %v3305 = vshll.u32 2102212464, %v3293
          %v3306 = vshrl.u32 920167782, %v3294
          %v3307 = vor.u32 %v3305, %v3306
          %v3308 = vshll.u32 920167782, %v3293
          %v3309 = vshrl.u32 1326507024, %v3294
          %v3310 = vor.u32 %v3308, %v3309
          %vm3311 = vcmp.lt.s32.totalorder %v3292, 1
          %vm3312 = vcmp.lt.s32.totalorder %v3292, 2
          %vm3313 = vcmp.lt.s32.totalorder %v3292, 3
          %vm3314 = vcmp.lt.s32.totalorder %v3292, 4
          %v3315 = vsel %vm3311, %v3295, %v3298
          %v3316 = vsel %vm3314, %v3304, 2102212464
          %v3317 = vsel %vm3313, %v3301, %v3316
          %v3318 = vsel %vm3312, %v3315, %v3317
          %v3319 = vsel %vm3311, %v3298, %v3301
          %v3320 = vsel %vm3314, %v3307, 920167782
          %v3321 = vsel %vm3313, %v3304, %v3320
          %v3322 = vsel %vm3312, %v3319, %v3321
          %v3323 = vsel %vm3311, %v3301, %v3304
          %v3324 = vsel %vm3314, %v3310, 1326507024
          %v3325 = vsel %vm3313, %v3307, %v3324
          %v3326 = vsel %vm3312, %v3323, %v3325
          %v3327 = vshll.u32 %v3287, 8
          %v3328 = vmul.u32.u64.compose %v3327, %v3326
          %v3329 = vextract.low.u32 %v3328
          %v3330 = vextract.high.u32 %v3328
          %v3331 = vmul.u32.u64.compose %v3327, %v3322
          %v3332 = vextract.low.u32 %v3331
          %v3333 = vextract.high.u32 %v3331
          %v3334 = vmul.u32 %v3327, %v3318
          %v3335 = vadd.s32 %v3330, %v3332
          %vm3336 = vc.u32 %v3330, %v3332
          %v3337 = vadd.s32 %v3333, 1
          %v3338 = vsel %vm3336, %v3337, %v3333
          %v3339 = vadd.s32 %v3334, %v3338
          %v3340 = vadd.s32 %v3339, 536870912
          %v3341 = vshrl.u32 %v3340, 30
          %v3342 = vshll.u32 %v3341, 30
          %v3343 = vsub.s32 %v3339, %v3342
          %vm3344 = vcmp.lt.s32.totalorder %v3343, 0
          %v3345 = vsub.s32 0, %v3343
          %v3346 = vsel %vm3344, %v3345, %v3343
          %v3347 = vclz %v3346
          %v3348 = vsub.s32 %v3347, 2
          %vm3349 = vcmp.gt.s32.totalorder 0, %v3348
          %v3350 = vsel %vm3349, 0, %v3348
          %v3351 = vsub.s32 32, %v3350
          %v3352 = vshll.u32 %v3343, %v3350
          %v3353 = vshrl.u32 %v3335, %v3351
          %v3354 = vor.u32 %v3352, %v3353
          %v3355 = vsub.s32 4294967266, %v3350
          %v3356 = vadd.s32 %v3355, 127
          %v3357 = vshll.u32 %v3356, 23
          %v3358 = vor.u32 4788187, %v3357
          %v3359 = vand.u32 2147483647, %v3358
          %v3361 = vcvt.s32.f32 %v3354
          %v3362 = vmul.f32 %v3361, %v3359
          %v3363 = vxor.u32 %v3362, 2147483648
          %v3364 = vsel %vm3281, %v3363, %v3362
          %v3365 = vsub.s32 4, %v3341
          %v3366 = vsel %vm3281, %v3365, %v3341
          %v3367 = vsel %vm3280, %v3274, %v3364
          %v3368 = vsel %vm3280, 0, %v3366
          %v3369 = vcosq.f32.pop %v3367
          %v3370 = vsinq.f32.pop %v3367
          %vm3371 = vweird.f32 %v3274
          %v3372 = vand.u32 %v3368, 3
          %vm3373 = vcmp.lt.s32.totalorder %v3372, 2
          %vm3374 = vcmp.eq.s32.totalorder %v3372, 0
          %v3375 = vxor.u32 %v3370, 2147483648
          %v3376 = vsel %vm3374, %v3369, %v3375
          %vm3377 = vcmp.eq.s32.totalorder %v3372, 2
          %v3378 = vxor.u32 %v3369, 2147483648
          %v3379 = vsel %vm3377, %v3378, %v3370
          %v3380 = vsel %vm3373, %v3376, %v3379
          %v3381 = vsel %vm3371, nan, %v3380
          %v3382 = vand.u32 2147483647, %v3275
          %vm3383 = vcmp.le.f32.partialorder %v3382, 0.7853982
          %vm3384 = vcmp.lt.s32.totalorder %v3275, 0
          %v3385 = vand.u32 %v3275, 2139095040
          %v3386 = vshrl.u32 %v3385, 23
          %v3387 = vsub.s32 %v3386, 127
          %v3388 = vand.u32 2147483647, %v3275
          %v3389 = vand.u32 %v3388, 8388607
          %v3390 = vor.u32 %v3389, 8388608
          %v3391 = vsub.s32 0, %v3390
          %v3392 = vadd.s32 %v3387, 1
          %vm3393 = vcmp.gt.s32.totalorder %v3392, 0
          %v3394 = vsel %vm3393, %v3392, 0
          %v3395 = vshrl.u32 %v3394, 5
          %v3396 = vand.u32 %v3394, 31
          %v3397 = vsub.s32 32, %v3396
          %v3398 = vshrl.u32 683565275, %v3397
          %v3399 = vshll.u32 683565275, %v3396
          %v3400 = vshrl.u32 2475754826, %v3397
          %v3401 = vor.u32 %v3399, %v3400
          %v3402 = vshll.u32 2475754826, %v3396
          %v3403 = vshrl.u32 2131351028, %v3397
          %v3404 = vor.u32 %v3402, %v3403
          %v3405 = vshll.u32 2131351028, %v3396
          %v3406 = vshrl.u32 2102212464, %v3397
          %v3407 = vor.u32 %v3405, %v3406
          %v3408 = vshll.u32 2102212464, %v3396
          %v3409 = vshrl.u32 920167782, %v3397
          %v3410 = vor.u32 %v3408, %v3409
          %v3411 = vshll.u32 920167782, %v3396
          %v3412 = vshrl.u32 1326507024, %v3397
          %v3413 = vor.u32 %v3411, %v3412
          %vm3414 = vcmp.lt.s32.totalorder %v3395, 1
          %vm3415 = vcmp.lt.s32.totalorder %v3395, 2
          %vm3416 = vcmp.lt.s32.totalorder %v3395, 3
          %vm3417 = vcmp.lt.s32.totalorder %v3395, 4
          %v3418 = vsel %vm3414, %v3398, %v3401
          %v3419 = vsel %vm3417, %v3407, 2102212464
          %v3420 = vsel %vm3416, %v3404, %v3419
          %v3421 = vsel %vm3415, %v3418, %v3420
          %v3422 = vsel %vm3414, %v3401, %v3404
          %v3423 = vsel %vm3417, %v3410, 920167782
          %v3424 = vsel %vm3416, %v3407, %v3423
          %v3425 = vsel %vm3415, %v3422, %v3424
          %v3426 = vsel %vm3414, %v3404, %v3407
          %v3427 = vsel %vm3417, %v3413, 1326507024
          %v3428 = vsel %vm3416, %v3410, %v3427
          %v3429 = vsel %vm3415, %v3426, %v3428
          %v3430 = vshll.u32 %v3390, 8
          %v3431 = vmul.u32.u64.compose %v3430, %v3429
          %v3432 = vextract.low.u32 %v3431
          %v3433 = vextract.high.u32 %v3431
          %v3434 = vmul.u32.u64.compose %v3430, %v3425
          %v3435 = vextract.low.u32 %v3434
          %v3436 = vextract.high.u32 %v3434
          %v3437 = vmul.u32 %v3430, %v3421
          %v3438 = vadd.s32 %v3433, %v3435
          %vm3439 = vc.u32 %v3433, %v3435
          %v3440 = vadd.s32 %v3436, 1
          %v3441 = vsel %vm3439, %v3440, %v3436
          %v3442 = vadd.s32 %v3437, %v3441
          %v3443 = vadd.s32 %v3442, 536870912
          %v3444 = vshrl.u32 %v3443, 30
          %v3445 = vshll.u32 %v3444, 30
          %v3446 = vsub.s32 %v3442, %v3445
          %vm3447 = vcmp.lt.s32.totalorder %v3446, 0
          %v3448 = vsub.s32 0, %v3446
          %v3449 = vsel %vm3447, %v3448, %v3446
          %v3450 = vclz %v3449
          %v3451 = vsub.s32 %v3450, 2
          %vm3452 = vcmp.gt.s32.totalorder 0, %v3451
          %v3453 = vsel %vm3452, 0, %v3451
          %v3454 = vsub.s32 32, %v3453
          %v3455 = vshll.u32 %v3446, %v3453
          %v3456 = vshrl.u32 %v3438, %v3454
          %v3457 = vor.u32 %v3455, %v3456
          %v3458 = vsub.s32 4294967266, %v3453
          %v3459 = vadd.s32 %v3458, 127
          %v3460 = vshll.u32 %v3459, 23
          %v3461 = vor.u32 4788187, %v3460
          %v3462 = vand.u32 2147483647, %v3461
          %v3464 = vcvt.s32.f32 %v3457
          %v3465 = vmul.f32 %v3464, %v3462
          %v3466 = vxor.u32 %v3465, 2147483648
          %v3467 = vsel %vm3384, %v3466, %v3465
          %v3468 = vsub.s32 4, %v3444
          %v3469 = vsel %vm3384, %v3468, %v3444
          %v3470 = vsel %vm3383, %v3275, %v3467
          %v3471 = vsel %vm3383, 0, %v3469
          %v3472 = vcosq.f32.pop %v3470
          %v3473 = vsinq.f32.pop %v3470
          %vm3474 = vweird.f32 %v3275
          %v3475 = vand.u32 %v3471, 3
          %vm3476 = vcmp.lt.s32.totalorder %v3475, 2
          %vm3477 = vcmp.eq.s32.totalorder %v3475, 0
          %v3478 = vxor.u32 %v3473, 2147483648
          %v3479 = vsel %vm3477, %v3472, %v3478
          %vm3480 = vcmp.eq.s32.totalorder %v3475, 2
          %v3481 = vxor.u32 %v3472, 2147483648
          %v3482 = vsel %vm3480, %v3481, %v3473
          %v3483 = vsel %vm3476, %v3479, %v3482
          %v3484 = vsel %vm3474, nan, %v3483
          %v3485 = vand.u32 2147483647, %v3276
          %vm3486 = vcmp.le.f32.partialorder %v3485, 0.7853982
          %vm3487 = vcmp.lt.s32.totalorder %v3276, 0
          %v3488 = vand.u32 %v3276, 2139095040
          %v3489 = vshrl.u32 %v3488, 23
          %v3490 = vsub.s32 %v3489, 127
          %v3491 = vand.u32 2147483647, %v3276
          %v3492 = vand.u32 %v3491, 8388607
          %v3493 = vor.u32 %v3492, 8388608
          %v3494 = vsub.s32 0, %v3493
          %v3495 = vadd.s32 %v3490, 1
          %vm3496 = vcmp.gt.s32.totalorder %v3495, 0
          %v3497 = vsel %vm3496, %v3495, 0
          %v3498 = vshrl.u32 %v3497, 5
          %v3499 = vand.u32 %v3497, 31
          %v3500 = vsub.s32 32, %v3499
          %v3501 = vshrl.u32 683565275, %v3500
          %v3502 = vshll.u32 683565275, %v3499
          %v3503 = vshrl.u32 2475754826, %v3500
          %v3504 = vor.u32 %v3502, %v3503
          %v3505 = vshll.u32 2475754826, %v3499
          %v3506 = vshrl.u32 2131351028, %v3500
          %v3507 = vor.u32 %v3505, %v3506
          %v3508 = vshll.u32 2131351028, %v3499
          %v3509 = vshrl.u32 2102212464, %v3500
          %v3510 = vor.u32 %v3508, %v3509
          %v3511 = vshll.u32 2102212464, %v3499
          %v3512 = vshrl.u32 920167782, %v3500
          %v3513 = vor.u32 %v3511, %v3512
          %v3514 = vshll.u32 920167782, %v3499
          %v3515 = vshrl.u32 1326507024, %v3500
          %v3516 = vor.u32 %v3514, %v3515
          %vm3517 = vcmp.lt.s32.totalorder %v3498, 1
          %vm3518 = vcmp.lt.s32.totalorder %v3498, 2
          %vm3519 = vcmp.lt.s32.totalorder %v3498, 3
          %vm3520 = vcmp.lt.s32.totalorder %v3498, 4
          %v3521 = vsel %vm3517, %v3501, %v3504
          %v3522 = vsel %vm3520, %v3510, 2102212464
          %v3523 = vsel %vm3519, %v3507, %v3522
          %v3524 = vsel %vm3518, %v3521, %v3523
          %v3525 = vsel %vm3517, %v3504, %v3507
          %v3526 = vsel %vm3520, %v3513, 920167782
          %v3527 = vsel %vm3519, %v3510, %v3526
          %v3528 = vsel %vm3518, %v3525, %v3527
          %v3529 = vsel %vm3517, %v3507, %v3510
          %v3530 = vsel %vm3520, %v3516, 1326507024
          %v3531 = vsel %vm3519, %v3513, %v3530
          %v3532 = vsel %vm3518, %v3529, %v3531
          %v3533 = vshll.u32 %v3493, 8
          %v3534 = vmul.u32.u64.compose %v3533, %v3532
          %v3535 = vextract.low.u32 %v3534
          %v3536 = vextract.high.u32 %v3534
          %v3537 = vmul.u32.u64.compose %v3533, %v3528
          %v3538 = vextract.low.u32 %v3537
          %v3539 = vextract.high.u32 %v3537
          %v3540 = vmul.u32 %v3533, %v3524
          %v3541 = vadd.s32 %v3536, %v3538
          %vm3542 = vc.u32 %v3536, %v3538
          %v3543 = vadd.s32 %v3539, 1
          %v3544 = vsel %vm3542, %v3543, %v3539
          %v3545 = vadd.s32 %v3540, %v3544
          %v3546 = vadd.s32 %v3545, 536870912
          %v3547 = vshrl.u32 %v3546, 30
          %v3548 = vshll.u32 %v3547, 30
          %v3549 = vsub.s32 %v3545, %v3548
          %vm3550 = vcmp.lt.s32.totalorder %v3549, 0
          %v3551 = vsub.s32 0, %v3549
          %v3552 = vsel %vm3550, %v3551, %v3549
          %v3553 = vclz %v3552
          %v3554 = vsub.s32 %v3553, 2
          %vm3555 = vcmp.gt.s32.totalorder 0, %v3554
          %v3556 = vsel %vm3555, 0, %v3554
          %v3557 = vsub.s32 32, %v3556
          %v3558 = vshll.u32 %v3549, %v3556
          %v3559 = vshrl.u32 %v3541, %v3557
          %v3560 = vor.u32 %v3558, %v3559
          %v3561 = vsub.s32 4294967266, %v3556
          %v3562 = vadd.s32 %v3561, 127
          %v3563 = vshll.u32 %v3562, 23
          %v3564 = vor.u32 4788187, %v3563
          %v3565 = vand.u32 2147483647, %v3564
          %v3567 = vcvt.s32.f32 %v3560
          %v3568 = vmul.f32 %v3567, %v3565
          %v3569 = vxor.u32 %v3568, 2147483648
          %v3570 = vsel %vm3487, %v3569, %v3568
          %v3571 = vsub.s32 4, %v3547
          %v3572 = vsel %vm3487, %v3571, %v3547
          %v3573 = vsel %vm3486, %v3276, %v3570
          %v3574 = vsel %vm3486, 0, %v3572
          %v3575 = vcosq.f32.pop %v3573
          %v3576 = vsinq.f32.pop %v3573
          %vm3577 = vweird.f32 %v3276
          %v3578 = vand.u32 %v3574, 3
          %vm3579 = vcmp.lt.s32.totalorder %v3578, 2
          %vm3580 = vcmp.eq.s32.totalorder %v3578, 0
          %v3581 = vxor.u32 %v3576, 2147483648
          %v3582 = vsel %vm3580, %v3575, %v3581
          %vm3583 = vcmp.eq.s32.totalorder %v3578, 2
          %v3584 = vxor.u32 %v3575, 2147483648
          %v3585 = vsel %vm3583, %v3584, %v3576
          %v3586 = vsel %vm3579, %v3582, %v3585
          %v3587 = vsel %vm3577, nan, %v3586
          %v3588 = vand.u32 2147483647, %v3277
          %vm3589 = vcmp.le.f32.partialorder %v3588, 0.7853982
          %vm3590 = vcmp.lt.s32.totalorder %v3277, 0
          %v3591 = vand.u32 %v3277, 2139095040
          %v3592 = vshrl.u32 %v3591, 23
          %v3593 = vsub.s32 %v3592, 127
          %v3594 = vand.u32 2147483647, %v3277
          %v3595 = vand.u32 %v3594, 8388607
          %v3596 = vor.u32 %v3595, 8388608
          %v3597 = vsub.s32 0, %v3596
          %v3598 = vadd.s32 %v3593, 1
          %vm3599 = vcmp.gt.s32.totalorder %v3598, 0
          %v3600 = vsel %vm3599, %v3598, 0
          %v3601 = vshrl.u32 %v3600, 5
          %v3602 = vand.u32 %v3600, 31
          %v3603 = vsub.s32 32, %v3602
          %v3604 = vshrl.u32 683565275, %v3603
          %v3605 = vshll.u32 683565275, %v3602
          %v3606 = vshrl.u32 2475754826, %v3603
          %v3607 = vor.u32 %v3605, %v3606
          %v3608 = vshll.u32 2475754826, %v3602
          %v3609 = vshrl.u32 2131351028, %v3603
          %v3610 = vor.u32 %v3608, %v3609
          %v3611 = vshll.u32 2131351028, %v3602
          %v3612 = vshrl.u32 2102212464, %v3603
          %v3613 = vor.u32 %v3611, %v3612
          %v3614 = vshll.u32 2102212464, %v3602
          %v3615 = vshrl.u32 920167782, %v3603
          %v3616 = vor.u32 %v3614, %v3615
          %v3617 = vshll.u32 920167782, %v3602
          %v3618 = vshrl.u32 1326507024, %v3603
          %v3619 = vor.u32 %v3617, %v3618
          %vm3620 = vcmp.lt.s32.totalorder %v3601, 1
          %vm3621 = vcmp.lt.s32.totalorder %v3601, 2
          %vm3622 = vcmp.lt.s32.totalorder %v3601, 3
          %vm3623 = vcmp.lt.s32.totalorder %v3601, 4
          %v3624 = vsel %vm3620, %v3604, %v3607
          %v3625 = vsel %vm3623, %v3613, 2102212464
          %v3626 = vsel %vm3622, %v3610, %v3625
          %v3627 = vsel %vm3621, %v3624, %v3626
          %v3628 = vsel %vm3620, %v3607, %v3610
          %v3629 = vsel %vm3623, %v3616, 920167782
          %v3630 = vsel %vm3622, %v3613, %v3629
          %v3631 = vsel %vm3621, %v3628, %v3630
          %v3632 = vsel %vm3620, %v3610, %v3613
          %v3633 = vsel %vm3623, %v3619, 1326507024
          %v3634 = vsel %vm3622, %v3616, %v3633
          %v3635 = vsel %vm3621, %v3632, %v3634
          %v3636 = vshll.u32 %v3596, 8
          %v3637 = vmul.u32.u64.compose %v3636, %v3635
          %v3638 = vextract.low.u32 %v3637
          %v3639 = vextract.high.u32 %v3637
          %v3640 = vmul.u32.u64.compose %v3636, %v3631
          %v3641 = vextract.low.u32 %v3640
          %v3642 = vextract.high.u32 %v3640
          %v3643 = vmul.u32 %v3636, %v3627
          %v3644 = vadd.s32 %v3639, %v3641
          %vm3645 = vc.u32 %v3639, %v3641
          %v3646 = vadd.s32 %v3642, 1
          %v3647 = vsel %vm3645, %v3646, %v3642
          %v3648 = vadd.s32 %v3643, %v3647
          %v3649 = vadd.s32 %v3648, 536870912
          %v3650 = vshrl.u32 %v3649, 30
          %v3651 = vshll.u32 %v3650, 30
          %v3652 = vsub.s32 %v3648, %v3651
          %vm3653 = vcmp.lt.s32.totalorder %v3652, 0
          %v3654 = vsub.s32 0, %v3652
          %v3655 = vsel %vm3653, %v3654, %v3652
          %v3656 = vclz %v3655
          %v3657 = vsub.s32 %v3656, 2
          %vm3658 = vcmp.gt.s32.totalorder 0, %v3657
          %v3659 = vsel %vm3658, 0, %v3657
          %v3660 = vsub.s32 32, %v3659
          %v3661 = vshll.u32 %v3652, %v3659
          %v3662 = vshrl.u32 %v3644, %v3660
          %v3663 = vor.u32 %v3661, %v3662
          %v3664 = vsub.s32 4294967266, %v3659
          %v3665 = vadd.s32 %v3664, 127
          %v3666 = vshll.u32 %v3665, 23
          %v3667 = vor.u32 4788187, %v3666
          %v3668 = vand.u32 2147483647, %v3667
          %v3670 = vcvt.s32.f32 %v3663
          %v3671 = vmul.f32 %v3670, %v3668
          %v3672 = vxor.u32 %v3671, 2147483648
          %v3673 = vsel %vm3590, %v3672, %v3671
          %v3674 = vsub.s32 4, %v3650
          %v3675 = vsel %vm3590, %v3674, %v3650
          %v3676 = vsel %vm3589, %v3277, %v3673
          %v3677 = vsel %vm3589, 0, %v3675
          %v3678 = vcosq.f32.pop %v3676
          %v3679 = vsinq.f32.pop %v3676
          %vm3680 = vweird.f32 %v3277
          %v3681 = vand.u32 %v3677, 3
          %vm3682 = vcmp.lt.s32.totalorder %v3681, 2
          %vm3683 = vcmp.eq.s32.totalorder %v3681, 0
          %v3684 = vxor.u32 %v3679, 2147483648
          %v3685 = vsel %vm3683, %v3678, %v3684
          %vm3686 = vcmp.eq.s32.totalorder %v3681, 2
          %v3687 = vxor.u32 %v3678, 2147483648
          %v3688 = vsel %vm3686, %v3687, %v3679
          %v3689 = vsel %vm3682, %v3685, %v3688
          %v3690 = vsel %vm3680, nan, %v3689
          %v3691 = vand.u32 2147483647, %v3278
          %vm3692 = vcmp.le.f32.partialorder %v3691, 0.7853982
          %vm3693 = vcmp.lt.s32.totalorder %v3278, 0
          %v3694 = vand.u32 %v3278, 2139095040
          %v3695 = vshrl.u32 %v3694, 23
          %v3696 = vsub.s32 %v3695, 127
          %v3697 = vand.u32 2147483647, %v3278
          %v3698 = vand.u32 %v3697, 8388607
          %v3699 = vor.u32 %v3698, 8388608
          %v3700 = vsub.s32 0, %v3699
          %v3701 = vadd.s32 %v3696, 1
          %vm3702 = vcmp.gt.s32.totalorder %v3701, 0
          %v3703 = vsel %vm3702, %v3701, 0
          %v3704 = vshrl.u32 %v3703, 5
          %v3705 = vand.u32 %v3703, 31
          %v3706 = vsub.s32 32, %v3705
          %v3707 = vshrl.u32 683565275, %v3706
          %v3708 = vshll.u32 683565275, %v3705
          %v3709 = vshrl.u32 2475754826, %v3706
          %v3710 = vor.u32 %v3708, %v3709
          %v3711 = vshll.u32 2475754826, %v3705
          %v3712 = vshrl.u32 2131351028, %v3706
          %v3713 = vor.u32 %v3711, %v3712
          %v3714 = vshll.u32 2131351028, %v3705
          %v3715 = vshrl.u32 2102212464, %v3706
          %v3716 = vor.u32 %v3714, %v3715
          %v3717 = vshll.u32 2102212464, %v3705
          %v3718 = vshrl.u32 920167782, %v3706
          %v3719 = vor.u32 %v3717, %v3718
          %v3720 = vshll.u32 920167782, %v3705
          %v3721 = vshrl.u32 1326507024, %v3706
          %v3722 = vor.u32 %v3720, %v3721
          %vm3723 = vcmp.lt.s32.totalorder %v3704, 1
          %vm3724 = vcmp.lt.s32.totalorder %v3704, 2
          %vm3725 = vcmp.lt.s32.totalorder %v3704, 3
          %vm3726 = vcmp.lt.s32.totalorder %v3704, 4
          %v3727 = vsel %vm3723, %v3707, %v3710
          %v3728 = vsel %vm3726, %v3716, 2102212464
          %v3729 = vsel %vm3725, %v3713, %v3728
          %v3730 = vsel %vm3724, %v3727, %v3729
          %v3731 = vsel %vm3723, %v3710, %v3713
          %v3732 = vsel %vm3726, %v3719, 920167782
          %v3733 = vsel %vm3725, %v3716, %v3732
          %v3734 = vsel %vm3724, %v3731, %v3733
          %v3735 = vsel %vm3723, %v3713, %v3716
          %v3736 = vsel %vm3726, %v3722, 1326507024
          %v3737 = vsel %vm3725, %v3719, %v3736
          %v3738 = vsel %vm3724, %v3735, %v3737
          %v3739 = vshll.u32 %v3699, 8
          %v3740 = vmul.u32.u64.compose %v3739, %v3738
          %v3741 = vextract.low.u32 %v3740
          %v3742 = vextract.high.u32 %v3740
          %v3743 = vmul.u32.u64.compose %v3739, %v3734
          %v3744 = vextract.low.u32 %v3743
          %v3745 = vextract.high.u32 %v3743
          %v3746 = vmul.u32 %v3739, %v3730
          %v3747 = vadd.s32 %v3742, %v3744
          %vm3748 = vc.u32 %v3742, %v3744
          %v3749 = vadd.s32 %v3745, 1
          %v3750 = vsel %vm3748, %v3749, %v3745
          %v3751 = vadd.s32 %v3746, %v3750
          %v3752 = vadd.s32 %v3751, 536870912
          %v3753 = vshrl.u32 %v3752, 30
          %v3754 = vshll.u32 %v3753, 30
          %v3755 = vsub.s32 %v3751, %v3754
          %vm3756 = vcmp.lt.s32.totalorder %v3755, 0
          %v3757 = vsub.s32 0, %v3755
          %v3758 = vsel %vm3756, %v3757, %v3755
          %v3759 = vclz %v3758
          %v3760 = vsub.s32 %v3759, 2
          %vm3761 = vcmp.gt.s32.totalorder 0, %v3760
          %v3762 = vsel %vm3761, 0, %v3760
          %v3763 = vsub.s32 32, %v3762
          %v3764 = vshll.u32 %v3755, %v3762
          %v3765 = vshrl.u32 %v3747, %v3763
          %v3766 = vor.u32 %v3764, %v3765
          %v3767 = vsub.s32 4294967266, %v3762
          %v3768 = vadd.s32 %v3767, 127
          %v3769 = vshll.u32 %v3768, 23
          %v3770 = vor.u32 4788187, %v3769
          %v3771 = vand.u32 2147483647, %v3770
          %v3773 = vcvt.s32.f32 %v3766
          %v3774 = vmul.f32 %v3773, %v3771
          %v3775 = vxor.u32 %v3774, 2147483648
          %v3776 = vsel %vm3693, %v3775, %v3774
          %v3777 = vsub.s32 4, %v3753
          %v3778 = vsel %vm3693, %v3777, %v3753
          %v3779 = vsel %vm3692, %v3278, %v3776
          %v3780 = vsel %vm3692, 0, %v3778
          %v3781 = vcosq.f32.pop %v3779
          %v3782 = vsinq.f32.pop %v3779
          %vm3783 = vweird.f32 %v3278
          %v3784 = vand.u32 %v3780, 3
          %vm3785 = vcmp.lt.s32.totalorder %v3784, 2
          %vm3786 = vcmp.eq.s32.totalorder %v3784, 0
          %v3787 = vxor.u32 %v3782, 2147483648
          %v3788 = vsel %vm3786, %v3781, %v3787
          %vm3789 = vcmp.eq.s32.totalorder %v3784, 2
          %v3790 = vxor.u32 %v3781, 2147483648
          %v3791 = vsel %vm3789, %v3790, %v3782
          %v3792 = vsel %vm3785, %v3788, %v3791
          %v3793 = vsel %vm3783, nan, %v3792
          %v3794 = vadd.f32 %v3227, %v3381
          %v3795 = vadd.f32 %v3228, %v3484
          %v3796 = vadd.f32 %v3229, %v3587
          %v3797 = vadd.f32 %v3230, %v3690
          %v3798 = vadd.f32 %v3231, %v3793
          %v3799 = vmul.f32 %v3794, 0.16666667
          %v3800 = vmul.f32 %v3795, 0.16666667
          %v3801 = vmul.f32 %v3796, 0.16666667
          %v3802 = vmul.f32 %v3797, 0.16666667
          %v3803 = vmul.f32 %v3798, 0.16666667
          %v3804 = vlaneseq
          %v3805 = vand.u32 %v3804, 127
          %v3806 = vstv %s387
          %v3807 = vadd.s32 %v3805, %v3806
          %v3808 = vstv %s388
          %vm3809 = vcmp.lt.s32.totalorder %v3807, %v3808
          %v3810 = vsel %vm3809, %v3799, 0.0
          %v3811 = vsel %vm3809, %v3800, 0.0
          %v3812 = vsel %vm3809, %v3801, 0.0
          %v3813 = vsel %vm3809, %v3802, 0.0
          %v3814 = vsel %vm3809, %v3803, 0.0
          %3815 = vst [vmem:[%s381] sm:$0xff] %v3810
          %3816 = vst [vmem:[%s381 + $0x8] sm:$0xff] %v3811
          %3817 = vst [vmem:[%s381 + $0x10] sm:$0xff] %v3812
          %3818 = vst [vmem:[%s381 + $0x18] sm:$0xff] %v3813
          %3819 = vst [vmem:[%s381 + $0x20] sm:$0x1] %v3814
        $region78: #{tpu_custom_call.1} parent=65 // pred_fallthru
          _
        %p3820 = scmp.ge.s32.totalorder %s387, %s388
        // Predicated region
        $region79: #{tpu_custom_call.1} parent=65 // pred_check
          %p3821 = pneg %p3820
        $region80: #{tpu_custom_call.1} parent=65 // pred_check_branch
          %3823 = sbr.rel (%p3821) target = $region82
        $region81: #{tpu_custom_call.1} parent=65 // pred_region
          %3824 = vst [vmem:[%s381] sm:$0xff] 0.0
          %3825 = vst [vmem:[%s381 + $0x8] sm:$0xff] 0.0
          %3826 = vst [vmem:[%s381 + $0x10] sm:$0xff] 0.0
          %3827 = vst [vmem:[%s381 + $0x18] sm:$0xff] 0.0
          %3828 = vst [vmem:[%s381 + $0x20] sm:$0x1] 0.0
        $region82: #{tpu_custom_call.1} parent=65 // pred_fallthru
          _
        %s3829 = sand.u32 %s112, 1
        %s3830 = sand.u32 %s112, 1
        %s3831 = smul.addr %s3830, 40
        %s3832 = scalar_lea.vmem [#allocation5], %s3831
        // Predicated region
        $region83: #{tpu_custom_call.1} parent=65 // pred_check
          %p3833 = pneg %p122
        $region84: #{tpu_custom_call.1} parent=65 // pred_check_branch
          %3835 = sbr.rel (%p3833) target = $region86
        $region85: #{tpu_custom_call.1} parent=65 // pred_region
          %s3836 = smul.addr %s19, 10
          %s3837 = sadd.s32 %s20, %s3836
          %s3838 = smul.addr %s3837, 8
          %s3839 = scalar_lea.vmem %s3, %s3838
          // Predicated region
          $region87: #{tpu_custom_call.1} parent=85 // pred_check
            _
          $region88: #{tpu_custom_call.1} parent=85 // pred_check_branch
            %3841 = sbr.rel (0) target = $region90
          $region89: #{tpu_custom_call.1} parent=85 // pred_region
            // Predicated region
            $region91: #{tpu_custom_call.1} parent=89 // pred_check
              _
            $region92: #{tpu_custom_call.1} parent=89 // pred_check_branch
              %3843 = sbr.rel (0) target = $region94
            $region93: #{tpu_custom_call.1} parent=89 // pred_region
              // Predicated region
              $region106: #{tpu_custom_call.1} parent=93 // pred_check
                _
              $region107: #{tpu_custom_call.1} parent=93 // pred_check_branch
                %3866 = sbr.rel (0) target = $region109
              $region108: #{tpu_custom_call.1} parent=93 // pred_region
                loop: start=0, step=1, limit=1
                $region110: #{tpu_custom_call.1} parent=108 // loop_pre_header
                  _
                $region111: #{tpu_custom_call.1} parent=108 // loop_header
                  %s3868 = sphi 0, %s3872
                  %p3869 = scmp.ge.s32.totalorder %s3868, 1
                  %s3873 = sphi %s3832, %s3832
                  %s3874 = sphi %s3839, %s3839
                $region112: #{tpu_custom_call.1} parent=108 // loop_header_branch
                  %3871 = sbr.rel (%p3869) target = $region116
                $region113: #{tpu_custom_call.1} parent=108 // loop_body
                  %v3875 = vld [vmem:[%s3873] sm:$0xff]
                  %3876 = vst [vmem:[%s3874] sm:$0xff] %v3875
                  %v3877 = vld [vmem:[%s3873 + $0x8] sm:$0xff]
                  %3878 = vst [vmem:[%s3874 + $0x10] sm:$0xff] %v3877
                  %v3879 = vld [vmem:[%s3873 + $0x10] sm:$0xff]
                  %3880 = vst [vmem:[%s3874 + $0x20] sm:$0xff] %v3879
                  %v3881 = vld [vmem:[%s3873 + $0x18] sm:$0xff]
                  %3882 = vst [vmem:[%s3874 + $0x30] sm:$0xff] %v3881
                  %v3883 = vld [vmem:[%s3873 + $0x20] sm:$0xff]
                  %3884 = vst [vmem:[%s3874 + $0x40] sm:$0xff] %v3883
                $region114: #{tpu_custom_call.1} parent=108 // loop_footer
                  %s3872 = sadd.s32 1, %s3868
                $region115: #{tpu_custom_call.1} parent=108 // loop_footer_branch
                  %3867 = sbr.rel target = $region111
                $region116: #{tpu_custom_call.1} parent=108 // loop_exit
                  _
              $region109: #{tpu_custom_call.1} parent=93 // pred_fallthru
                _
              // Predicated region
              $region117: #{tpu_custom_call.1} parent=93 // pred_check
                _
              $region118: #{tpu_custom_call.1} parent=93 // pred_check_branch
                %3886 = sbr.rel target = $region120
              $region119: #{tpu_custom_call.1} parent=93 // pred_region
                _
              $region120: #{tpu_custom_call.1} parent=93 // pred_fallthru
                _
            $region94: #{tpu_custom_call.1} parent=89 // pred_fallthru
              _
            // Predicated region
            $region95: #{tpu_custom_call.1} parent=89 // pred_check
              _
            $region96: #{tpu_custom_call.1} parent=89 // pred_check_branch
              %3845 = sbr.rel target = $region98
            $region97: #{tpu_custom_call.1} parent=89 // pred_region
              loop: start=0, step=1, limit=1
              $region99: #{tpu_custom_call.1} parent=97 // loop_pre_header
                _
              $region100: #{tpu_custom_call.1} parent=97 // loop_header
                %s3848 = sphi 0, %s3852
                %p3849 = scmp.ge.s32.totalorder %s3848, 1
                %s3853 = sphi %s3832, %s3832
                %s3854 = sphi %s3839, %s3839
              $region101: #{tpu_custom_call.1} parent=97 // loop_header_branch
                %3851 = sbr.rel (%p3849) target = $region105
              $region102: #{tpu_custom_call.1} parent=97 // loop_body
                %v3855 = vld [vmem:[%s3853] sm:$0xff]
                %3856 = vst [vmem:[%s3854] sm:$0xff] %v3855
                %v3857 = vld [vmem:[%s3853 + $0x8] sm:$0xff]
                %3858 = vst [vmem:[%s3854 + $0x10] sm:$0xff] %v3857
                %v3859 = vld [vmem:[%s3853 + $0x10] sm:$0xff]
                %3860 = vst [vmem:[%s3854 + $0x20] sm:$0xff] %v3859
                %v3861 = vld [vmem:[%s3853 + $0x18] sm:$0xff]
                %3862 = vst [vmem:[%s3854 + $0x30] sm:$0xff] %v3861
                %v3863 = vld [vmem:[%s3853 + $0x20] sm:$0xff]
                %3864 = vst [vmem:[%s3854 + $0x40] sm:$0xff] %v3863
              $region103: #{tpu_custom_call.1} parent=97 // loop_footer
                %s3852 = sadd.s32 1, %s3848
              $region104: #{tpu_custom_call.1} parent=97 // loop_footer_branch
                %3847 = sbr.rel target = $region100
              $region105: #{tpu_custom_call.1} parent=97 // loop_exit
                _
            $region98: #{tpu_custom_call.1} parent=89 // pred_fallthru
              _
          $region90: #{tpu_custom_call.1} parent=85 // pred_fallthru
            _
          %3887 = vnop
        $region86: #{tpu_custom_call.1} parent=65 // pred_fallthru
          _
      $region66: #{tpu_custom_call.1} parent=5 // pred_fallthru
        _
      %p3888 = scmp.le.s32.totalorder 2, %s10
      // Predicated region
      $region121: #{tpu_custom_call.1} parent=5 // pred_check
        %p3889 = pneg %p3888
      $region122: #{tpu_custom_call.1} parent=5 // pred_check_branch
        %3891 = sbr.rel (%p3889) target = $region124
      $region123: #{tpu_custom_call.1} parent=5 // pred_region
        %s3892 = ssub.s32 %s10, 2
        // Predicated region
        $region125: #{tpu_custom_call.1} parent=123 // pred_check
          %p3893 = pneg %p128
        $region126: #{tpu_custom_call.1} parent=123 // pred_check_branch
          %3895 = sbr.rel (%p3893) target = $region128
        $region127: #{tpu_custom_call.1} parent=123 // pred_region
          %s3896 = sand.u32 %s113, 1
          %s3897 = sand.u32 %s113, 1
          %s3898 = smul.addr %s3897, 40
          %s3899 = scalar_lea.vmem [#allocation5], %s3898
        $region128: #{tpu_custom_call.1} parent=123 // pred_fallthru
          _
      $region124: #{tpu_custom_call.1} parent=5 // pred_fallthru
        _
    $region6: #{tpu_custom_call.1} parent=1 // loop_footer
      %s14 = sadd.s32 1, %s10
    $region7: #{tpu_custom_call.1} parent=1 // loop_footer_branch
      %9 = sbr.rel target = $region3
    $region8: #{tpu_custom_call.1} parent=1 // loop_exit
      _
    %3900 = vsyncpa [#allocation3], 1
    %s3901 = scalar_lea.sflag [#allocation3], 1
    %3902 = vsyncpa %s3901, 1

</llo_original>
